<compile_context>
chip_gen: v7x
topology: tpu7x:2x2x1
jax: 0.10.0
libtpu: 0.0.40
codegen_flags: <defaults>
</compile_context>

<pallas_src>
import math
import warnings
from functools import partial

import jax
import jax.numpy as jnp
from jax.experimental import pallas as pl
from jax.experimental.pallas import tpu as pltpu


def block_kernel(x_ref, ln1_w_ref, ln1_b_ref, wqkv_ref, wproj_ref, bproj_ref,
                 ln2_w_ref, ln2_b_ref, w1_ref, b1_ref, w2_ref, b2_ref,
                 o_ref, attn_out_ref, *, batch_tile, seq_len, num_heads, eps):
    Bt, N, nh = batch_tile, seq_len, num_heads
    M, C = x_ref.shape                      # M = Bt * N flattened rows
    hd = C // nh
    bf16 = jnp.bfloat16
    f32 = jnp.float32

    x = x_ref[...].astype(f32)              # (M, C) residual stream, f32

    def layernorm(v, w, b):
        mu = jnp.mean(v, axis=-1, keepdims=True)
        d = v - mu
        var = jnp.mean(d * d, axis=-1, keepdims=True)   # two-pass: no cancellation
        return d * jax.lax.rsqrt(var + eps) * w + b

    # ---------------- attention branch ----------------
    xn = layernorm(x, ln1_w_ref[0], ln1_b_ref[0])                        # (M, C) f32
    # qk scale is pre-folded into the Q columns of wqkv by the wrapper.
    qkv = jnp.dot(xn.astype(bf16), wqkv_ref[...],
                  preferred_element_type=f32)                            # (M, 3C) f32

    # Per-head attention, batched over the Bt batch elements in this row block.
    # Head outputs are assembled into a bf16 (M, C) scratch so the output
    # projection is a single full-depth (K = C) matmul.
    # TODO(synk): at large N, move heads to a fori_loop / grid axis and tile N
    # (flash-style online softmax) instead of materializing (N, N) logits.
    for h in range(nh):                                                  # static unroll
        q = qkv[:, h * hd:(h + 1) * hd].reshape(Bt, N, hd).astype(bf16)
        k = qkv[:, C + h * hd: C + (h + 1) * hd].reshape(Bt, N, hd).astype(bf16)
        v = qkv[:, 2 * C + h * hd: 2 * C + (h + 1) * hd].reshape(Bt, N, hd).astype(bf16)
        # q @ k^T batched over Bt, contracting hd (no explicit transpose of k).
        logits = jax.lax.dot_general(
            q, k, dimension_numbers=(((2,), (2,)), ((0,), (0,))),
            preferred_element_type=f32)                                  # (Bt, N, N)
        logits = logits - jnp.max(logits, axis=-1, keepdims=True)
        p = jnp.exp(logits)                                              # unnormalized
        head = jax.lax.dot_general(
            p.astype(bf16), v, dimension_numbers=(((2,), (1,)), ((0,), (0,))),
            preferred_element_type=f32)                                  # (Bt, N, hd)
        # deferred softmax normalization: scale (Bt,N,hd) instead of (Bt,N,N)
        head = head * pl.reciprocal(jnp.sum(p, axis=-1, keepdims=True), approx=True)
        attn_out_ref[:, h * hd:(h + 1) * hd] = head.reshape(M, hd).astype(bf16)

    proj = jnp.dot(attn_out_ref[...], wproj_ref[...],
                   preferred_element_type=f32)                           # (M, C), K = C
    x = x + proj + bproj_ref[0]                                          # residual 1

    # ---------------- MLP branch ----------------
    xn2 = layernorm(x, ln2_w_ref[0], ln2_b_ref[0])
    h1 = jnp.dot(xn2.astype(bf16), w1_ref[...],
                 preferred_element_type=f32) + b1_ref[0]                 # (M, H) f32
    # exact GELU (erf-based), matching nn.GELU default.
    # TODO(synk): tanh-approx GELU would route through the EUP if bit-exactness
    # with nn.GELU(erf) is not required.
    g = 0.5 * h1 * (1.0 + jax.lax.erf(h1 * jnp.float32(1.0 / math.sqrt(2.0))))
    h2 = jnp.dot(g.astype(bf16), w2_ref[...],
                 preferred_element_type=f32) + b2_ref[0]                 # (M, C) f32

    o_ref[...] = (x + h2).astype(o_ref.dtype)                            # residual 2


def _vmem_cap_bytes():
    """Physical VMEM of the current generation (conservative fallback: v7x 64 MiB)."""
    try:
        cap = getattr(pltpu.get_tpu_info(), "vmem_capacity_bytes", None)
        if cap:
            return int(cap)
    except Exception:
        pass
    return 64 << 20


def _pick_batch_tile(B, N, min_rows=128, max_rows=1024):
    """Smallest divisor Bt of B with Bt*N >= min_rows (tall MXU tiles), capped."""
    bt = 1
    for cand in range(1, B + 1):
        if B % cand == 0 and cand * N <= max(max_rows, N):
            bt = cand
            if cand * N >= min_rows:
                break
    return bt


def _run_block(x2, args, *, batch_tile, seq_len, num_heads, eps, single_buffer_weights):
    R, C = x2.shape                      # R = B * N flattened rows
    H = args["w1"].shape[1]
    M = batch_tile * seq_len             # rows per grid step
    grid = (R // M,)

    kern = partial(block_kernel, batch_tile=batch_tile, seq_len=seq_len,
                   num_heads=num_heads, eps=eps)

    def wspec(shape):
        idx = lambda i, _n=len(shape): (0,) * _n
        if single_buffer_weights:
            # grid-invariant operand: one VMEM buffer is enough (no re-DMA per step).
            return pl.BlockSpec(shape, idx, pipeline_mode=pl.Buffered(1))
        return pl.BlockSpec(shape, idx)

    in_specs = [
        pl.BlockSpec((M, C), lambda i: (i, 0)),         # x rows
        wspec((1, C)), wspec((1, C)),                   # ln1 w, b
        wspec((C, 3 * C)),                              # qkv weight (qkv_bias=False)
        wspec((C, C)), wspec((1, C)),                   # proj weight, bias
        wspec((1, C)), wspec((1, C)),                   # ln2 w, b
        wspec((C, H)), wspec((1, H)),                   # mlp fc1 weight, bias
        wspec((H, C)), wspec((1, C)),                   # mlp fc2 weight, bias
    ]

    # Explicit scoped-VMEM budget: bf16 weights (x buffers), f32 LN/bias vectors,
    # double-buffered x/out row tiles, bf16 attention scratch, rough f32
    # intermediates, plus margin; capped generation-aware (~0.78 x physical VMEM).
    nbuf = 1 if single_buffer_weights else 2
    wbytes = (C * 3 * C + C * C + C * H + H * C) * 2 * nbuf
    sbytes = (6 * C + H) * 4 * nbuf
    iobytes = 2 * 2 * M * C * 4
    scratchbytes = M * C * 2
    actbytes = (4 * M * C + M * 3 * C + 2 * M * H) * 4 \
        + 2 * batch_tile * seq_len * seq_len * 4
    est = int(1.5 * (wbytes + sbytes + iobytes + scratchbytes + actbytes)) + (4 << 20)
    vmem_limit = min(max(est, 16 << 20), int(0.78 * _vmem_cap_bytes()))

    return pl.pallas_call(
        kern,
        out_shape=jax.ShapeDtypeStruct((R, C), x2.dtype),
        grid=grid,
        in_specs=in_specs,
        out_specs=pl.BlockSpec((M, C), lambda i: (i, 0)),
        scratch_shapes=[pltpu.VMEM((M, C), jnp.bfloat16)],   # assembled head outputs
        compiler_params=pltpu.CompilerParams(
            dimension_semantics=("parallel",),
            vmem_limit_bytes=vmem_limit),
    )(x2, args["ln1_w"], args["ln1_b"], args["wqkv"], args["wproj"],
      args["bproj"], args["ln2_w"], args["ln2_b"], args["w1"],
      args["b1"], args["w2"], args["b2"])


def transformer_block(x, params, num_heads, eps=1e-5):
    B, N, C = x.shape
    hd = C // num_heads
    scale = math.sqrt(hd)   # qk_scale=None -> sqrt(head_dim), exactly as the module

    # Wrapper-side weight prep (traced once, free at kernel runtime):
    #  * fold the qk scale into the Q columns of the qkv weight
    #  * cast all matmul weights to bf16 (accumulation stays f32 on the MXU)
    wqkv = params["wqkv"].at[:, :C].multiply(scale).astype(jnp.bfloat16)
    args = dict(params,
                wqkv=wqkv,
                wproj=params["wproj"].astype(jnp.bfloat16),
                w1=params["w1"].astype(jnp.bfloat16),
                w2=params["w2"].astype(jnp.bfloat16))

    bt = _pick_batch_tile(B, N)
    x2 = x.reshape(B * N, C)   # row-wise ops (LN/qkv/proj/MLP) see tall row tiles

    try:
        out2 = _run_block(x2, args, batch_tile=bt, seq_len=N, num_heads=num_heads,
                          eps=eps, single_buffer_weights=True)
    except Exception as e:  # pipeline_mode=pl.Buffered(1) unsupported on this backend
        warnings.warn(
            "Pallas block kernel: single-buffered weights (pl.Buffered(1)) failed "
            f"({type(e).__name__}: {e}); falling back to double-buffered weights "
            "(2x weight VMEM -- watch this on v7x).")
        out2 = _run_block(x2, args, batch_tile=bt, seq_len=N, num_heads=num_heads,
                          eps=eps, single_buffer_weights=False)
    return out2.reshape(B, N, C)


def reference_block(x, params, num_heads):
    """Pure-JAX f32 reference mirroring the PyTorch forward exactly."""
    def ln(v, w, b):
        mu = v.mean(-1, keepdims=True)
        var = ((v - mu) ** 2).mean(-1, keepdims=True)
        return (v - mu) / jnp.sqrt(var + 1e-5) * w + b

    B, N, C = x.shape
    hd = C // num_heads
    scale = math.sqrt(hd)

    xn = ln(x, params["ln1_w"][0], params["ln1_b"][0])
    qkv = xn @ params["wqkv"]                                    # (B, N, 3C)
    qkv = qkv.reshape(B, N, 3, num_heads, hd).transpose(2, 0, 3, 1, 4)
    q, k, v = qkv[0], qkv[1], qkv[2]                             # (B, H, N, hd)
    attn = jnp.einsum("bhnd,bhmd->bhnm", q, k) * scale
    attn = jax.nn.softmax(attn, axis=-1)
    o = jnp.einsum("bhnm,bhmd->bhnd", attn, v).transpose(0, 2, 1, 3).reshape(B, N, C)
    o = o @ params["wproj"] + params["bproj"][0]
    x = x + o
    xn2 = ln(x, params["ln2_w"][0], params["ln2_b"][0])
    h = jax.nn.gelu(xn2 @ params["w1"] + params["b1"][0], approximate=False)
    return x + h @ params["w2"] + params["b2"][0]


def make_params(key, dim, mlp_hidden):
    ks = jax.random.split(key, 4)
    return {
        "ln1_w": jnp.ones((1, dim), jnp.float32),
        "ln1_b": jnp.zeros((1, dim), jnp.float32),
        "wqkv": 0.02 * jax.random.normal(ks[0], (dim, 3 * dim), jnp.float32),
        "wproj": 0.02 * jax.random.normal(ks[1], (dim, dim), jnp.float32),
        "bproj": jnp.zeros((1, dim), jnp.float32),
        "ln2_w": jnp.ones((1, dim), jnp.float32),
        "ln2_b": jnp.zeros((1, dim), jnp.float32),
        "w1": 0.02 * jax.random.normal(ks[2], (dim, mlp_hidden), jnp.float32),
        "b1": jnp.zeros((1, mlp_hidden), jnp.float32),
        "w2": 0.02 * jax.random.normal(ks[3], (mlp_hidden, dim), jnp.float32),
        "b2": jnp.zeros((1, dim), jnp.float32),
    }


if __name__ == "__main__":
    # Small but lane-dense shapes: C is a multiple of 128 so loads/stores are unmasked;
    # N is a multiple of 8 so the (B*N, C) row flattening stays tile-aligned.
    B, N, C = 2, 8, 128          # batch, seq, embed dim
    num_heads = 4                # head_dim = 32
    mlp_ratio = 4.0
    mlp_hidden = int(C * mlp_ratio)   # 512

    key = jax.random.PRNGKey(0)
    kx, kp = jax.random.split(key)
    x = jax.random.normal(kx, (B, N, C), jnp.float32)
    params = make_params(kp, C, mlp_hidden)

    out = transformer_block(x, params, num_heads)
    out = jax.block_until_ready(out)

    ref = reference_block(x, params, num_heads)
    assert out.shape == (B, N, C)
    # bf16 matmul operands (f32 accumulation) + approx reciprocal vs. pure-f32
    # reference -> looser tolerance
    assert jnp.allclose(out, ref, atol=2e-2, rtol=2e-2), "mismatch vs reference"

    print("KERNEL_OK")
</pallas_src>

<mosaic_0001>
module attributes {stable_mosaic.version = 11 : i64} {
  func.func @block_kernel(%arg0: i32, %arg1: memref<16x128xf32, #tpu.memory_space<vmem>>, %arg2: memref<1x128xf32, #tpu.memory_space<vmem>>, %arg3: memref<1x128xf32, #tpu.memory_space<vmem>>, %arg4: memref<128x384xbf16, #tpu.memory_space<vmem>>, %arg5: memref<128x128xbf16, #tpu.memory_space<vmem>>, %arg6: memref<1x128xf32, #tpu.memory_space<vmem>>, %arg7: memref<1x128xf32, #tpu.memory_space<vmem>>, %arg8: memref<1x128xf32, #tpu.memory_space<vmem>>, %arg9: memref<128x512xbf16, #tpu.memory_space<vmem>>, %arg10: memref<1x512xf32, #tpu.memory_space<vmem>>, %arg11: memref<512x128xbf16, #tpu.memory_space<vmem>>, %arg12: memref<1x128xf32, #tpu.memory_space<vmem>>, %arg13: memref<16x128xf32, #tpu.memory_space<vmem>>, %arg14: memref<16x128xbf16, #tpu.memory_space<vmem>>) attributes {dimension_semantics = [#tpu.dimension_semantics<parallel>], iteration_bounds = array<i64: 1>, scalar_prefetch = 0 : i64, scratch_operands = 1 : i64, tpu.core_type = #tpu.core_type<tc>, window_params = [{transform_indices = @transform_0, window_bounds = array<i64: 16, 128>}, {pipeline_mode = #tpu.pipeline_mode<synchronous>, transform_indices = @transform_1, window_bounds = array<i64: 1, 128>}, {pipeline_mode = #tpu.pipeline_mode<synchronous>, transform_indices = @transform_2, window_bounds = array<i64: 1, 128>}, {pipeline_mode = #tpu.pipeline_mode<synchronous>, transform_indices = @transform_3, window_bounds = array<i64: 128, 384>}, {pipeline_mode = #tpu.pipeline_mode<synchronous>, transform_indices = @transform_4, window_bounds = array<i64: 128, 128>}, {pipeline_mode = #tpu.pipeline_mode<synchronous>, transform_indices = @transform_5, window_bounds = array<i64: 1, 128>}, {pipeline_mode = #tpu.pipeline_mode<synchronous>, transform_indices = @transform_6, window_bounds = array<i64: 1, 128>}, {pipeline_mode = #tpu.pipeline_mode<synchronous>, transform_indices = @transform_7, window_bounds = array<i64: 1, 128>}, {pipeline_mode = #tpu.pipeline_mode<synchronous>, transform_indices = @transform_8, window_bounds = array<i64: 128, 512>}, {pipeline_mode = #tpu.pipeline_mode<synchronous>, transform_indices = @transform_9, window_bounds = array<i64: 1, 512>}, {pipeline_mode = #tpu.pipeline_mode<synchronous>, transform_indices = @transform_10, window_bounds = array<i64: 512, 128>}, {pipeline_mode = #tpu.pipeline_mode<synchronous>, transform_indices = @transform_11, window_bounds = array<i64: 1, 128>}, {transform_indices = @transform_12, window_bounds = array<i64: 16, 128>}]} {
    %c0 = arith.constant 0 : index
    %c0_0 = arith.constant 0 : index
    %0 = vector.load %arg1[%c0, %c0_0] : memref<16x128xf32, #tpu.memory_space<vmem>>, vector<16x128xf32>
    %c0_1 = arith.constant 0 : index
    %c0_2 = arith.constant 0 : index
    %1 = vector.load %arg2[%c0_1, %c0_2] : memref<1x128xf32, #tpu.memory_space<vmem>>, vector<1x128xf32>
    %2 = vector.shape_cast %1 : vector<1x128xf32> to vector<128xf32>
    %c0_3 = arith.constant 0 : index
    %c0_4 = arith.constant 0 : index
    %3 = vector.load %arg3[%c0_3, %c0_4] : memref<1x128xf32, #tpu.memory_space<vmem>>, vector<1x128xf32>
    %4 = vector.shape_cast %3 : vector<1x128xf32> to vector<128xf32>
    %cst = arith.constant dense<0.000000e+00> : vector<16xf32>
    %5 = vector.multi_reduction <add>, %0, %cst [1] : vector<16x128xf32> to vector<16xf32>
    %6 = vector.shape_cast %5 : vector<16xf32> to vector<16x1xf32>
    %cst_5 = arith.constant 1.280000e+02 : f32
    %7 = vector.broadcast %cst_5 : f32 to vector<16x1xf32>
    %8 = arith.divf %6, %7 : vector<16x1xf32>
    %9 = vector.broadcast %8 : vector<16x1xf32> to vector<16x128xf32>
    %10 = arith.subf %0, %9 : vector<16x128xf32>
    %11 = arith.mulf %10, %10 : vector<16x128xf32>
    %cst_6 = arith.constant dense<0.000000e+00> : vector<16xf32>
    %12 = vector.multi_reduction <add>, %11, %cst_6 [1] : vector<16x128xf32> to vector<16xf32>
    %13 = vector.shape_cast %12 : vector<16xf32> to vector<16x1xf32>
    %cst_7 = arith.constant 1.280000e+02 : f32
    %14 = vector.broadcast %cst_7 : f32 to vector<16x1xf32>
    %15 = arith.divf %13, %14 : vector<16x1xf32>
    %cst_8 = arith.constant 9.99999974E-6 : f32
    %16 = vector.broadcast %cst_8 : f32 to vector<16x1xf32>
    %17 = arith.addf %15, %16 : vector<16x1xf32>
    %18 = math.rsqrt %17 : vector<16x1xf32>
    %19 = vector.broadcast %18 : vector<16x1xf32> to vector<16x128xf32>
    %20 = arith.mulf %10, %19 : vector<16x128xf32>
    %21 = vector.shape_cast %2 : vector<128xf32> to vector<1x128xf32>
    %22 = vector.broadcast %21 : vector<1x128xf32> to vector<16x128xf32>
    %23 = arith.mulf %20, %22 : vector<16x128xf32>
    %24 = vector.shape_cast %4 : vector<128xf32> to vector<1x128xf32>
    %25 = vector.broadcast %24 : vector<1x128xf32> to vector<16x128xf32>
    %26 = arith.addf %23, %25 : vector<16x128xf32>
    %27 = arith.truncf %26 : vector<16x128xf32> to vector<16x128xbf16>
    %c0_9 = arith.constant 0 : index
    %c0_10 = arith.constant 0 : index
    %28 = vector.load %arg4[%c0_9, %c0_10] : memref<128x384xbf16, #tpu.memory_space<vmem>>, vector<128x384xbf16>
    %cst_11 = arith.constant dense<0.000000e+00> : vector<16x384xf32>
    %29 = tpu.matmul %27, %28, %cst_11 {dimension_numbers = #tpu.dot_dimension_numbers<[1], [0], [0], [1], [0, 0, 1, 1], [], []>} : vector<16x128xbf16>, vector<128x384xbf16>, vector<16x384xf32> -> vector<16x384xf32>
    %30 = vector.extract_strided_slice %29 {offsets = [0, 0], sizes = [16, 32], strides = [1, 1]} : vector<16x384xf32> to vector<16x32xf32>
    %31 = vector.shape_cast %30 : vector<16x32xf32> to vector<2x8x32xf32>
    %32 = arith.truncf %31 : vector<2x8x32xf32> to vector<2x8x32xbf16>
    %33 = vector.extract_strided_slice %29 {offsets = [0, 128], sizes = [16, 32], strides = [1, 1]} : vector<16x384xf32> to vector<16x32xf32>
    %34 = vector.shape_cast %33 : vector<16x32xf32> to vector<2x8x32xf32>
    %35 = arith.truncf %34 : vector<2x8x32xf32> to vector<2x8x32xbf16>
    %36 = vector.extract_strided_slice %29 {offsets = [0, 256], sizes = [16, 32], strides = [1, 1]} : vector<16x384xf32> to vector<16x32xf32>
    %37 = vector.shape_cast %36 : vector<16x32xf32> to vector<2x8x32xf32>
    %38 = arith.truncf %37 : vector<2x8x32xf32> to vector<2x8x32xbf16>
    %cst_12 = arith.constant dense<0.000000e+00> : vector<2x8x8xf32>
    %39 = tpu.matmul %32, %35, %cst_12 {dimension_numbers = #tpu.dot_dimension_numbers<[2], [2], [1], [1], [0, 0, 0, 1, 1, 1], [0], [0]>} : vector<2x8x32xbf16>, vector<2x8x32xbf16>, vector<2x8x8xf32> -> vector<2x8x8xf32>
    %cst_13 = arith.constant dense<0xFF800000> : vector<2x8xf32>
    %40 = vector.multi_reduction <maximumf>, %39, %cst_13 [2] : vector<2x8x8xf32> to vector<2x8xf32>
    %41 = vector.shape_cast %40 : vector<2x8xf32> to vector<2x8x1xf32>
    %42 = vector.broadcast %41 : vector<2x8x1xf32> to vector<2x8x8xf32>
    %43 = arith.subf %39, %42 : vector<2x8x8xf32>
    %44 = math.exp %43 : vector<2x8x8xf32>
    %45 = arith.truncf %44 : vector<2x8x8xf32> to vector<2x8x8xbf16>
    %cst_14 = arith.constant dense<0.000000e+00> : vector<2x8x32xf32>
    %46 = tpu.matmul %45, %38, %cst_14 {dimension_numbers = #tpu.dot_dimension_numbers<[2], [1], [1], [2], [0, 0, 0, 1, 1, 2], [0], [0]>} : vector<2x8x8xbf16>, vector<2x8x32xbf16>, vector<2x8x32xf32> -> vector<2x8x32xf32>
    %cst_15 = arith.constant dense<0.000000e+00> : vector<2x8xf32>
    %47 = vector.multi_reduction <add>, %44, %cst_15 [2] : vector<2x8x8xf32> to vector<2x8xf32>
    %48 = vector.shape_cast %47 : vector<2x8xf32> to vector<2x8x1xf32>
    %49 = tpu.reciprocal %48 {approx = true} : vector<2x8x1xf32> -> vector<2x8x1xf32>
    %50 = vector.broadcast %49 : vector<2x8x1xf32> to vector<2x8x32xf32>
    %51 = arith.mulf %46, %50 : vector<2x8x32xf32>
    %52 = vector.shape_cast %51 : vector<2x8x32xf32> to vector<16x32xf32>
    %53 = arith.truncf %52 : vector<16x32xf32> to vector<16x32xbf16>
    %c0_16 = arith.constant 0 : index
    %c0_17 = arith.constant 0 : index
    %54 = vector.load %arg14[%c0_16, %c0_17] : memref<16x128xbf16, #tpu.memory_space<vmem>>, vector<16x32xbf16>
    tpu.vector_store %arg14[%c0_16, %c0_17], %53 {strides = array<i32>} : memref<16x128xbf16, #tpu.memory_space<vmem>>, vector<16x32xbf16>,
    %55 = vector.extract_strided_slice %29 {offsets = [0, 32], sizes = [16, 32], strides = [1, 1]} : vector<16x384xf32> to vector<16x32xf32>
    %56 = vector.shape_cast %55 : vector<16x32xf32> to vector<2x8x32xf32>
    %57 = arith.truncf %56 : vector<2x8x32xf32> to vector<2x8x32xbf16>
    %58 = vector.extract_strided_slice %29 {offsets = [0, 160], sizes = [16, 32], strides = [1, 1]} : vector<16x384xf32> to vector<16x32xf32>
    %59 = vector.shape_cast %58 : vector<16x32xf32> to vector<2x8x32xf32>
    %60 = arith.truncf %59 : vector<2x8x32xf32> to vector<2x8x32xbf16>
    %61 = vector.extract_strided_slice %29 {offsets = [0, 288], sizes = [16, 32], strides = [1, 1]} : vector<16x384xf32> to vector<16x32xf32>
    %62 = vector.shape_cast %61 : vector<16x32xf32> to vector<2x8x32xf32>
    %63 = arith.truncf %62 : vector<2x8x32xf32> to vector<2x8x32xbf16>
    %cst_18 = arith.constant dense<0.000000e+00> : vector<2x8x8xf32>
    %64 = tpu.matmul %57, %60, %cst_18 {dimension_numbers = #tpu.dot_dimension_numbers<[2], [2], [1], [1], [0, 0, 0, 1, 1, 1], [0], [0]>} : vector<2x8x32xbf16>, vector<2x8x32xbf16>, vector<2x8x8xf32> -> vector<2x8x8xf32>
    %cst_19 = arith.constant dense<0xFF800000> : vector<2x8xf32>
    %65 = vector.multi_reduction <maximumf>, %64, %cst_19 [2] : vector<2x8x8xf32> to vector<2x8xf32>
    %66 = vector.shape_cast %65 : vector<2x8xf32> to vector<2x8x1xf32>
    %67 = vector.broadcast %66 : vector<2x8x1xf32> to vector<2x8x8xf32>
    %68 = arith.subf %64, %67 : vector<2x8x8xf32>
    %69 = math.exp %68 : vector<2x8x8xf32>
    %70 = arith.truncf %69 : vector<2x8x8xf32> to vector<2x8x8xbf16>
    %cst_20 = arith.constant dense<0.000000e+00> : vector<2x8x32xf32>
    %71 = tpu.matmul %70, %63, %cst_20 {dimension_numbers = #tpu.dot_dimension_numbers<[2], [1], [1], [2], [0, 0, 0, 1, 1, 2], [0], [0]>} : vector<2x8x8xbf16>, vector<2x8x32xbf16>, vector<2x8x32xf32> -> vector<2x8x32xf32>
    %cst_21 = arith.constant dense<0.000000e+00> : vector<2x8xf32>
    %72 = vector.multi_reduction <add>, %69, %cst_21 [2] : vector<2x8x8xf32> to vector<2x8xf32>
    %73 = vector.shape_cast %72 : vector<2x8xf32> to vector<2x8x1xf32>
    %74 = tpu.reciprocal %73 {approx = true} : vector<2x8x1xf32> -> vector<2x8x1xf32>
    %75 = vector.broadcast %74 : vector<2x8x1xf32> to vector<2x8x32xf32>
    %76 = arith.mulf %71, %75 : vector<2x8x32xf32>
    %77 = vector.shape_cast %76 : vector<2x8x32xf32> to vector<16x32xf32>
    %78 = arith.truncf %77 : vector<16x32xf32> to vector<16x32xbf16>
    %c0_22 = arith.constant 0 : index
    %c32 = arith.constant 32 : index
    %79 = vector.load %arg14[%c0_22, %c32] : memref<16x128xbf16, #tpu.memory_space<vmem>>, vector<16x32xbf16>
    tpu.vector_store %arg14[%c0_22, %c32], %78 {strides = array<i32>} : memref<16x128xbf16, #tpu.memory_space<vmem>>, vector<16x32xbf16>,
    %80 = vector.extract_strided_slice %29 {offsets = [0, 64], sizes = [16, 32], strides = [1, 1]} : vector<16x384xf32> to vector<16x32xf32>
    %81 = vector.shape_cast %80 : vector<16x32xf32> to vector<2x8x32xf32>
    %82 = arith.truncf %81 : vector<2x8x32xf32> to vector<2x8x32xbf16>
    %83 = vector.extract_strided_slice %29 {offsets = [0, 192], sizes = [16, 32], strides = [1, 1]} : vector<16x384xf32> to vector<16x32xf32>
    %84 = vector.shape_cast %83 : vector<16x32xf32> to vector<2x8x32xf32>
    %85 = arith.truncf %84 : vector<2x8x32xf32> to vector<2x8x32xbf16>
    %86 = vector.extract_strided_slice %29 {offsets = [0, 320], sizes = [16, 32], strides = [1, 1]} : vector<16x384xf32> to vector<16x32xf32>
    %87 = vector.shape_cast %86 : vector<16x32xf32> to vector<2x8x32xf32>
    %88 = arith.truncf %87 : vector<2x8x32xf32> to vector<2x8x32xbf16>
    %cst_23 = arith.constant dense<0.000000e+00> : vector<2x8x8xf32>
    %89 = tpu.matmul %82, %85, %cst_23 {dimension_numbers = #tpu.dot_dimension_numbers<[2], [2], [1], [1], [0, 0, 0, 1, 1, 1], [0], [0]>} : vector<2x8x32xbf16>, vector<2x8x32xbf16>, vector<2x8x8xf32> -> vector<2x8x8xf32>
    %cst_24 = arith.constant dense<0xFF800000> : vector<2x8xf32>
    %90 = vector.multi_reduction <maximumf>, %89, %cst_24 [2] : vector<2x8x8xf32> to vector<2x8xf32>
    %91 = vector.shape_cast %90 : vector<2x8xf32> to vector<2x8x1xf32>
    %92 = vector.broadcast %91 : vector<2x8x1xf32> to vector<2x8x8xf32>
    %93 = arith.subf %89, %92 : vector<2x8x8xf32>
    %94 = math.exp %93 : vector<2x8x8xf32>
    %95 = arith.truncf %94 : vector<2x8x8xf32> to vector<2x8x8xbf16>
    %cst_25 = arith.constant dense<0.000000e+00> : vector<2x8x32xf32>
    %96 = tpu.matmul %95, %88, %cst_25 {dimension_numbers = #tpu.dot_dimension_numbers<[2], [1], [1], [2], [0, 0, 0, 1, 1, 2], [0], [0]>} : vector<2x8x8xbf16>, vector<2x8x32xbf16>, vector<2x8x32xf32> -> vector<2x8x32xf32>
    %cst_26 = arith.constant dense<0.000000e+00> : vector<2x8xf32>
    %97 = vector.multi_reduction <add>, %94, %cst_26 [2] : vector<2x8x8xf32> to vector<2x8xf32>
    %98 = vector.shape_cast %97 : vector<2x8xf32> to vector<2x8x1xf32>
    %99 = tpu.reciprocal %98 {approx = true} : vector<2x8x1xf32> -> vector<2x8x1xf32>
    %100 = vector.broadcast %99 : vector<2x8x1xf32> to vector<2x8x32xf32>
    %101 = arith.mulf %96, %100 : vector<2x8x32xf32>
    %102 = vector.shape_cast %101 : vector<2x8x32xf32> to vector<16x32xf32>
    %103 = arith.truncf %102 : vector<16x32xf32> to vector<16x32xbf16>
    %c0_27 = arith.constant 0 : index
    %c64 = arith.constant 64 : index
    %104 = vector.load %arg14[%c0_27, %c64] : memref<16x128xbf16, #tpu.memory_space<vmem>>, vector<16x32xbf16>
    tpu.vector_store %arg14[%c0_27, %c64], %103 {strides = array<i32>} : memref<16x128xbf16, #tpu.memory_space<vmem>>, vector<16x32xbf16>,
    %105 = vector.extract_strided_slice %29 {offsets = [0, 96], sizes = [16, 32], strides = [1, 1]} : vector<16x384xf32> to vector<16x32xf32>
    %106 = vector.shape_cast %105 : vector<16x32xf32> to vector<2x8x32xf32>
    %107 = arith.truncf %106 : vector<2x8x32xf32> to vector<2x8x32xbf16>
    %108 = vector.extract_strided_slice %29 {offsets = [0, 224], sizes = [16, 32], strides = [1, 1]} : vector<16x384xf32> to vector<16x32xf32>
    %109 = vector.shape_cast %108 : vector<16x32xf32> to vector<2x8x32xf32>
    %110 = arith.truncf %109 : vector<2x8x32xf32> to vector<2x8x32xbf16>
    %111 = vector.extract_strided_slice %29 {offsets = [0, 352], sizes = [16, 32], strides = [1, 1]} : vector<16x384xf32> to vector<16x32xf32>
    %112 = vector.shape_cast %111 : vector<16x32xf32> to vector<2x8x32xf32>
    %113 = arith.truncf %112 : vector<2x8x32xf32> to vector<2x8x32xbf16>
    %cst_28 = arith.constant dense<0.000000e+00> : vector<2x8x8xf32>
    %114 = tpu.matmul %107, %110, %cst_28 {dimension_numbers = #tpu.dot_dimension_numbers<[2], [2], [1], [1], [0, 0, 0, 1, 1, 1], [0], [0]>} : vector<2x8x32xbf16>, vector<2x8x32xbf16>, vector<2x8x8xf32> -> vector<2x8x8xf32>
    %cst_29 = arith.constant dense<0xFF800000> : vector<2x8xf32>
    %115 = vector.multi_reduction <maximumf>, %114, %cst_29 [2] : vector<2x8x8xf32> to vector<2x8xf32>
    %116 = vector.shape_cast %115 : vector<2x8xf32> to vector<2x8x1xf32>
    %117 = vector.broadcast %116 : vector<2x8x1xf32> to vector<2x8x8xf32>
    %118 = arith.subf %114, %117 : vector<2x8x8xf32>
    %119 = math.exp %118 : vector<2x8x8xf32>
    %120 = arith.truncf %119 : vector<2x8x8xf32> to vector<2x8x8xbf16>
    %cst_30 = arith.constant dense<0.000000e+00> : vector<2x8x32xf32>
    %121 = tpu.matmul %120, %113, %cst_30 {dimension_numbers = #tpu.dot_dimension_numbers<[2], [1], [1], [2], [0, 0, 0, 1, 1, 2], [0], [0]>} : vector<2x8x8xbf16>, vector<2x8x32xbf16>, vector<2x8x32xf32> -> vector<2x8x32xf32>
    %cst_31 = arith.constant dense<0.000000e+00> : vector<2x8xf32>
    %122 = vector.multi_reduction <add>, %119, %cst_31 [2] : vector<2x8x8xf32> to vector<2x8xf32>
    %123 = vector.shape_cast %122 : vector<2x8xf32> to vector<2x8x1xf32>
    %124 = tpu.reciprocal %123 {approx = true} : vector<2x8x1xf32> -> vector<2x8x1xf32>
    %125 = vector.broadcast %124 : vector<2x8x1xf32> to vector<2x8x32xf32>
    %126 = arith.mulf %121, %125 : vector<2x8x32xf32>
    %127 = vector.shape_cast %126 : vector<2x8x32xf32> to vector<16x32xf32>
    %128 = arith.truncf %127 : vector<16x32xf32> to vector<16x32xbf16>
    %c0_32 = arith.constant 0 : index
    %c96 = arith.constant 96 : index
    %129 = vector.load %arg14[%c0_32, %c96] : memref<16x128xbf16, #tpu.memory_space<vmem>>, vector<16x32xbf16>
    tpu.vector_store %arg14[%c0_32, %c96], %128 {strides = array<i32>} : memref<16x128xbf16, #tpu.memory_space<vmem>>, vector<16x32xbf16>,
    %c0_33 = arith.constant 0 : index
    %c0_34 = arith.constant 0 : index
    %130 = vector.load %arg14[%c0_33, %c0_34] : memref<16x128xbf16, #tpu.memory_space<vmem>>, vector<16x128xbf16>
    %c0_35 = arith.constant 0 : index
    %c0_36 = arith.constant 0 : index
    %131 = vector.load %arg5[%c0_35, %c0_36] : memref<128x128xbf16, #tpu.memory_space<vmem>>, vector<128x128xbf16>
    %cst_37 = arith.constant dense<0.000000e+00> : vector<16x128xf32>
    %132 = tpu.matmul %130, %131, %cst_37 {dimension_numbers = #tpu.dot_dimension_numbers<[1], [0], [0], [1], [0, 0, 1, 1], [], []>} : vector<16x128xbf16>, vector<128x128xbf16>, vector<16x128xf32> -> vector<16x128xf32>
    %133 = arith.addf %0, %132 : vector<16x128xf32>
    %c0_38 = arith.constant 0 : index
    %c0_39 = arith.constant 0 : index
    %134 = vector.load %arg6[%c0_38, %c0_39] : memref<1x128xf32, #tpu.memory_space<vmem>>, vector<1x128xf32>
    %135 = vector.shape_cast %134 : vector<1x128xf32> to vector<128xf32>
    %136 = vector.shape_cast %135 : vector<128xf32> to vector<1x128xf32>
    %137 = vector.broadcast %136 : vector<1x128xf32> to vector<16x128xf32>
    %138 = arith.addf %133, %137 : vector<16x128xf32>
    %c0_40 = arith.constant 0 : index
    %c0_41 = arith.constant 0 : index
    %139 = vector.load %arg7[%c0_40, %c0_41] : memref<1x128xf32, #tpu.memory_space<vmem>>, vector<1x128xf32>
    %140 = vector.shape_cast %139 : vector<1x128xf32> to vector<128xf32>
    %c0_42 = arith.constant 0 : index
    %c0_43 = arith.constant 0 : index
    %141 = vector.load %arg8[%c0_42, %c0_43] : memref<1x128xf32, #tpu.memory_space<vmem>>, vector<1x128xf32>
    %142 = vector.shape_cast %141 : vector<1x128xf32> to vector<128xf32>
    %cst_44 = arith.constant dense<0.000000e+00> : vector<16xf32>
    %143 = vector.multi_reduction <add>, %138, %cst_44 [1] : vector<16x128xf32> to vector<16xf32>
    %144 = vector.shape_cast %143 : vector<16xf32> to vector<16x1xf32>
    %cst_45 = arith.constant 1.280000e+02 : f32
    %145 = vector.broadcast %cst_45 : f32 to vector<16x1xf32>
    %146 = arith.divf %144, %145 : vector<16x1xf32>
    %147 = vector.broadcast %146 : vector<16x1xf32> to vector<16x128xf32>
    %148 = arith.subf %138, %147 : vector<16x128xf32>
    %149 = arith.mulf %148, %148 : vector<16x128xf32>
    %cst_46 = arith.constant dense<0.000000e+00> : vector<16xf32>
    %150 = vector.multi_reduction <add>, %149, %cst_46 [1] : vector<16x128xf32> to vector<16xf32>
    %151 = vector.shape_cast %150 : vector<16xf32> to vector<16x1xf32>
    %cst_47 = arith.constant 1.280000e+02 : f32
    %152 = vector.broadcast %cst_47 : f32 to vector<16x1xf32>
    %153 = arith.divf %151, %152 : vector<16x1xf32>
    %cst_48 = arith.constant 9.99999974E-6 : f32
    %154 = vector.broadcast %cst_48 : f32 to vector<16x1xf32>
    %155 = arith.addf %153, %154 : vector<16x1xf32>
    %156 = math.rsqrt %155 : vector<16x1xf32>
    %157 = vector.broadcast %156 : vector<16x1xf32> to vector<16x128xf32>
    %158 = arith.mulf %148, %157 : vector<16x128xf32>
    %159 = vector.shape_cast %140 : vector<128xf32> to vector<1x128xf32>
    %160 = vector.broadcast %159 : vector<1x128xf32> to vector<16x128xf32>
    %161 = arith.mulf %158, %160 : vector<16x128xf32>
    %162 = vector.shape_cast %142 : vector<128xf32> to vector<1x128xf32>
    %163 = vector.broadcast %162 : vector<1x128xf32> to vector<16x128xf32>
    %164 = arith.addf %161, %163 : vector<16x128xf32>
    %165 = arith.truncf %164 : vector<16x128xf32> to vector<16x128xbf16>
    %c0_49 = arith.constant 0 : index
    %c0_50 = arith.constant 0 : index
    %166 = vector.load %arg9[%c0_49, %c0_50] : memref<128x512xbf16, #tpu.memory_space<vmem>>, vector<128x512xbf16>
    %cst_51 = arith.constant dense<0.000000e+00> : vector<16x512xf32>
    %167 = tpu.matmul %165, %166, %cst_51 {dimension_numbers = #tpu.dot_dimension_numbers<[1], [0], [0], [1], [0, 0, 1, 1], [], []>} : vector<16x128xbf16>, vector<128x512xbf16>, vector<16x512xf32> -> vector<16x512xf32>
    %c0_52 = arith.constant 0 : index
    %c0_53 = arith.constant 0 : index
    %168 = vector.load %arg10[%c0_52, %c0_53] : memref<1x512xf32, #tpu.memory_space<vmem>>, vector<1x512xf32>
    %169 = vector.shape_cast %168 : vector<1x512xf32> to vector<512xf32>
    %170 = vector.shape_cast %169 : vector<512xf32> to vector<1x512xf32>
    %171 = vector.broadcast %170 : vector<1x512xf32> to vector<16x512xf32>
    %172 = arith.addf %167, %171 : vector<16x512xf32>
    %cst_54 = arith.constant 5.000000e-01 : f32
    %173 = vector.broadcast %cst_54 : f32 to vector<16x512xf32>
    %174 = arith.mulf %173, %172 : vector<16x512xf32>
    %cst_55 = arith.constant 0.707106769 : f32
    %175 = vector.broadcast %cst_55 : f32 to vector<16x512xf32>
    %176 = arith.mulf %172, %175 : vector<16x512xf32>
    %177 = math.erf %176 : vector<16x512xf32>
    %cst_56 = arith.constant 1.000000e+00 : f32
    %178 = vector.broadcast %cst_56 : f32 to vector<16x512xf32>
    %179 = arith.addf %178, %177 : vector<16x512xf32>
    %180 = arith.mulf %174, %179 : vector<16x512xf32>
    %181 = arith.truncf %180 : vector<16x512xf32> to vector<16x512xbf16>
    %c0_57 = arith.constant 0 : index
    %c0_58 = arith.constant 0 : index
    %182 = vector.load %arg11[%c0_57, %c0_58] : memref<512x128xbf16, #tpu.memory_space<vmem>>, vector<512x128xbf16>
    %cst_59 = arith.constant dense<0.000000e+00> : vector<16x128xf32>
    %183 = tpu.matmul %181, %182, %cst_59 {dimension_numbers = #tpu.dot_dimension_numbers<[1], [0], [0], [1], [0, 0, 1, 1], [], []>} : vector<16x512xbf16>, vector<512x128xbf16>, vector<16x128xf32> -> vector<16x128xf32>
    %c0_60 = arith.constant 0 : index
    %c0_61 = arith.constant 0 : index
    %184 = vector.load %arg12[%c0_60, %c0_61] : memref<1x128xf32, #tpu.memory_space<vmem>>, vector<1x128xf32>
    %185 = vector.shape_cast %184 : vector<1x128xf32> to vector<128xf32>
    %186 = vector.shape_cast %185 : vector<128xf32> to vector<1x128xf32>
    %187 = vector.broadcast %186 : vector<1x128xf32> to vector<16x128xf32>
    %188 = arith.addf %183, %187 : vector<16x128xf32>
    %189 = arith.addf %138, %188 : vector<16x128xf32>
    %c0_62 = arith.constant 0 : index
    %c0_63 = arith.constant 0 : index
    %190 = vector.load %arg13[%c0_62, %c0_63] : memref<16x128xf32, #tpu.memory_space<vmem>>, vector<16x128xf32>
    tpu.vector_store %arg13[%c0_62, %c0_63], %189 {strides = array<i32>} : memref<16x128xf32, #tpu.memory_space<vmem>>, vector<16x128xf32>,
    return
  }
  func.func @transform_0(%arg0: i32) -> (i32, i32) {
    %c0_i32 = arith.constant 0 : i32
    %c0_i32_0 = arith.constant 0 : i32
    return %arg0, %c0_i32 : i32, i32
  }
  func.func @transform_1(%arg0: i32) -> (i32, i32) {
    %c0_i32 = arith.constant 0 : i32
    %c0_i32_0 = arith.constant 0 : i32
    %c0_i32_1 = arith.constant 0 : i32
    return %c0_i32, %c0_i32_0 : i32, i32
  }
  func.func @transform_2(%arg0: i32) -> (i32, i32) {
    %c0_i32 = arith.constant 0 : i32
    %c0_i32_0 = arith.constant 0 : i32
    %c0_i32_1 = arith.constant 0 : i32
    return %c0_i32, %c0_i32_0 : i32, i32
  }
  func.func @transform_3(%arg0: i32) -> (i32, i32) {
    %c0_i32 = arith.constant 0 : i32
    %c0_i32_0 = arith.constant 0 : i32
    %c0_i32_1 = arith.constant 0 : i32
    return %c0_i32, %c0_i32_0 : i32, i32
  }
  func.func @transform_4(%arg0: i32) -> (i32, i32) {
    %c0_i32 = arith.constant 0 : i32
    %c0_i32_0 = arith.constant 0 : i32
    %c0_i32_1 = arith.constant 0 : i32
    return %c0_i32, %c0_i32_0 : i32, i32
  }
  func.func @transform_5(%arg0: i32) -> (i32, i32) {
    %c0_i32 = arith.constant 0 : i32
    %c0_i32_0 = arith.constant 0 : i32
    %c0_i32_1 = arith.constant 0 : i32
    return %c0_i32, %c0_i32_0 : i32, i32
  }
  func.func @transform_6(%arg0: i32) -> (i32, i32) {
    %c0_i32 = arith.constant 0 : i32
    %c0_i32_0 = arith.constant 0 : i32
    %c0_i32_1 = arith.constant 0 : i32
    return %c0_i32, %c0_i32_0 : i32, i32
  }
  func.func @transform_7(%arg0: i32) -> (i32, i32) {
    %c0_i32 = arith.constant 0 : i32
    %c0_i32_0 = arith.constant 0 : i32
    %c0_i32_1 = arith.constant 0 : i32
    return %c0_i32, %c0_i32_0 : i32, i32
  }
  func.func @transform_8(%arg0: i32) -> (i32, i32) {
    %c0_i32 = arith.constant 0 : i32
    %c0_i32_0 = arith.constant 0 : i32
    %c0_i32_1 = arith.constant 0 : i32
    return %c0_i32, %c0_i32_0 : i32, i32
  }
  func.func @transform_9(%arg0: i32) -> (i32, i32) {
    %c0_i32 = arith.constant 0 : i32
    %c0_i32_0 = arith.constant 0 : i32
    %c0_i32_1 = arith.constant 0 : i32
    return %c0_i32, %c0_i32_0 : i32, i32
  }
  func.func @transform_10(%arg0: i32) -> (i32, i32) {
    %c0_i32 = arith.constant 0 : i32
    %c0_i32_0 = arith.constant 0 : i32
    %c0_i32_1 = arith.constant 0 : i32
    return %c0_i32, %c0_i32_0 : i32, i32
  }
  func.func @transform_11(%arg0: i32) -> (i32, i32) {
    %c0_i32 = arith.constant 0 : i32
    %c0_i32_0 = arith.constant 0 : i32
    %c0_i32_1 = arith.constant 0 : i32
    return %c0_i32, %c0_i32_0 : i32, i32
  }
  func.func @transform_12(%arg0: i32) -> (i32, i32) {
    %c0_i32 = arith.constant 0 : i32
    %c0_i32_0 = arith.constant 0 : i32
    return %arg0, %c0_i32 : i32, i32
  }
}

module attributes {stable_mosaic.version = 11 : i64} {
  func.func @block_kernel(%arg0: i32, %arg1: memref<16x128xf32, #tpu.memory_space<vmem>>, %arg2: memref<1x128xf32, #tpu.memory_space<vmem>>, %arg3: memref<1x128xf32, #tpu.memory_space<vmem>>, %arg4: memref<128x384xbf16, #tpu.memory_space<vmem>>, %arg5: memref<128x128xbf16, #tpu.memory_space<vmem>>, %arg6: memref<1x128xf32, #tpu.memory_space<vmem>>, %arg7: memref<1x128xf32, #tpu.memory_space<vmem>>, %arg8: memref<1x128xf32, #tpu.memory_space<vmem>>, %arg9: memref<128x512xbf16, #tpu.memory_space<vmem>>, %arg10: memref<1x512xf32, #tpu.memory_space<vmem>>, %arg11: memref<512x128xbf16, #tpu.memory_space<vmem>>, %arg12: memref<1x128xf32, #tpu.memory_space<vmem>>, %arg13: memref<16x128xf32, #tpu.memory_space<vmem>>, %arg14: memref<16x128xbf16, #tpu.memory_space<vmem>>) attributes {dimension_semantics = [#tpu.dimension_semantics<parallel>], iteration_bounds = array<i64: 1>, scalar_prefetch = 0 : i64, scratch_operands = 1 : i64, tpu.core_type = #tpu.core_type<tc>, window_params = [{transform_indices = @transform_0, window_bounds = array<i64: 16, 128>}, {pipeline_mode = #tpu.pipeline_mode<synchronous>, transform_indices = @transform_1, window_bounds = array<i64: 1, 128>}, {pipeline_mode = #tpu.pipeline_mode<synchronous>, transform_indices = @transform_2, window_bounds = array<i64: 1, 128>}, {pipeline_mode = #tpu.pipeline_mode<synchronous>, transform_indices = @transform_3, window_bounds = array<i64: 128, 384>}, {pipeline_mode = #tpu.pipeline_mode<synchronous>, transform_indices = @transform_4, window_bounds = array<i64: 128, 128>}, {pipeline_mode = #tpu.pipeline_mode<synchronous>, transform_indices = @transform_5, window_bounds = array<i64: 1, 128>}, {pipeline_mode = #tpu.pipeline_mode<synchronous>, transform_indices = @transform_6, window_bounds = array<i64: 1, 128>}, {pipeline_mode = #tpu.pipeline_mode<synchronous>, transform_indices = @transform_7, window_bounds = array<i64: 1, 128>}, {pipeline_mode = #tpu.pipeline_mode<synchronous>, transform_indices = @transform_8, window_bounds = array<i64: 128, 512>}, {pipeline_mode = #tpu.pipeline_mode<synchronous>, transform_indices = @transform_9, window_bounds = array<i64: 1, 512>}, {pipeline_mode = #tpu.pipeline_mode<synchronous>, transform_indices = @transform_10, window_bounds = array<i64: 512, 128>}, {pipeline_mode = #tpu.pipeline_mode<synchronous>, transform_indices = @transform_11, window_bounds = array<i64: 1, 128>}, {transform_indices = @transform_12, window_bounds = array<i64: 16, 128>}]} {
    %c0 = arith.constant 0 : index
    %c0_0 = arith.constant 0 : index
    %0 = vector.load %arg1[%c0, %c0_0] : memref<16x128xf32, #tpu.memory_space<vmem>>, vector<16x128xf32>
    %c0_1 = arith.constant 0 : index
    %c0_2 = arith.constant 0 : index
    %1 = vector.load %arg2[%c0_1, %c0_2] : memref<1x128xf32, #tpu.memory_space<vmem>>, vector<1x128xf32>
    %2 = vector.shape_cast %1 : vector<1x128xf32> to vector<128xf32>
    %c0_3 = arith.constant 0 : index
    %c0_4 = arith.constant 0 : index
    %3 = vector.load %arg3[%c0_3, %c0_4] : memref<1x128xf32, #tpu.memory_space<vmem>>, vector<1x128xf32>
    %4 = vector.shape_cast %3 : vector<1x128xf32> to vector<128xf32>
    %cst = arith.constant dense<0.000000e+00> : vector<16xf32>
    %5 = vector.multi_reduction <add>, %0, %cst [1] : vector<16x128xf32> to vector<16xf32>
    %6 = vector.shape_cast %5 : vector<16xf32> to vector<16x1xf32>
    %cst_5 = arith.constant 1.280000e+02 : f32
    %7 = vector.broadcast %cst_5 : f32 to vector<16x1xf32>
    %8 = arith.divf %6, %7 : vector<16x1xf32>
    %9 = vector.broadcast %8 : vector<16x1xf32> to vector<16x128xf32>
    %10 = arith.subf %0, %9 : vector<16x128xf32>
    %11 = arith.mulf %10, %10 : vector<16x128xf32>
    %cst_6 = arith.constant dense<0.000000e+00> : vector<16xf32>
    %12 = vector.multi_reduction <add>, %11, %cst_6 [1] : vector<16x128xf32> to vector<16xf32>
    %13 = vector.shape_cast %12 : vector<16xf32> to vector<16x1xf32>
    %cst_7 = arith.constant 1.280000e+02 : f32
    %14 = vector.broadcast %cst_7 : f32 to vector<16x1xf32>
    %15 = arith.divf %13, %14 : vector<16x1xf32>
    %cst_8 = arith.constant 9.99999974E-6 : f32
    %16 = vector.broadcast %cst_8 : f32 to vector<16x1xf32>
    %17 = arith.addf %15, %16 : vector<16x1xf32>
    %18 = math.rsqrt %17 : vector<16x1xf32>
    %19 = vector.broadcast %18 : vector<16x1xf32> to vector<16x128xf32>
    %20 = arith.mulf %10, %19 : vector<16x128xf32>
    %21 = vector.shape_cast %2 : vector<128xf32> to vector<1x128xf32>
    %22 = vector.broadcast %21 : vector<1x128xf32> to vector<16x128xf32>
    %23 = arith.mulf %20, %22 : vector<16x128xf32>
    %24 = vector.shape_cast %4 : vector<128xf32> to vector<1x128xf32>
    %25 = vector.broadcast %24 : vector<1x128xf32> to vector<16x128xf32>
    %26 = arith.addf %23, %25 : vector<16x128xf32>
    %27 = arith.truncf %26 : vector<16x128xf32> to vector<16x128xbf16>
    %c0_9 = arith.constant 0 : index
    %c0_10 = arith.constant 0 : index
    %28 = vector.load %arg4[%c0_9, %c0_10] : memref<128x384xbf16, #tpu.memory_space<vmem>>, vector<128x384xbf16>
    %cst_11 = arith.constant dense<0.000000e+00> : vector<16x384xf32>
    %29 = tpu.matmul %27, %28, %cst_11 {dimension_numbers = #tpu.dot_dimension_numbers<[1], [0], [0], [1], [0, 0, 1, 1], [], []>} : vector<16x128xbf16>, vector<128x384xbf16>, vector<16x384xf32> -> vector<16x384xf32>
    %30 = vector.extract_strided_slice %29 {offsets = [0, 0], sizes = [16, 32], strides = [1, 1]} : vector<16x384xf32> to vector<16x32xf32>
    %31 = vector.shape_cast %30 : vector<16x32xf32> to vector<2x8x32xf32>
    %32 = arith.truncf %31 : vector<2x8x32xf32> to vector<2x8x32xbf16>
    %33 = vector.extract_strided_slice %29 {offsets = [0, 128], sizes = [16, 32], strides = [1, 1]} : vector<16x384xf32> to vector<16x32xf32>
    %34 = vector.shape_cast %33 : vector<16x32xf32> to vector<2x8x32xf32>
    %35 = arith.truncf %34 : vector<2x8x32xf32> to vector<2x8x32xbf16>
    %36 = vector.extract_strided_slice %29 {offsets = [0, 256], sizes = [16, 32], strides = [1, 1]} : vector<16x384xf32> to vector<16x32xf32>
    %37 = vector.shape_cast %36 : vector<16x32xf32> to vector<2x8x32xf32>
    %38 = arith.truncf %37 : vector<2x8x32xf32> to vector<2x8x32xbf16>
    %cst_12 = arith.constant dense<0.000000e+00> : vector<2x8x8xf32>
    %39 = tpu.matmul %32, %35, %cst_12 {dimension_numbers = #tpu.dot_dimension_numbers<[2], [2], [1], [1], [0, 0, 0, 1, 1, 1], [0], [0]>} : vector<2x8x32xbf16>, vector<2x8x32xbf16>, vector<2x8x8xf32> -> vector<2x8x8xf32>
    %cst_13 = arith.constant dense<0xFF800000> : vector<2x8xf32>
    %40 = vector.multi_reduction <maximumf>, %39, %cst_13 [2] : vector<2x8x8xf32> to vector<2x8xf32>
    %41 = vector.shape_cast %40 : vector<2x8xf32> to vector<2x8x1xf32>
    %42 = vector.broadcast %41 : vector<2x8x1xf32> to vector<2x8x8xf32>
    %43 = arith.subf %39, %42 : vector<2x8x8xf32>
    %44 = math.exp %43 : vector<2x8x8xf32>
    %45 = arith.truncf %44 : vector<2x8x8xf32> to vector<2x8x8xbf16>
    %cst_14 = arith.constant dense<0.000000e+00> : vector<2x8x32xf32>
    %46 = tpu.matmul %45, %38, %cst_14 {dimension_numbers = #tpu.dot_dimension_numbers<[2], [1], [1], [2], [0, 0, 0, 1, 1, 2], [0], [0]>} : vector<2x8x8xbf16>, vector<2x8x32xbf16>, vector<2x8x32xf32> -> vector<2x8x32xf32>
    %cst_15 = arith.constant dense<0.000000e+00> : vector<2x8xf32>
    %47 = vector.multi_reduction <add>, %44, %cst_15 [2] : vector<2x8x8xf32> to vector<2x8xf32>
    %48 = vector.shape_cast %47 : vector<2x8xf32> to vector<2x8x1xf32>
    %49 = tpu.reciprocal %48 {approx = true} : vector<2x8x1xf32> -> vector<2x8x1xf32>
    %50 = vector.broadcast %49 : vector<2x8x1xf32> to vector<2x8x32xf32>
    %51 = arith.mulf %46, %50 : vector<2x8x32xf32>
    %52 = vector.shape_cast %51 : vector<2x8x32xf32> to vector<16x32xf32>
    %53 = arith.truncf %52 : vector<16x32xf32> to vector<16x32xbf16>
    %c0_16 = arith.constant 0 : index
    %c0_17 = arith.constant 0 : index
    %54 = vector.load %arg14[%c0_16, %c0_17] : memref<16x128xbf16, #tpu.memory_space<vmem>>, vector<16x32xbf16>
    tpu.vector_store %arg14[%c0_16, %c0_17], %53 {strides = array<i32>} : memref<16x128xbf16, #tpu.memory_space<vmem>>, vector<16x32xbf16>,
    %55 = vector.extract_strided_slice %29 {offsets = [0, 32], sizes = [16, 32], strides = [1, 1]} : vector<16x384xf32> to vector<16x32xf32>
    %56 = vector.shape_cast %55 : vector<16x32xf32> to vector<2x8x32xf32>
    %57 = arith.truncf %56 : vector<2x8x32xf32> to vector<2x8x32xbf16>
    %58 = vector.extract_strided_slice %29 {offsets = [0, 160], sizes = [16, 32], strides = [1, 1]} : vector<16x384xf32> to vector<16x32xf32>
    %59 = vector.shape_cast %58 : vector<16x32xf32> to vector<2x8x32xf32>
    %60 = arith.truncf %59 : vector<2x8x32xf32> to vector<2x8x32xbf16>
    %61 = vector.extract_strided_slice %29 {offsets = [0, 288], sizes = [16, 32], strides = [1, 1]} : vector<16x384xf32> to vector<16x32xf32>
    %62 = vector.shape_cast %61 : vector<16x32xf32> to vector<2x8x32xf32>
    %63 = arith.truncf %62 : vector<2x8x32xf32> to vector<2x8x32xbf16>
    %cst_18 = arith.constant dense<0.000000e+00> : vector<2x8x8xf32>
    %64 = tpu.matmul %57, %60, %cst_18 {dimension_numbers = #tpu.dot_dimension_numbers<[2], [2], [1], [1], [0, 0, 0, 1, 1, 1], [0], [0]>} : vector<2x8x32xbf16>, vector<2x8x32xbf16>, vector<2x8x8xf32> -> vector<2x8x8xf32>
    %cst_19 = arith.constant dense<0xFF800000> : vector<2x8xf32>
    %65 = vector.multi_reduction <maximumf>, %64, %cst_19 [2] : vector<2x8x8xf32> to vector<2x8xf32>
    %66 = vector.shape_cast %65 : vector<2x8xf32> to vector<2x8x1xf32>
    %67 = vector.broadcast %66 : vector<2x8x1xf32> to vector<2x8x8xf32>
    %68 = arith.subf %64, %67 : vector<2x8x8xf32>
    %69 = math.exp %68 : vector<2x8x8xf32>
    %70 = arith.truncf %69 : vector<2x8x8xf32> to vector<2x8x8xbf16>
    %cst_20 = arith.constant dense<0.000000e+00> : vector<2x8x32xf32>
    %71 = tpu.matmul %70, %63, %cst_20 {dimension_numbers = #tpu.dot_dimension_numbers<[2], [1], [1], [2], [0, 0, 0, 1, 1, 2], [0], [0]>} : vector<2x8x8xbf16>, vector<2x8x32xbf16>, vector<2x8x32xf32> -> vector<2x8x32xf32>
    %cst_21 = arith.constant dense<0.000000e+00> : vector<2x8xf32>
    %72 = vector.multi_reduction <add>, %69, %cst_21 [2] : vector<2x8x8xf32> to vector<2x8xf32>
    %73 = vector.shape_cast %72 : vector<2x8xf32> to vector<2x8x1xf32>
    %74 = tpu.reciprocal %73 {approx = true} : vector<2x8x1xf32> -> vector<2x8x1xf32>
    %75 = vector.broadcast %74 : vector<2x8x1xf32> to vector<2x8x32xf32>
    %76 = arith.mulf %71, %75 : vector<2x8x32xf32>
    %77 = vector.shape_cast %76 : vector<2x8x32xf32> to vector<16x32xf32>
    %78 = arith.truncf %77 : vector<16x32xf32> to vector<16x32xbf16>
    %c0_22 = arith.constant 0 : index
    %c32 = arith.constant 32 : index
    %79 = vector.load %arg14[%c0_22, %c32] : memref<16x128xbf16, #tpu.memory_space<vmem>>, vector<16x32xbf16>
    tpu.vector_store %arg14[%c0_22, %c32], %78 {strides = array<i32>} : memref<16x128xbf16, #tpu.memory_space<vmem>>, vector<16x32xbf16>,
    %80 = vector.extract_strided_slice %29 {offsets = [0, 64], sizes = [16, 32], strides = [1, 1]} : vector<16x384xf32> to vector<16x32xf32>
    %81 = vector.shape_cast %80 : vector<16x32xf32> to vector<2x8x32xf32>
    %82 = arith.truncf %81 : vector<2x8x32xf32> to vector<2x8x32xbf16>
    %83 = vector.extract_strided_slice %29 {offsets = [0, 192], sizes = [16, 32], strides = [1, 1]} : vector<16x384xf32> to vector<16x32xf32>
    %84 = vector.shape_cast %83 : vector<16x32xf32> to vector<2x8x32xf32>
    %85 = arith.truncf %84 : vector<2x8x32xf32> to vector<2x8x32xbf16>
    %86 = vector.extract_strided_slice %29 {offsets = [0, 320], sizes = [16, 32], strides = [1, 1]} : vector<16x384xf32> to vector<16x32xf32>
    %87 = vector.shape_cast %86 : vector<16x32xf32> to vector<2x8x32xf32>
    %88 = arith.truncf %87 : vector<2x8x32xf32> to vector<2x8x32xbf16>
    %cst_23 = arith.constant dense<0.000000e+00> : vector<2x8x8xf32>
    %89 = tpu.matmul %82, %85, %cst_23 {dimension_numbers = #tpu.dot_dimension_numbers<[2], [2], [1], [1], [0, 0, 0, 1, 1, 1], [0], [0]>} : vector<2x8x32xbf16>, vector<2x8x32xbf16>, vector<2x8x8xf32> -> vector<2x8x8xf32>
    %cst_24 = arith.constant dense<0xFF800000> : vector<2x8xf32>
    %90 = vector.multi_reduction <maximumf>, %89, %cst_24 [2] : vector<2x8x8xf32> to vector<2x8xf32>
    %91 = vector.shape_cast %90 : vector<2x8xf32> to vector<2x8x1xf32>
    %92 = vector.broadcast %91 : vector<2x8x1xf32> to vector<2x8x8xf32>
    %93 = arith.subf %89, %92 : vector<2x8x8xf32>
    %94 = math.exp %93 : vector<2x8x8xf32>
    %95 = arith.truncf %94 : vector<2x8x8xf32> to vector<2x8x8xbf16>
    %cst_25 = arith.constant dense<0.000000e+00> : vector<2x8x32xf32>
    %96 = tpu.matmul %95, %88, %cst_25 {dimension_numbers = #tpu.dot_dimension_numbers<[2], [1], [1], [2], [0, 0, 0, 1, 1, 2], [0], [0]>} : vector<2x8x8xbf16>, vector<2x8x32xbf16>, vector<2x8x32xf32> -> vector<2x8x32xf32>
    %cst_26 = arith.constant dense<0.000000e+00> : vector<2x8xf32>
    %97 = vector.multi_reduction <add>, %94, %cst_26 [2] : vector<2x8x8xf32> to vector<2x8xf32>
    %98 = vector.shape_cast %97 : vector<2x8xf32> to vector<2x8x1xf32>
    %99 = tpu.reciprocal %98 {approx = true} : vector<2x8x1xf32> -> vector<2x8x1xf32>
    %100 = vector.broadcast %99 : vector<2x8x1xf32> to vector<2x8x32xf32>
    %101 = arith.mulf %96, %100 : vector<2x8x32xf32>
    %102 = vector.shape_cast %101 : vector<2x8x32xf32> to vector<16x32xf32>
    %103 = arith.truncf %102 : vector<16x32xf32> to vector<16x32xbf16>
    %c0_27 = arith.constant 0 : index
    %c64 = arith.constant 64 : index
    %104 = vector.load %arg14[%c0_27, %c64] : memref<16x128xbf16, #tpu.memory_space<vmem>>, vector<16x32xbf16>
    tpu.vector_store %arg14[%c0_27, %c64], %103 {strides = array<i32>} : memref<16x128xbf16, #tpu.memory_space<vmem>>, vector<16x32xbf16>,
    %105 = vector.extract_strided_slice %29 {offsets = [0, 96], sizes = [16, 32], strides = [1, 1]} : vector<16x384xf32> to vector<16x32xf32>
    %106 = vector.shape_cast %105 : vector<16x32xf32> to vector<2x8x32xf32>
    %107 = arith.truncf %106 : vector<2x8x32xf32> to vector<2x8x32xbf16>
    %108 = vector.extract_strided_slice %29 {offsets = [0, 224], sizes = [16, 32], strides = [1, 1]} : vector<16x384xf32> to vector<16x32xf32>
    %109 = vector.shape_cast %108 : vector<16x32xf32> to vector<2x8x32xf32>
    %110 = arith.truncf %109 : vector<2x8x32xf32> to vector<2x8x32xbf16>
    %111 = vector.extract_strided_slice %29 {offsets = [0, 352], sizes = [16, 32], strides = [1, 1]} : vector<16x384xf32> to vector<16x32xf32>
    %112 = vector.shape_cast %111 : vector<16x32xf32> to vector<2x8x32xf32>
    %113 = arith.truncf %112 : vector<2x8x32xf32> to vector<2x8x32xbf16>
    %cst_28 = arith.constant dense<0.000000e+00> : vector<2x8x8xf32>
    %114 = tpu.matmul %107, %110, %cst_28 {dimension_numbers = #tpu.dot_dimension_numbers<[2], [2], [1], [1], [0, 0, 0, 1, 1, 1], [0], [0]>} : vector<2x8x32xbf16>, vector<2x8x32xbf16>, vector<2x8x8xf32> -> vector<2x8x8xf32>
    %cst_29 = arith.constant dense<0xFF800000> : vector<2x8xf32>
    %115 = vector.multi_reduction <maximumf>, %114, %cst_29 [2] : vector<2x8x8xf32> to vector<2x8xf32>
    %116 = vector.shape_cast %115 : vector<2x8xf32> to vector<2x8x1xf32>
    %117 = vector.broadcast %116 : vector<2x8x1xf32> to vector<2x8x8xf32>
    %118 = arith.subf %114, %117 : vector<2x8x8xf32>
    %119 = math.exp %118 : vector<2x8x8xf32>
    %120 = arith.truncf %119 : vector<2x8x8xf32> to vector<2x8x8xbf16>
    %cst_30 = arith.constant dense<0.000000e+00> : vector<2x8x32xf32>
    %121 = tpu.matmul %120, %113, %cst_30 {dimension_numbers = #tpu.dot_dimension_numbers<[2], [1], [1], [2], [0, 0, 0, 1, 1, 2], [0], [0]>} : vector<2x8x8xbf16>, vector<2x8x32xbf16>, vector<2x8x32xf32> -> vector<2x8x32xf32>
    %cst_31 = arith.constant dense<0.000000e+00> : vector<2x8xf32>
    %122 = vector.multi_reduction <add>, %119, %cst_31 [2] : vector<2x8x8xf32> to vector<2x8xf32>
    %123 = vector.shape_cast %122 : vector<2x8xf32> to vector<2x8x1xf32>
    %124 = tpu.reciprocal %123 {approx = true} : vector<2x8x1xf32> -> vector<2x8x1xf32>
    %125 = vector.broadcast %124 : vector<2x8x1xf32> to vector<2x8x32xf32>
    %126 = arith.mulf %121, %125 : vector<2x8x32xf32>
    %127 = vector.shape_cast %126 : vector<2x8x32xf32> to vector<16x32xf32>
    %128 = arith.truncf %127 : vector<16x32xf32> to vector<16x32xbf16>
    %c0_32 = arith.constant 0 : index
    %c96 = arith.constant 96 : index
    %129 = vector.load %arg14[%c0_32, %c96] : memref<16x128xbf16, #tpu.memory_space<vmem>>, vector<16x32xbf16>
    tpu.vector_store %arg14[%c0_32, %c96], %128 {strides = array<i32>} : memref<16x128xbf16, #tpu.memory_space<vmem>>, vector<16x32xbf16>,
    %c0_33 = arith.constant 0 : index
    %c0_34 = arith.constant 0 : index
    %130 = vector.load %arg14[%c0_33, %c0_34] : memref<16x128xbf16, #tpu.memory_space<vmem>>, vector<16x128xbf16>
    %c0_35 = arith.constant 0 : index
    %c0_36 = arith.constant 0 : index
    %131 = vector.load %arg5[%c0_35, %c0_36] : memref<128x128xbf16, #tpu.memory_space<vmem>>, vector<128x128xbf16>
    %cst_37 = arith.constant dense<0.000000e+00> : vector<16x128xf32>
    %132 = tpu.matmul %130, %131, %cst_37 {dimension_numbers = #tpu.dot_dimension_numbers<[1], [0], [0], [1], [0, 0, 1, 1], [], []>} : vector<16x128xbf16>, vector<128x128xbf16>, vector<16x128xf32> -> vector<16x128xf32>
    %133 = arith.addf %0, %132 : vector<16x128xf32>
    %c0_38 = arith.constant 0 : index
    %c0_39 = arith.constant 0 : index
    %134 = vector.load %arg6[%c0_38, %c0_39] : memref<1x128xf32, #tpu.memory_space<vmem>>, vector<1x128xf32>
    %135 = vector.shape_cast %134 : vector<1x128xf32> to vector<128xf32>
    %136 = vector.shape_cast %135 : vector<128xf32> to vector<1x128xf32>
    %137 = vector.broadcast %136 : vector<1x128xf32> to vector<16x128xf32>
    %138 = arith.addf %133, %137 : vector<16x128xf32>
    %c0_40 = arith.constant 0 : index
    %c0_41 = arith.constant 0 : index
    %139 = vector.load %arg7[%c0_40, %c0_41] : memref<1x128xf32, #tpu.memory_space<vmem>>, vector<1x128xf32>
    %140 = vector.shape_cast %139 : vector<1x128xf32> to vector<128xf32>
    %c0_42 = arith.constant 0 : index
    %c0_43 = arith.constant 0 : index
    %141 = vector.load %arg8[%c0_42, %c0_43] : memref<1x128xf32, #tpu.memory_space<vmem>>, vector<1x128xf32>
    %142 = vector.shape_cast %141 : vector<1x128xf32> to vector<128xf32>
    %cst_44 = arith.constant dense<0.000000e+00> : vector<16xf32>
    %143 = vector.multi_reduction <add>, %138, %cst_44 [1] : vector<16x128xf32> to vector<16xf32>
    %144 = vector.shape_cast %143 : vector<16xf32> to vector<16x1xf32>
    %cst_45 = arith.constant 1.280000e+02 : f32
    %145 = vector.broadcast %cst_45 : f32 to vector<16x1xf32>
    %146 = arith.divf %144, %145 : vector<16x1xf32>
    %147 = vector.broadcast %146 : vector<16x1xf32> to vector<16x128xf32>
    %148 = arith.subf %138, %147 : vector<16x128xf32>
    %149 = arith.mulf %148, %148 : vector<16x128xf32>
    %cst_46 = arith.constant dense<0.000000e+00> : vector<16xf32>
    %150 = vector.multi_reduction <add>, %149, %cst_46 [1] : vector<16x128xf32> to vector<16xf32>
    %151 = vector.shape_cast %150 : vector<16xf32> to vector<16x1xf32>
    %cst_47 = arith.constant 1.280000e+02 : f32
    %152 = vector.broadcast %cst_47 : f32 to vector<16x1xf32>
    %153 = arith.divf %151, %152 : vector<16x1xf32>
    %cst_48 = arith.constant 9.99999974E-6 : f32
    %154 = vector.broadcast %cst_48 : f32 to vector<16x1xf32>
    %155 = arith.addf %153, %154 : vector<16x1xf32>
    %156 = math.rsqrt %155 : vector<16x1xf32>
    %157 = vector.broadcast %156 : vector<16x1xf32> to vector<16x128xf32>
    %158 = arith.mulf %148, %157 : vector<16x128xf32>
    %159 = vector.shape_cast %140 : vector<128xf32> to vector<1x128xf32>
    %160 = vector.broadcast %159 : vector<1x128xf32> to vector<16x128xf32>
    %161 = arith.mulf %158, %160 : vector<16x128xf32>
    %162 = vector.shape_cast %142 : vector<128xf32> to vector<1x128xf32>
    %163 = vector.broadcast %162 : vector<1x128xf32> to vector<16x128xf32>
    %164 = arith.addf %161, %163 : vector<16x128xf32>
    %165 = arith.truncf %164 : vector<16x128xf32> to vector<16x128xbf16>
    %c0_49 = arith.constant 0 : index
    %c0_50 = arith.constant 0 : index
    %166 = vector.load %arg9[%c0_49, %c0_50] : memref<128x512xbf16, #tpu.memory_space<vmem>>, vector<128x512xbf16>
    %cst_51 = arith.constant dense<0.000000e+00> : vector<16x512xf32>
    %167 = tpu.matmul %165, %166, %cst_51 {dimension_numbers = #tpu.dot_dimension_numbers<[1], [0], [0], [1], [0, 0, 1, 1], [], []>} : vector<16x128xbf16>, vector<128x512xbf16>, vector<16x512xf32> -> vector<16x512xf32>
    %c0_52 = arith.constant 0 : index
    %c0_53 = arith.constant 0 : index
    %168 = vector.load %arg10[%c0_52, %c0_53] : memref<1x512xf32, #tpu.memory_space<vmem>>, vector<1x512xf32>
    %169 = vector.shape_cast %168 : vector<1x512xf32> to vector<512xf32>
    %170 = vector.shape_cast %169 : vector<512xf32> to vector<1x512xf32>
    %171 = vector.broadcast %170 : vector<1x512xf32> to vector<16x512xf32>
    %172 = arith.addf %167, %171 : vector<16x512xf32>
    %cst_54 = arith.constant 5.000000e-01 : f32
    %173 = vector.broadcast %cst_54 : f32 to vector<16x512xf32>
    %174 = arith.mulf %173, %172 : vector<16x512xf32>
    %cst_55 = arith.constant 0.707106769 : f32
    %175 = vector.broadcast %cst_55 : f32 to vector<16x512xf32>
    %176 = arith.mulf %172, %175 : vector<16x512xf32>
    %177 = math.erf %176 : vector<16x512xf32>
    %cst_56 = arith.constant 1.000000e+00 : f32
    %178 = vector.broadcast %cst_56 : f32 to vector<16x512xf32>
    %179 = arith.addf %178, %177 : vector<16x512xf32>
    %180 = arith.mulf %174, %179 : vector<16x512xf32>
    %181 = arith.truncf %180 : vector<16x512xf32> to vector<16x512xbf16>
    %c0_57 = arith.constant 0 : index
    %c0_58 = arith.constant 0 : index
    %182 = vector.load %arg11[%c0_57, %c0_58] : memref<512x128xbf16, #tpu.memory_space<vmem>>, vector<512x128xbf16>
    %cst_59 = arith.constant dense<0.000000e+00> : vector<16x128xf32>
    %183 = tpu.matmul %181, %182, %cst_59 {dimension_numbers = #tpu.dot_dimension_numbers<[1], [0], [0], [1], [0, 0, 1, 1], [], []>} : vector<16x512xbf16>, vector<512x128xbf16>, vector<16x128xf32> -> vector<16x128xf32>
    %c0_60 = arith.constant 0 : index
    %c0_61 = arith.constant 0 : index
    %184 = vector.load %arg12[%c0_60, %c0_61] : memref<1x128xf32, #tpu.memory_space<vmem>>, vector<1x128xf32>
    %185 = vector.shape_cast %184 : vector<1x128xf32> to vector<128xf32>
    %186 = vector.shape_cast %185 : vector<128xf32> to vector<1x128xf32>
    %187 = vector.broadcast %186 : vector<1x128xf32> to vector<16x128xf32>
    %188 = arith.addf %183, %187 : vector<16x128xf32>
    %189 = arith.addf %138, %188 : vector<16x128xf32>
    %c0_62 = arith.constant 0 : index
    %c0_63 = arith.constant 0 : index
    %190 = vector.load %arg13[%c0_62, %c0_63] : memref<16x128xf32, #tpu.memory_space<vmem>>, vector<16x128xf32>
    tpu.vector_store %arg13[%c0_62, %c0_63], %189 {strides = array<i32>} : memref<16x128xf32, #tpu.memory_space<vmem>>, vector<16x128xf32>,
    return
  }
  func.func @transform_0(%arg0: i32) -> (i32, i32) {
    %c0_i32 = arith.constant 0 : i32
    %c0_i32_0 = arith.constant 0 : i32
    return %arg0, %c0_i32 : i32, i32
  }
  func.func @transform_1(%arg0: i32) -> (i32, i32) {
    %c0_i32 = arith.constant 0 : i32
    %c0_i32_0 = arith.constant 0 : i32
    %c0_i32_1 = arith.constant 0 : i32
    return %c0_i32, %c0_i32_0 : i32, i32
  }
  func.func @transform_2(%arg0: i32) -> (i32, i32) {
    %c0_i32 = arith.constant 0 : i32
    %c0_i32_0 = arith.constant 0 : i32
    %c0_i32_1 = arith.constant 0 : i32
    return %c0_i32, %c0_i32_0 : i32, i32
  }
  func.func @transform_3(%arg0: i32) -> (i32, i32) {
    %c0_i32 = arith.constant 0 : i32
    %c0_i32_0 = arith.constant 0 : i32
    %c0_i32_1 = arith.constant 0 : i32
    return %c0_i32, %c0_i32_0 : i32, i32
  }
  func.func @transform_4(%arg0: i32) -> (i32, i32) {
    %c0_i32 = arith.constant 0 : i32
    %c0_i32_0 = arith.constant 0 : i32
    %c0_i32_1 = arith.constant 0 : i32
    return %c0_i32, %c0_i32_0 : i32, i32
  }
  func.func @transform_5(%arg0: i32) -> (i32, i32) {
    %c0_i32 = arith.constant 0 : i32
    %c0_i32_0 = arith.constant 0 : i32
    %c0_i32_1 = arith.constant 0 : i32
    return %c0_i32, %c0_i32_0 : i32, i32
  }
  func.func @transform_6(%arg0: i32) -> (i32, i32) {
    %c0_i32 = arith.constant 0 : i32
    %c0_i32_0 = arith.constant 0 : i32
    %c0_i32_1 = arith.constant 0 : i32
    return %c0_i32, %c0_i32_0 : i32, i32
  }
  func.func @transform_7(%arg0: i32) -> (i32, i32) {
    %c0_i32 = arith.constant 0 : i32
    %c0_i32_0 = arith.constant 0 : i32
    %c0_i32_1 = arith.constant 0 : i32
    return %c0_i32, %c0_i32_0 : i32, i32
  }
  func.func @transform_8(%arg0: i32) -> (i32, i32) {
    %c0_i32 = arith.constant 0 : i32
    %c0_i32_0 = arith.constant 0 : i32
    %c0_i32_1 = arith.constant 0 : i32
    return %c0_i32, %c0_i32_0 : i32, i32
  }
  func.func @transform_9(%arg0: i32) -> (i32, i32) {
    %c0_i32 = arith.constant 0 : i32
    %c0_i32_0 = arith.constant 0 : i32
    %c0_i32_1 = arith.constant 0 : i32
    return %c0_i32, %c0_i32_0 : i32, i32
  }
  func.func @transform_10(%arg0: i32) -> (i32, i32) {
    %c0_i32 = arith.constant 0 : i32
    %c0_i32_0 = arith.constant 0 : i32
    %c0_i32_1 = arith.constant 0 : i32
    return %c0_i32, %c0_i32_0 : i32, i32
  }
  func.func @transform_11(%arg0: i32) -> (i32, i32) {
    %c0_i32 = arith.constant 0 : i32
    %c0_i32_0 = arith.constant 0 : i32
    %c0_i32_1 = arith.constant 0 : i32
    return %c0_i32, %c0_i32_0 : i32, i32
  }
  func.func @transform_12(%arg0: i32) -> (i32, i32) {
    %c0_i32 = arith.constant 0 : i32
    %c0_i32_0 = arith.constant 0 : i32
    return %arg0, %c0_i32 : i32, i32
  }
}

</mosaic_0001>

<llo_original>
// kernel: tpu_custom_call.1
$region0: #{tpu_custom_call.1}
  #allocation0 [shape = 'u32[]', space=smem, size = 0x4, offset = 0x4, fixed_abs, tag = 'smem constant byte address 0x4 - core index']
  #allocation1 [shape = 'u32[144,128]{1,0:T(1,128)}', space=vmem, size = 0x12000, scoped, tag = 'internal scratch']
  #allocation2 [shape = 'bf16[16,128]{1,0:T(16,128)(2,1)}', space=vmem, size = 0x1000, scoped, tag = 'scratch operand']
  %s0 = inlined_call_operand.hbm [shape: f32[16,128], index: 0, kind: input, shape index: {}]
  %s1 = inlined_call_operand.vmem [shape: f32[1,128], index: 1, kind: input, shape index: {}]
  %s2 = inlined_call_operand.vmem [shape: f32[1,128], index: 2, kind: input, shape index: {}]
  %s3 = inlined_call_operand.hbm [shape: bf16[128,384], index: 3, kind: input, shape index: {}]
  %s4 = inlined_call_operand.hbm [shape: bf16[128,128], index: 4, kind: input, shape index: {}]
  %s5 = inlined_call_operand.vmem [shape: f32[1,128], index: 5, kind: input, shape index: {}]
  %s6 = inlined_call_operand.vmem [shape: f32[1,128], index: 6, kind: input, shape index: {}]
  %s7 = inlined_call_operand.vmem [shape: f32[1,128], index: 7, kind: input, shape index: {}]
  %s8 = inlined_call_operand.hbm [shape: bf16[128,512], index: 8, kind: input, shape index: {}]
  %s9 = inlined_call_operand.vmem [shape: f32[1,512], index: 9, kind: input, shape index: {}]
  %s10 = inlined_call_operand.hbm [shape: bf16[512,128], index: 10, kind: input, shape index: {}]
  %s11 = inlined_call_operand.vmem [shape: f32[1,128], index: 11, kind: input, shape index: {}]
  %s12 = inlined_call_operand.hbm [shape: f32[16,128], index: 12, kind: output, shape index: {}]
  %s13 = sld [smem:[#allocation0]]
  $region78: #{tpu_custom_call.1} parent=0
    _
  %s15 = ssub.s32 1, %s13
  %s16 = scalar_select 0, %s15, %s13
  $region1: #{tpu_custom_call.1} parent=0
    #allocation3 [shape = 'u8[8192]{0}', space=vmem, size = 0x2000, scoped, tag = 'input window, operand 0, single buffered']
    #allocation4 [shape = 's32[1]{0}', space=sflag, size = 0x4, scoped, tag = 'scoped memory for tpu_custom_call.1']
    #allocation5 [shape = 's32[1]{0}', space=sflag, size = 0x4, scoped, tag = 'scoped memory for tpu_custom_call.1']
    #allocation6 [shape = 'u8[98304]{0}', space=vmem, size = 0x18000, scoped, tag = 'input window, operand 3, single buffered']
    #allocation7 [shape = 's32[1]{0}', space=sflag, size = 0x4, scoped, tag = 'scoped memory for tpu_custom_call.1']
    #allocation8 [shape = 'u8[32768]{0}', space=vmem, size = 0x8000, scoped, tag = 'input window, operand 4, single buffered']
    #allocation9 [shape = 'u8[131072]{0}', space=vmem, size = 0x20000, scoped, tag = 'input window, operand 8, single buffered']
    #allocation10 [shape = 's32[1]{0}', space=sflag, size = 0x4, scoped, tag = 'scoped memory for tpu_custom_call.1']
    #allocation11 [shape = 'u8[131072]{0}', space=vmem, size = 0x20000, scoped, tag = 'input window, operand 10, single buffered']
    #allocation12 [shape = 'u8[8192]{0}', space=vmem, size = 0x2000, scoped, tag = 'output window, operand 0, single buffered']
    %17 = vsyncpa [#allocation4], 0
    %18 = vsyncpa [#allocation7], 0
    %19 = vsyncpa [#allocation10], 0
    %20 = vsyncpa [#allocation5], 0
    // Predicated region
    $region2: #{tpu_custom_call.1} parent=1 // pred_check
      _
    $region3: #{tpu_custom_call.1} parent=1 // pred_check_branch
      %22 = sbr.rel (0) target = $region5
    $region4: #{tpu_custom_call.1} parent=1 // pred_region
      %s24 = ssub.s32 256, 256
      %25 = vsyncadd [#allocation4], %s24
      %s26 = sshll.u32 [#allocation3], 4
      %s27 = int_to_ptr.vmem [resolvable:$true] %s26
      %32 = dma.hbm_to_vmem [thread:$0]  %s0, 256, %s27, [#allocation4], 128, 128, 8
    $region5: #{tpu_custom_call.1} parent=1 // pred_fallthru
      _
    // Predicated region
    $region6: #{tpu_custom_call.1} parent=1 // pred_check
      _
    $region7: #{tpu_custom_call.1} parent=1 // pred_check_branch
      %34 = sbr.rel (0) target = $region9
    $region8: #{tpu_custom_call.1} parent=1 // pred_region
      _
    $region9: #{tpu_custom_call.1} parent=1 // pred_fallthru
      _
    // Predicated region
    $region10: #{tpu_custom_call.1} parent=1 // pred_check
      _
    $region11: #{tpu_custom_call.1} parent=1 // pred_check_branch
      %36 = sbr.rel (0) target = $region13
    $region12: #{tpu_custom_call.1} parent=1 // pred_region
      _
    $region13: #{tpu_custom_call.1} parent=1 // pred_fallthru
      _
    // Predicated region
    $region14: #{tpu_custom_call.1} parent=1 // pred_check
      _
    $region15: #{tpu_custom_call.1} parent=1 // pred_check_branch
      %38 = sbr.rel (0) target = $region17
    $region16: #{tpu_custom_call.1} parent=1 // pred_region
      %s40 = ssub.s32 3072, 3072
      %41 = vsyncadd [#allocation7], %s40
      %s42 = sshll.u32 [#allocation6], 4
      %s43 = int_to_ptr.vmem [resolvable:$true] %s42
      %48 = dma.hbm_to_vmem [thread:$0]  %s3, 3072, %s43, [#allocation7], 192, 192, 12
    $region17: #{tpu_custom_call.1} parent=1 // pred_fallthru
      _
    // Predicated region
    $region18: #{tpu_custom_call.1} parent=1 // pred_check
      _
    $region19: #{tpu_custom_call.1} parent=1 // pred_check_branch
      %50 = sbr.rel (0) target = $region21
    $region20: #{tpu_custom_call.1} parent=1 // pred_region
      %s52 = ssub.s32 1024, 1024
      %53 = vsyncadd [#allocation7], %s52
      %s54 = sshll.u32 [#allocation8], 4
      %s55 = int_to_ptr.vmem [resolvable:$true] %s54
      %60 = dma.hbm_to_vmem [thread:$0]  %s4, 1024, %s55, [#allocation7], 64, 64, 4
    $region21: #{tpu_custom_call.1} parent=1 // pred_fallthru
      _
    // Predicated region
    $region22: #{tpu_custom_call.1} parent=1 // pred_check
      _
    $region23: #{tpu_custom_call.1} parent=1 // pred_check_branch
      %62 = sbr.rel (0) target = $region25
    $region24: #{tpu_custom_call.1} parent=1 // pred_region
      _
    $region25: #{tpu_custom_call.1} parent=1 // pred_fallthru
      _
    // Predicated region
    $region26: #{tpu_custom_call.1} parent=1 // pred_check
      _
    $region27: #{tpu_custom_call.1} parent=1 // pred_check_branch
      %64 = sbr.rel (0) target = $region29
    $region28: #{tpu_custom_call.1} parent=1 // pred_region
      _
    $region29: #{tpu_custom_call.1} parent=1 // pred_fallthru
      _
    // Predicated region
    $region30: #{tpu_custom_call.1} parent=1 // pred_check
      _
    $region31: #{tpu_custom_call.1} parent=1 // pred_check_branch
      %66 = sbr.rel (0) target = $region33
    $region32: #{tpu_custom_call.1} parent=1 // pred_region
      _
    $region33: #{tpu_custom_call.1} parent=1 // pred_fallthru
      _
    // Predicated region
    $region34: #{tpu_custom_call.1} parent=1 // pred_check
      _
    $region35: #{tpu_custom_call.1} parent=1 // pred_check_branch
      %68 = sbr.rel (0) target = $region37
    $region36: #{tpu_custom_call.1} parent=1 // pred_region
      %s70 = ssub.s32 4096, 4096
      %71 = vsyncadd [#allocation10], %s70
      %s72 = sshll.u32 [#allocation9], 4
      %s73 = int_to_ptr.vmem [resolvable:$true] %s72
      %78 = dma.hbm_to_vmem [thread:$0]  %s8, 4096, %s73, [#allocation10], 256, 256, 16
    $region37: #{tpu_custom_call.1} parent=1 // pred_fallthru
      _
    // Predicated region
    $region38: #{tpu_custom_call.1} parent=1 // pred_check
      _
    $region39: #{tpu_custom_call.1} parent=1 // pred_check_branch
      %80 = sbr.rel (0) target = $region41
    $region40: #{tpu_custom_call.1} parent=1 // pred_region
      _
    $region41: #{tpu_custom_call.1} parent=1 // pred_fallthru
      _
    // Predicated region
    $region42: #{tpu_custom_call.1} parent=1 // pred_check
      _
    $region43: #{tpu_custom_call.1} parent=1 // pred_check_branch
      %82 = sbr.rel (0) target = $region45
    $region44: #{tpu_custom_call.1} parent=1 // pred_region
      %s84 = ssub.s32 4096, 4096
      %85 = vsyncadd [#allocation10], %s84
      %s86 = sshll.u32 [#allocation11], 4
      %s87 = int_to_ptr.vmem [resolvable:$true] %s86
      %92 = dma.hbm_to_vmem [thread:$0]  %s10, 4096, %s87, [#allocation10], 64, 64, 4
    $region45: #{tpu_custom_call.1} parent=1 // pred_fallthru
      _
    // Predicated region
    $region46: #{tpu_custom_call.1} parent=1 // pred_check
      _
    $region47: #{tpu_custom_call.1} parent=1 // pred_check_branch
      %94 = sbr.rel (0) target = $region49
    $region48: #{tpu_custom_call.1} parent=1 // pred_region
      _
    $region49: #{tpu_custom_call.1} parent=1 // pred_fallthru
      _
    // Predicated region
    $region50: #{tpu_custom_call.1} parent=1 // pred_check
      _
    $region51: #{tpu_custom_call.1} parent=1 // pred_check_branch
      %96 = sbr.rel (0) target = $region53
    $region52: #{tpu_custom_call.1} parent=1 // pred_region
      %97 = dma.done [#allocation4], 256
    $region53: #{tpu_custom_call.1} parent=1 // pred_fallthru
      _
    // Predicated region
    $region54: #{tpu_custom_call.1} parent=1 // pred_check
      _
    $region55: #{tpu_custom_call.1} parent=1 // pred_check_branch
      %99 = sbr.rel (0) target = $region57
    $region56: #{tpu_custom_call.1} parent=1 // pred_region
      %100 = dma.done [#allocation7], 3072
    $region57: #{tpu_custom_call.1} parent=1 // pred_fallthru
      _
    // Predicated region
    $region58: #{tpu_custom_call.1} parent=1 // pred_check
      _
    $region59: #{tpu_custom_call.1} parent=1 // pred_check_branch
      %102 = sbr.rel (0) target = $region61
    $region60: #{tpu_custom_call.1} parent=1 // pred_region
      %103 = dma.done [#allocation7], 1024
    $region61: #{tpu_custom_call.1} parent=1 // pred_fallthru
      _
    // Predicated region
    $region62: #{tpu_custom_call.1} parent=1 // pred_check
      _
    $region63: #{tpu_custom_call.1} parent=1 // pred_check_branch
      %105 = sbr.rel (0) target = $region65
    $region64: #{tpu_custom_call.1} parent=1 // pred_region
      %106 = dma.done [#allocation10], 4096
    $region65: #{tpu_custom_call.1} parent=1 // pred_fallthru
      _
    // Predicated region
    $region66: #{tpu_custom_call.1} parent=1 // pred_check
      _
    $region67: #{tpu_custom_call.1} parent=1 // pred_check_branch
      %108 = sbr.rel (0) target = $region69
    $region68: #{tpu_custom_call.1} parent=1 // pred_region
      %109 = dma.done [#allocation10], 4096
    $region69: #{tpu_custom_call.1} parent=1 // pred_fallthru
      _
    %v111 = vld [vmem:[#allocation3] sm:$0xff]
    %v112 = vld [vmem:[#allocation3 + $0x8] sm:$0xff]
    %v113 = vld [vmem:[%s1] sm:$0x1]
    %v114 = vld [vmem:[%s2] sm:$0x1]
    %115 = vadd.xlane.f32.xlu0 %v111
    %v116 = vpop.xlane.xlu0 %115
    %117 = vadd.xlane.f32.xlu0 %v112
    %v118 = vpop.xlane.xlu0 %117
    %v119 = vrcp.pop 128.0
    %v120 = vmul.f32 %v116, %v119
    %v121 = vmul.f32 %v118, %v119
    %v122 = vsub.f32 %v111, %v120
    %v123 = vsub.f32 %v112, %v121
    %v124 = vmul.f32 %v122, %v122
    %v125 = vmul.f32 %v123, %v123
    %126 = vadd.xlane.f32.xlu0 %v124
    %v127 = vpop.xlane.xlu0 %126
    %128 = vadd.xlane.f32.xlu0 %v125
    %v129 = vpop.xlane.xlu0 %128
    %v130 = vmul.f32 %v127, %v119
    %v131 = vmul.f32 %v129, %v119
    %v132 = vadd.f32 %v130, 1e-05
    %v133 = vadd.f32 %v131, 1e-05
    %v134 = vrsqrt.pop %v132
    %v135 = vrsqrt.pop %v133
    %v136 = vmul.f32 %v122, %v134
    %v137 = vmul.f32 %v123, %v135
    %v139 = vlaneseq
    %v140 = vshrl.u32 %v139, 7
    %v141 = vsub.s32 0, %v140
    %v142 = vrot.slane %v113, %v141
    %v144 = vmul.f32 %v136, %v142
    %v145 = vmul.f32 %v137, %v142
    %v147 = vlaneseq
    %v148 = vshrl.u32 %v147, 7
    %v149 = vsub.s32 0, %v148
    %v150 = vrot.slane %v114, %v149
    %v152 = vadd.f32 %v144, %v150
    %v153 = vadd.f32 %v145, %v150
    %v154 = vpack.c.bf16 %v153, %v152
    %v155 = vld [vmem:[#allocation6] sm:$0xff]
    %v156 = vld [vmem:[#allocation6 + $0x8] sm:$0xf]
    %v157 = vld [vmem:[#allocation6 + $0xc] sm:$0xff]
    %v158 = vld [vmem:[#allocation6 + $0x14] sm:$0xf]
    %v159 = vld [vmem:[#allocation6 + $0x18] sm:$0xff]
    %v160 = vld [vmem:[#allocation6 + $0x20] sm:$0xf]
    %v161 = vld [vmem:[#allocation6 + $0x24] sm:$0xff]
    %v162 = vld [vmem:[#allocation6 + $0x2c] sm:$0xf]
    %v163 = vld [vmem:[#allocation6 + $0x30] sm:$0xff]
    %v164 = vld [vmem:[#allocation6 + $0x38] sm:$0xf]
    %v165 = vld [vmem:[#allocation6 + $0x3c] sm:$0xff]
    %v166 = vld [vmem:[#allocation6 + $0x44] sm:$0xf]
    %v167 = vld [vmem:[#allocation6 + $0x48] sm:$0xff]
    %v168 = vld [vmem:[#allocation6 + $0x50] sm:$0xf]
    %v169 = vld [vmem:[#allocation6 + $0x54] sm:$0xff]
    %v170 = vld [vmem:[#allocation6 + $0x5c] sm:$0xf]
    %v171 = vld [vmem:[#allocation6 + $0x60] sm:$0xff]
    %v172 = vld [vmem:[#allocation6 + $0x68] sm:$0xf]
    %v173 = vld [vmem:[#allocation6 + $0x6c] sm:$0xff]
    %v174 = vld [vmem:[#allocation6 + $0x74] sm:$0xf]
    %v175 = vld [vmem:[#allocation6 + $0x78] sm:$0xff]
    %v176 = vld [vmem:[#allocation6 + $0x80] sm:$0xf]
    %v177 = vld [vmem:[#allocation6 + $0x84] sm:$0xff]
    %v178 = vld [vmem:[#allocation6 + $0x8c] sm:$0xf]
    %v179 = vld [vmem:[#allocation6 + $0x90] sm:$0xff]
    %v180 = vld [vmem:[#allocation6 + $0x98] sm:$0xf]
    %v181 = vld [vmem:[#allocation6 + $0x9c] sm:$0xff]
    %v182 = vld [vmem:[#allocation6 + $0xa4] sm:$0xf]
    %v183 = vld [vmem:[#allocation6 + $0xa8] sm:$0xff]
    %v184 = vld [vmem:[#allocation6 + $0xb0] sm:$0xf]
    %v185 = vld [vmem:[#allocation6 + $0xb4] sm:$0xff]
    %v186 = vld [vmem:[#allocation6 + $0xbc] sm:$0xf]
    %v219 = vunpack.c.l.b16 %v155
    %v220 = vunpack.c.h.b16 %v155
    %v221 = vunpack.c.l.b16 %v156
    %v222 = vunpack.c.l.b16 %v157
    %v223 = vunpack.c.h.b16 %v157
    %v224 = vunpack.c.l.b16 %v158
    %v225 = vunpack.c.l.b16 %v159
    %v226 = vunpack.c.h.b16 %v159
    %v227 = vunpack.c.l.b16 %v160
    %v228 = vunpack.c.l.b16 %v161
    %v229 = vunpack.c.h.b16 %v161
    %v230 = vunpack.c.l.b16 %v162
    %v231 = vunpack.c.l.b16 %v163
    %v232 = vunpack.c.h.b16 %v163
    %v233 = vunpack.c.l.b16 %v164
    %v234 = vunpack.c.l.b16 %v165
    %v235 = vunpack.c.h.b16 %v165
    %v236 = vunpack.c.l.b16 %v166
    %v237 = vunpack.c.l.b16 %v167
    %v238 = vunpack.c.h.b16 %v167
    %v239 = vunpack.c.l.b16 %v168
    %v240 = vunpack.c.l.b16 %v169
    %v241 = vunpack.c.h.b16 %v169
    %v242 = vunpack.c.l.b16 %v170
    %v243 = vunpack.c.l.b16 %v171
    %v244 = vunpack.c.h.b16 %v171
    %v245 = vunpack.c.l.b16 %v172
    %v246 = vunpack.c.l.b16 %v173
    %v247 = vunpack.c.h.b16 %v173
    %v248 = vunpack.c.l.b16 %v174
    %v249 = vunpack.c.l.b16 %v175
    %v250 = vunpack.c.h.b16 %v175
    %v251 = vunpack.c.l.b16 %v176
    %v252 = vunpack.c.l.b16 %v177
    %v253 = vunpack.c.h.b16 %v177
    %v254 = vunpack.c.l.b16 %v178
    %v255 = vunpack.c.l.b16 %v179
    %v256 = vunpack.c.h.b16 %v179
    %v257 = vunpack.c.l.b16 %v180
    %v258 = vunpack.c.l.b16 %v181
    %v259 = vunpack.c.h.b16 %v181
    %v260 = vunpack.c.l.b16 %v182
    %v261 = vunpack.c.l.b16 %v183
    %v262 = vunpack.c.h.b16 %v183
    %v263 = vunpack.c.l.b16 %v184
    %v264 = vunpack.c.l.b16 %v185
    %v265 = vunpack.c.h.b16 %v185
    %v266 = vunpack.c.l.b16 %v186
    %v267 = vpack.c.b16 %v222, %v219
    %v268 = vpack.c.b16 %v223, %v220
    %v269 = vpack.c.b16 %v224, %v221
    %v270 = vpack.c.b16 %v228, %v225
    %v271 = vpack.c.b16 %v229, %v226
    %v272 = vpack.c.b16 %v230, %v227
    %v273 = vpack.c.b16 %v234, %v231
    %v274 = vpack.c.b16 %v235, %v232
    %v275 = vpack.c.b16 %v236, %v233
    %v276 = vpack.c.b16 %v240, %v237
    %v277 = vpack.c.b16 %v241, %v238
    %v278 = vpack.c.b16 %v242, %v239
    %v279 = vpack.c.b16 %v246, %v243
    %v280 = vpack.c.b16 %v247, %v244
    %v281 = vpack.c.b16 %v248, %v245
    %v282 = vpack.c.b16 %v252, %v249
    %v283 = vpack.c.b16 %v253, %v250
    %v284 = vpack.c.b16 %v254, %v251
    %v285 = vpack.c.b16 %v258, %v255
    %v286 = vpack.c.b16 %v259, %v256
    %v287 = vpack.c.b16 %v260, %v257
    %v288 = vpack.c.b16 %v264, %v261
    %v289 = vpack.c.b16 %v265, %v262
    %v290 = vpack.c.b16 %v266, %v263
    %315 = vmatprep.subr.bf16.mxu0 %v268
    %316 = vmatpush1.bf16.msra.mxu0 %v267
    %317 = vmatprep.subr.bf16.mxu0 %v271
    %318 = vmatpush1.bf16.msra.mxu0 %v270
    %319 = vmatprep.subr.bf16.mxu0 %v274
    %320 = vmatpush1.bf16.msra.mxu0 %v273
    %321 = vmatprep.subr.bf16.mxu0 %v277
    %322 = vmatpush1.bf16.msra.mxu0 %v276
    %323 = vmatprep.subr.bf16.mxu0 %v280
    %324 = vmatpush1.bf16.msra.mxu0 %v279
    %325 = vmatprep.subr.bf16.mxu0 %v283
    %326 = vmatpush1.bf16.msra.mxu0 %v282
    %327 = vmatprep.subr.bf16.mxu0 %v286
    %328 = vmatpush1.bf16.msra.mxu0 %v285
    %329 = vmatprep.subr.bf16.mxu0 %v289
    %330 = vmatpush1.bf16.msra.mxu0 %v288
    %331 = vmatprep.subr.bf16.mxu0 0
    %332 = vmatpush1.bf16.msra.mxu0 0
    %333 = vmatprep.subr.bf16.mxu0 0
    %334 = vmatpush1.bf16.msra.mxu0 0
    %335 = vmatprep.subr.bf16.mxu0 0
    %336 = vmatpush1.bf16.msra.mxu0 0
    %337 = vmatprep.subr.bf16.mxu0 0
    %338 = vmatpush1.bf16.msra.mxu0 0
    %339 = vmatprep.subr.bf16.mxu0 0
    %340 = vmatpush1.bf16.msra.mxu0 0
    %341 = vmatprep.subr.bf16.mxu0 0
    %342 = vmatpush1.bf16.msra.mxu0 0
    %343 = vmatprep.subr.bf16.mxu0 0
    %344 = vmatpush1.bf16.msra.mxu0 0
    %345 = vmatprep.subr.bf16.mxu0 0
    %346 = vmatpush1.bf16.msra.mxu0 0
    %347 = vmatprep.mubr.bf16.mxu0 0
    %348 = vmatmul.mubr.bf16.gmra.mrb[0].mxu0 %v154
    %v349 = vpop.f32.mrb[0].mxu0
    %v350 = vadd.f32 0.0, %v349
    %v351 = vpop.f32.mrb[0].mxu0
    %v352 = vadd.f32 0.0, %v351
    %v353 = vpop.f32.mrb[0].mxu0
    %v354 = vadd.f32 0.0, %v353
    %v355 = vpop.f32.mrb[0].mxu0
    %v356 = vadd.f32 0.0, %v355
    %357 = vdwg.mxu0
    %358 = vmatprep.subr.bf16.mxu0 0
    %359 = vmatpush1.bf16.msra.mxu0 %v269
    %360 = vmatprep.subr.bf16.mxu0 0
    %361 = vmatpush1.bf16.msra.mxu0 %v272
    %362 = vmatprep.subr.bf16.mxu0 0
    %363 = vmatpush1.bf16.msra.mxu0 %v275
    %364 = vmatprep.subr.bf16.mxu0 0
    %365 = vmatpush1.bf16.msra.mxu0 %v278
    %366 = vmatprep.subr.bf16.mxu0 0
    %367 = vmatpush1.bf16.msra.mxu0 %v281
    %368 = vmatprep.subr.bf16.mxu0 0
    %369 = vmatpush1.bf16.msra.mxu0 %v284
    %370 = vmatprep.subr.bf16.mxu0 0
    %371 = vmatpush1.bf16.msra.mxu0 %v287
    %372 = vmatprep.subr.bf16.mxu0 0
    %373 = vmatpush1.bf16.msra.mxu0 %v290
    %374 = vmatprep.subr.bf16.mxu0 0
    %375 = vmatpush1.bf16.msra.mxu0 0
    %376 = vmatprep.subr.bf16.mxu0 0
    %377 = vmatpush1.bf16.msra.mxu0 0
    %378 = vmatprep.subr.bf16.mxu0 0
    %379 = vmatpush1.bf16.msra.mxu0 0
    %380 = vmatprep.subr.bf16.mxu0 0
    %381 = vmatpush1.bf16.msra.mxu0 0
    %382 = vmatprep.subr.bf16.mxu0 0
    %383 = vmatpush1.bf16.msra.mxu0 0
    %384 = vmatprep.subr.bf16.mxu0 0
    %385 = vmatpush1.bf16.msra.mxu0 0
    %386 = vmatprep.subr.bf16.mxu0 0
    %387 = vmatpush1.bf16.msra.mxu0 0
    %388 = vmatprep.subr.bf16.mxu0 0
    %389 = vmatpush1.bf16.msra.mxu0 0
    %390 = vmatprep.mubr.bf16.mxu0 0
    %391 = vmatmul.mubr.bf16.gmra.mrb[0].mxu0 %v154
    %v392 = vpop.f32.mrb[0].mxu0
    %v393 = vadd.f32 0.0, %v392
    %v394 = vpop.f32.mrb[0].mxu0
    %v395 = vpop.f32.mrb[0].mxu0
    %v396 = vadd.f32 0.0, %v395
    %v397 = vpop.f32.mrb[0].mxu0
    %398 = vdwg.mxu0
    %v399 = vpack.c.bf16 %v350, %v350
    %v400 = vpack.c.bf16 %v354, %v354
    %v401 = vpack.c.bf16 %v352, %v352
    %v402 = vpack.c.bf16 %v356, %v356
    %v403 = vpack.c.bf16 %v393, %v393
    %v404 = vpack.c.bf16 %v396, %v396
    %vm405 = vcmask 261120
    %v407 = vsel %vm405, %v399, 0
    %v410 = vsel %vm405, %v401, 0
    %412 = vmatprep.subr.bf16.mxu0 0
    %413 = vmatpush1.bf16.xpose.msra.mxu0 %v410
    %414 = vmatprep.subr.bf16.mxu0 0
    %415 = vmatpush1.bf16.xpose.msra.mxu0 0
    %416 = vmatprep.subr.bf16.mxu0 0
    %417 = vmatpush1.bf16.xpose.msra.mxu0 0
    %418 = vmatprep.subr.bf16.mxu0 0
    %419 = vmatpush1.bf16.xpose.msra.mxu0 0
    %420 = vmatprep.subr.bf16.mxu0 0
    %421 = vmatpush1.bf16.xpose.msra.mxu0 0
    %422 = vmatprep.subr.bf16.mxu0 0
    %423 = vmatpush1.bf16.xpose.msra.mxu0 0
    %424 = vmatprep.subr.bf16.mxu0 0
    %425 = vmatpush1.bf16.xpose.msra.mxu0 0
    %426 = vmatprep.subr.bf16.mxu0 0
    %427 = vmatpush1.bf16.xpose.msra.mxu0 0
    %428 = vmatprep.subr.bf16.mxu0 0
    %429 = vmatpush1.bf16.xpose.msra.mxu0 0
    %430 = vmatprep.subr.bf16.mxu0 0
    %431 = vmatpush1.bf16.xpose.msra.mxu0 0
    %432 = vmatprep.subr.bf16.mxu0 0
    %433 = vmatpush1.bf16.xpose.msra.mxu0 0
    %434 = vmatprep.subr.bf16.mxu0 0
    %435 = vmatpush1.bf16.xpose.msra.mxu0 0
    %436 = vmatprep.subr.bf16.mxu0 0
    %437 = vmatpush1.bf16.xpose.msra.mxu0 0
    %438 = vmatprep.subr.bf16.mxu0 0
    %439 = vmatpush1.bf16.xpose.msra.mxu0 0
    %440 = vmatprep.subr.bf16.mxu0 0
    %441 = vmatpush1.bf16.xpose.msra.mxu0 0
    %442 = vmatprep.subr.bf16.mxu0 0
    %443 = vmatpush1.bf16.xpose.msra.mxu0 0
    %444 = vmatprep.mubr.bf16.mxu0 0
    %445 = vmatmul.mubr.bf16.gmra.mrb[0].mxu0 %v407
    %v446 = vpop.f32.mrb[0].mxu0
    %v447 = vadd.f32 0.0, %v446
    %v448 = vpop.f32.mrb[0].mxu0
    %v449 = vpop.f32.mrb[0].mxu0
    %v450 = vpop.f32.mrb[0].mxu0
    %451 = vdwg.mxu0
    %v453 = vsel %vm405, %v400, 0
    %v456 = vsel %vm405, %v402, 0
    %458 = vmatprep.subr.bf16.mxu0 0
    %459 = vmatpush1.bf16.xpose.msra.mxu0 %v456
    %460 = vmatprep.subr.bf16.mxu0 0
    %461 = vmatpush1.bf16.xpose.msra.mxu0 0
    %462 = vmatprep.subr.bf16.mxu0 0
    %463 = vmatpush1.bf16.xpose.msra.mxu0 0
    %464 = vmatprep.subr.bf16.mxu0 0
    %465 = vmatpush1.bf16.xpose.msra.mxu0 0
    %466 = vmatprep.subr.bf16.mxu0 0
    %467 = vmatpush1.bf16.xpose.msra.mxu0 0
    %468 = vmatprep.subr.bf16.mxu0 0
    %469 = vmatpush1.bf16.xpose.msra.mxu0 0
    %470 = vmatprep.subr.bf16.mxu0 0
    %471 = vmatpush1.bf16.xpose.msra.mxu0 0
    %472 = vmatprep.subr.bf16.mxu0 0
    %473 = vmatpush1.bf16.xpose.msra.mxu0 0
    %474 = vmatprep.subr.bf16.mxu0 0
    %475 = vmatpush1.bf16.xpose.msra.mxu0 0
    %476 = vmatprep.subr.bf16.mxu0 0
    %477 = vmatpush1.bf16.xpose.msra.mxu0 0
    %478 = vmatprep.subr.bf16.mxu0 0
    %479 = vmatpush1.bf16.xpose.msra.mxu0 0
    %480 = vmatprep.subr.bf16.mxu0 0
    %481 = vmatpush1.bf16.xpose.msra.mxu0 0
    %482 = vmatprep.subr.bf16.mxu0 0
    %483 = vmatpush1.bf16.xpose.msra.mxu0 0
    %484 = vmatprep.subr.bf16.mxu0 0
    %485 = vmatpush1.bf16.xpose.msra.mxu0 0
    %486 = vmatprep.subr.bf16.mxu0 0
    %487 = vmatpush1.bf16.xpose.msra.mxu0 0
    %488 = vmatprep.subr.bf16.mxu0 0
    %489 = vmatpush1.bf16.xpose.msra.mxu0 0
    %490 = vmatprep.mubr.bf16.mxu0 0
    %491 = vmatmul.mubr.bf16.gmra.mrb[0].mxu0 %v453
    %v492 = vpop.f32.mrb[0].mxu0
    %v493 = vadd.f32 0.0, %v492
    %v494 = vpop.f32.mrb[0].mxu0
    %v495 = vpop.f32.mrb[0].mxu0
    %v496 = vpop.f32.mrb[0].mxu0
    %497 = vdwg.mxu0
    %vm498 = vcmask 64512
    %v499 = vsel %vm498, %v447, -inf
    %500 = vmax.xlane.f32.xlu0 %v499
    %v501 = vpop.xlane.xlu0 %500
    %v502 = vsel %vm498, %v493, -inf
    %503 = vmax.xlane.f32.xlu0 %v502
    %v504 = vpop.xlane.xlu0 %503
    %v505 = vsub.f32 %v447, %v501
    %v506 = vsub.f32 %v493, %v504
    %v507 = vmul.f32 %v505, 1.442695
    %v508 = vpow.pop %v507
    %v509 = vmul.f32 %v506, 1.442695
    %v510 = vpow.pop %v509
    %v511 = vpack.c.bf16 %v508, %v508
    %v512 = vpack.c.bf16 %v510, %v510
    %v514 = vsel %vm498, %v511, 0
    %vm516 = vcmask 1043456
    %v518 = vsel %vm516, %v403, 0
    %520 = vmatprep.subr.bf16.mxu0 0
    %521 = vmatpush1.bf16.msra.mxu0 %v518
    %522 = vmatprep.subr.bf16.mxu0 0
    %523 = vmatpush1.bf16.msra.mxu0 0
    %524 = vmatprep.subr.bf16.mxu0 0
    %525 = vmatpush1.bf16.msra.mxu0 0
    %526 = vmatprep.subr.bf16.mxu0 0
    %527 = vmatpush1.bf16.msra.mxu0 0
    %528 = vmatprep.subr.bf16.mxu0 0
    %529 = vmatpush1.bf16.msra.mxu0 0
    %530 = vmatprep.subr.bf16.mxu0 0
    %531 = vmatpush1.bf16.msra.mxu0 0
    %532 = vmatprep.subr.bf16.mxu0 0
    %533 = vmatpush1.bf16.msra.mxu0 0
    %534 = vmatprep.subr.bf16.mxu0 0
    %535 = vmatpush1.bf16.msra.mxu0 0
    %536 = vmatprep.subr.bf16.mxu0 0
    %537 = vmatpush1.bf16.msra.mxu0 0
    %538 = vmatprep.subr.bf16.mxu0 0
    %539 = vmatpush1.bf16.msra.mxu0 0
    %540 = vmatprep.subr.bf16.mxu0 0
    %541 = vmatpush1.bf16.msra.mxu0 0
    %542 = vmatprep.subr.bf16.mxu0 0
    %543 = vmatpush1.bf16.msra.mxu0 0
    %544 = vmatprep.subr.bf16.mxu0 0
    %545 = vmatpush1.bf16.msra.mxu0 0
    %546 = vmatprep.subr.bf16.mxu0 0
    %547 = vmatpush1.bf16.msra.mxu0 0
    %548 = vmatprep.subr.bf16.mxu0 0
    %549 = vmatpush1.bf16.msra.mxu0 0
    %550 = vmatprep.subr.bf16.mxu0 0
    %551 = vmatpush1.bf16.msra.mxu0 0
    %552 = vmatprep.mubr.bf16.mxu0 0
    %553 = vmatmul.mubr.bf16.gmra.mrb[0].mxu0 %v514
    %v554 = vpop.f32.mrb[0].mxu0
    %v555 = vadd.f32 0.0, %v554
    %v556 = vpop.f32.mrb[0].mxu0
    %v557 = vpop.f32.mrb[0].mxu0
    %v558 = vpop.f32.mrb[0].mxu0
    %559 = vdwg.mxu0
    %v561 = vsel %vm498, %v512, 0
    %v564 = vsel %vm516, %v404, 0
    %566 = vmatprep.subr.bf16.mxu0 0
    %567 = vmatpush1.bf16.msra.mxu0 %v564
    %568 = vmatprep.subr.bf16.mxu0 0
    %569 = vmatpush1.bf16.msra.mxu0 0
    %570 = vmatprep.subr.bf16.mxu0 0
    %571 = vmatpush1.bf16.msra.mxu0 0
    %572 = vmatprep.subr.bf16.mxu0 0
    %573 = vmatpush1.bf16.msra.mxu0 0
    %574 = vmatprep.subr.bf16.mxu0 0
    %575 = vmatpush1.bf16.msra.mxu0 0
    %576 = vmatprep.subr.bf16.mxu0 0
    %577 = vmatpush1.bf16.msra.mxu0 0
    %578 = vmatprep.subr.bf16.mxu0 0
    %579 = vmatpush1.bf16.msra.mxu0 0
    %580 = vmatprep.subr.bf16.mxu0 0
    %581 = vmatpush1.bf16.msra.mxu0 0
    %582 = vmatprep.subr.bf16.mxu0 0
    %583 = vmatpush1.bf16.msra.mxu0 0
    %584 = vmatprep.subr.bf16.mxu0 0
    %585 = vmatpush1.bf16.msra.mxu0 0
    %586 = vmatprep.subr.bf16.mxu0 0
    %587 = vmatpush1.bf16.msra.mxu0 0
    %588 = vmatprep.subr.bf16.mxu0 0
    %589 = vmatpush1.bf16.msra.mxu0 0
    %590 = vmatprep.subr.bf16.mxu0 0
    %591 = vmatpush1.bf16.msra.mxu0 0
    %592 = vmatprep.subr.bf16.mxu0 0
    %593 = vmatpush1.bf16.msra.mxu0 0
    %594 = vmatprep.subr.bf16.mxu0 0
    %595 = vmatpush1.bf16.msra.mxu0 0
    %596 = vmatprep.subr.bf16.mxu0 0
    %597 = vmatpush1.bf16.msra.mxu0 0
    %598 = vmatprep.mubr.bf16.mxu0 0
    %599 = vmatmul.mubr.bf16.gmra.mrb[0].mxu0 %v561
    %v600 = vpop.f32.mrb[0].mxu0
    %v601 = vadd.f32 0.0, %v600
    %v602 = vpop.f32.mrb[0].mxu0
    %v603 = vpop.f32.mrb[0].mxu0
    %v604 = vpop.f32.mrb[0].mxu0
    %605 = vdwg.mxu0
    %v606 = vsel %vm498, %v508, 0.0
    %607 = vadd.xlane.f32.xlu0 %v606
    %v608 = vpop.xlane.xlu0 %607
    %v609 = vsel %vm498, %v510, 0.0
    %610 = vadd.xlane.f32.xlu0 %v609
    %v611 = vpop.xlane.xlu0 %610
    %v612 = vrcp.pop %v608
    %v613 = vrcp.pop %v611
    %v614 = vmul.f32 %v555, %v612
    %v615 = vmul.f32 %v601, %v613
    %v616 = vpack.c.bf16 %v615, %v614
    %617 = vst.msk [vmem:[#allocation2] sm:$0xff] %vm405, %v616
    %619 = vrot.lane.b32.xlu0 %v399, 96
    %v620 = vpop.permute.xlu0 %619
    %622 = vrot.lane.b32.xlu0 %v401, 96
    %v623 = vpop.permute.xlu0 %622
    %v625 = vsel %vm405, %v620, 0
    %v628 = vsel %vm405, %v623, 0
    %630 = vmatprep.subr.bf16.mxu0 0
    %631 = vmatpush1.bf16.xpose.msra.mxu0 %v628
    %632 = vmatprep.subr.bf16.mxu0 0
    %633 = vmatpush1.bf16.xpose.msra.mxu0 0
    %634 = vmatprep.subr.bf16.mxu0 0
    %635 = vmatpush1.bf16.xpose.msra.mxu0 0
    %636 = vmatprep.subr.bf16.mxu0 0
    %637 = vmatpush1.bf16.xpose.msra.mxu0 0
    %638 = vmatprep.subr.bf16.mxu0 0
    %639 = vmatpush1.bf16.xpose.msra.mxu0 0
    %640 = vmatprep.subr.bf16.mxu0 0
    %641 = vmatpush1.bf16.xpose.msra.mxu0 0
    %642 = vmatprep.subr.bf16.mxu0 0
    %643 = vmatpush1.bf16.xpose.msra.mxu0 0
    %644 = vmatprep.subr.bf16.mxu0 0
    %645 = vmatpush1.bf16.xpose.msra.mxu0 0
    %646 = vmatprep.subr.bf16.mxu0 0
    %647 = vmatpush1.bf16.xpose.msra.mxu0 0
    %648 = vmatprep.subr.bf16.mxu0 0
    %649 = vmatpush1.bf16.xpose.msra.mxu0 0
    %650 = vmatprep.subr.bf16.mxu0 0
    %651 = vmatpush1.bf16.xpose.msra.mxu0 0
    %652 = vmatprep.subr.bf16.mxu0 0
    %653 = vmatpush1.bf16.xpose.msra.mxu0 0
    %654 = vmatprep.subr.bf16.mxu0 0
    %655 = vmatpush1.bf16.xpose.msra.mxu0 0
    %656 = vmatprep.subr.bf16.mxu0 0
    %657 = vmatpush1.bf16.xpose.msra.mxu0 0
    %658 = vmatprep.subr.bf16.mxu0 0
    %659 = vmatpush1.bf16.xpose.msra.mxu0 0
    %660 = vmatprep.subr.bf16.mxu0 0
    %661 = vmatpush1.bf16.xpose.msra.mxu0 0
    %662 = vmatprep.mubr.bf16.mxu0 0
    %663 = vmatmul.mubr.bf16.gmra.mrb[0].mxu0 %v625
    %v664 = vpop.f32.mrb[0].mxu0
    %v665 = vadd.f32 0.0, %v664
    %v666 = vpop.f32.mrb[0].mxu0
    %v667 = vpop.f32.mrb[0].mxu0
    %v668 = vpop.f32.mrb[0].mxu0
    %669 = vdwg.mxu0
    %671 = vrot.lane.b32.xlu0 %v400, 96
    %v672 = vpop.permute.xlu0 %671
    %674 = vrot.lane.b32.xlu0 %v402, 96
    %v675 = vpop.permute.xlu0 %674
    %v677 = vsel %vm405, %v672, 0
    %v680 = vsel %vm405, %v675, 0
    %682 = vmatprep.subr.bf16.mxu0 0
    %683 = vmatpush1.bf16.xpose.msra.mxu0 %v680
    %684 = vmatprep.subr.bf16.mxu0 0
    %685 = vmatpush1.bf16.xpose.msra.mxu0 0
    %686 = vmatprep.subr.bf16.mxu0 0
    %687 = vmatpush1.bf16.xpose.msra.mxu0 0
    %688 = vmatprep.subr.bf16.mxu0 0
    %689 = vmatpush1.bf16.xpose.msra.mxu0 0
    %690 = vmatprep.subr.bf16.mxu0 0
    %691 = vmatpush1.bf16.xpose.msra.mxu0 0
    %692 = vmatprep.subr.bf16.mxu0 0
    %693 = vmatpush1.bf16.xpose.msra.mxu0 0
    %694 = vmatprep.subr.bf16.mxu0 0
    %695 = vmatpush1.bf16.xpose.msra.mxu0 0
    %696 = vmatprep.subr.bf16.mxu0 0
    %697 = vmatpush1.bf16.xpose.msra.mxu0 0
    %698 = vmatprep.subr.bf16.mxu0 0
    %699 = vmatpush1.bf16.xpose.msra.mxu0 0
    %700 = vmatprep.subr.bf16.mxu0 0
    %701 = vmatpush1.bf16.xpose.msra.mxu0 0
    %702 = vmatprep.subr.bf16.mxu0 0
    %703 = vmatpush1.bf16.xpose.msra.mxu0 0
    %704 = vmatprep.subr.bf16.mxu0 0
    %705 = vmatpush1.bf16.xpose.msra.mxu0 0
    %706 = vmatprep.subr.bf16.mxu0 0
    %707 = vmatpush1.bf16.xpose.msra.mxu0 0
    %708 = vmatprep.subr.bf16.mxu0 0
    %709 = vmatpush1.bf16.xpose.msra.mxu0 0
    %710 = vmatprep.subr.bf16.mxu0 0
    %711 = vmatpush1.bf16.xpose.msra.mxu0 0
    %712 = vmatprep.subr.bf16.mxu0 0
    %713 = vmatpush1.bf16.xpose.msra.mxu0 0
    %714 = vmatprep.mubr.bf16.mxu0 0
    %715 = vmatmul.mubr.bf16.gmra.mrb[0].mxu0 %v677
    %v716 = vpop.f32.mrb[0].mxu0
    %v717 = vadd.f32 0.0, %v716
    %v718 = vpop.f32.mrb[0].mxu0
    %v719 = vpop.f32.mrb[0].mxu0
    %v720 = vpop.f32.mrb[0].mxu0
    %721 = vdwg.mxu0
    %v722 = vsel %vm498, %v665, -inf
    %723 = vmax.xlane.f32.xlu0 %v722
    %v724 = vpop.xlane.xlu0 %723
    %v725 = vsel %vm498, %v717, -inf
    %726 = vmax.xlane.f32.xlu0 %v725
    %v727 = vpop.xlane.xlu0 %726
    %v728 = vsub.f32 %v665, %v724
    %v729 = vsub.f32 %v717, %v727
    %v730 = vmul.f32 %v728, 1.442695
    %v731 = vpow.pop %v730
    %v732 = vmul.f32 %v729, 1.442695
    %v733 = vpow.pop %v732
    %v734 = vpack.c.bf16 %v731, %v731
    %v735 = vpack.c.bf16 %v733, %v733
    %737 = vrot.lane.b32.xlu0 %v403, 96
    %v738 = vpop.permute.xlu0 %737
    %v740 = vsel %vm498, %v734, 0
    %v743 = vsel %vm516, %v738, 0
    %745 = vmatprep.subr.bf16.mxu0 0
    %746 = vmatpush1.bf16.msra.mxu0 %v743
    %747 = vmatprep.subr.bf16.mxu0 0
    %748 = vmatpush1.bf16.msra.mxu0 0
    %749 = vmatprep.subr.bf16.mxu0 0
    %750 = vmatpush1.bf16.msra.mxu0 0
    %751 = vmatprep.subr.bf16.mxu0 0
    %752 = vmatpush1.bf16.msra.mxu0 0
    %753 = vmatprep.subr.bf16.mxu0 0
    %754 = vmatpush1.bf16.msra.mxu0 0
    %755 = vmatprep.subr.bf16.mxu0 0
    %756 = vmatpush1.bf16.msra.mxu0 0
    %757 = vmatprep.subr.bf16.mxu0 0
    %758 = vmatpush1.bf16.msra.mxu0 0
    %759 = vmatprep.subr.bf16.mxu0 0
    %760 = vmatpush1.bf16.msra.mxu0 0
    %761 = vmatprep.subr.bf16.mxu0 0
    %762 = vmatpush1.bf16.msra.mxu0 0
    %763 = vmatprep.subr.bf16.mxu0 0
    %764 = vmatpush1.bf16.msra.mxu0 0
    %765 = vmatprep.subr.bf16.mxu0 0
    %766 = vmatpush1.bf16.msra.mxu0 0
    %767 = vmatprep.subr.bf16.mxu0 0
    %768 = vmatpush1.bf16.msra.mxu0 0
    %769 = vmatprep.subr.bf16.mxu0 0
    %770 = vmatpush1.bf16.msra.mxu0 0
    %771 = vmatprep.subr.bf16.mxu0 0
    %772 = vmatpush1.bf16.msra.mxu0 0
    %773 = vmatprep.subr.bf16.mxu0 0
    %774 = vmatpush1.bf16.msra.mxu0 0
    %775 = vmatprep.subr.bf16.mxu0 0
    %776 = vmatpush1.bf16.msra.mxu0 0
    %777 = vmatprep.mubr.bf16.mxu0 0
    %778 = vmatmul.mubr.bf16.gmra.mrb[0].mxu0 %v740
    %v779 = vpop.f32.mrb[0].mxu0
    %v780 = vadd.f32 0.0, %v779
    %v781 = vpop.f32.mrb[0].mxu0
    %v782 = vpop.f32.mrb[0].mxu0
    %v783 = vpop.f32.mrb[0].mxu0
    %784 = vdwg.mxu0
    %786 = vrot.lane.b32.xlu0 %v404, 96
    %v787 = vpop.permute.xlu0 %786
    %v789 = vsel %vm498, %v735, 0
    %v792 = vsel %vm516, %v787, 0
    %794 = vmatprep.subr.bf16.mxu0 0
    %795 = vmatpush1.bf16.msra.mxu0 %v792
    %796 = vmatprep.subr.bf16.mxu0 0
    %797 = vmatpush1.bf16.msra.mxu0 0
    %798 = vmatprep.subr.bf16.mxu0 0
    %799 = vmatpush1.bf16.msra.mxu0 0
    %800 = vmatprep.subr.bf16.mxu0 0
    %801 = vmatpush1.bf16.msra.mxu0 0
    %802 = vmatprep.subr.bf16.mxu0 0
    %803 = vmatpush1.bf16.msra.mxu0 0
    %804 = vmatprep.subr.bf16.mxu0 0
    %805 = vmatpush1.bf16.msra.mxu0 0
    %806 = vmatprep.subr.bf16.mxu0 0
    %807 = vmatpush1.bf16.msra.mxu0 0
    %808 = vmatprep.subr.bf16.mxu0 0
    %809 = vmatpush1.bf16.msra.mxu0 0
    %810 = vmatprep.subr.bf16.mxu0 0
    %811 = vmatpush1.bf16.msra.mxu0 0
    %812 = vmatprep.subr.bf16.mxu0 0
    %813 = vmatpush1.bf16.msra.mxu0 0
    %814 = vmatprep.subr.bf16.mxu0 0
    %815 = vmatpush1.bf16.msra.mxu0 0
    %816 = vmatprep.subr.bf16.mxu0 0
    %817 = vmatpush1.bf16.msra.mxu0 0
    %818 = vmatprep.subr.bf16.mxu0 0
    %819 = vmatpush1.bf16.msra.mxu0 0
    %820 = vmatprep.subr.bf16.mxu0 0
    %821 = vmatpush1.bf16.msra.mxu0 0
    %822 = vmatprep.subr.bf16.mxu0 0
    %823 = vmatpush1.bf16.msra.mxu0 0
    %824 = vmatprep.subr.bf16.mxu0 0
    %825 = vmatpush1.bf16.msra.mxu0 0
    %826 = vmatprep.mubr.bf16.mxu0 0
    %827 = vmatmul.mubr.bf16.gmra.mrb[0].mxu0 %v789
    %v828 = vpop.f32.mrb[0].mxu0
    %v829 = vadd.f32 0.0, %v828
    %v830 = vpop.f32.mrb[0].mxu0
    %v831 = vpop.f32.mrb[0].mxu0
    %v832 = vpop.f32.mrb[0].mxu0
    %833 = vdwg.mxu0
    %v834 = vsel %vm498, %v731, 0.0
    %835 = vadd.xlane.f32.xlu0 %v834
    %v836 = vpop.xlane.xlu0 %835
    %v837 = vsel %vm498, %v733, 0.0
    %838 = vadd.xlane.f32.xlu0 %v837
    %v839 = vpop.xlane.xlu0 %838
    %v840 = vrcp.pop %v836
    %v841 = vrcp.pop %v839
    %v842 = vmul.f32 %v780, %v840
    %v843 = vmul.f32 %v829, %v841
    %v844 = vpack.c.bf16 %v843, %v842
    %846 = vrot.lane.b32.xlu0 %v844, 32
    %v847 = vpop.permute.xlu0 %846
    %vm849 = vcmask 523520
    %850 = vst.msk [vmem:[#allocation2] sm:$0xff] %vm849, %v847
    %851 = vrot.lane.b32.xlu0 %v399, 64
    %v852 = vpop.permute.xlu0 %851
    %853 = vrot.lane.b32.xlu0 %v401, 64
    %v854 = vpop.permute.xlu0 %853
    %v856 = vsel %vm405, %v852, 0
    %v859 = vsel %vm405, %v854, 0
    %861 = vmatprep.subr.bf16.mxu0 0
    %862 = vmatpush1.bf16.xpose.msra.mxu0 %v859
    %863 = vmatprep.subr.bf16.mxu0 0
    %864 = vmatpush1.bf16.xpose.msra.mxu0 0
    %865 = vmatprep.subr.bf16.mxu0 0
    %866 = vmatpush1.bf16.xpose.msra.mxu0 0
    %867 = vmatprep.subr.bf16.mxu0 0
    %868 = vmatpush1.bf16.xpose.msra.mxu0 0
    %869 = vmatprep.subr.bf16.mxu0 0
    %870 = vmatpush1.bf16.xpose.msra.mxu0 0
    %871 = vmatprep.subr.bf16.mxu0 0
    %872 = vmatpush1.bf16.xpose.msra.mxu0 0
    %873 = vmatprep.subr.bf16.mxu0 0
    %874 = vmatpush1.bf16.xpose.msra.mxu0 0
    %875 = vmatprep.subr.bf16.mxu0 0
    %876 = vmatpush1.bf16.xpose.msra.mxu0 0
    %877 = vmatprep.subr.bf16.mxu0 0
    %878 = vmatpush1.bf16.xpose.msra.mxu0 0
    %879 = vmatprep.subr.bf16.mxu0 0
    %880 = vmatpush1.bf16.xpose.msra.mxu0 0
    %881 = vmatprep.subr.bf16.mxu0 0
    %882 = vmatpush1.bf16.xpose.msra.mxu0 0
    %883 = vmatprep.subr.bf16.mxu0 0
    %884 = vmatpush1.bf16.xpose.msra.mxu0 0
    %885 = vmatprep.subr.bf16.mxu0 0
    %886 = vmatpush1.bf16.xpose.msra.mxu0 0
    %887 = vmatprep.subr.bf16.mxu0 0
    %888 = vmatpush1.bf16.xpose.msra.mxu0 0
    %889 = vmatprep.subr.bf16.mxu0 0
    %890 = vmatpush1.bf16.xpose.msra.mxu0 0
    %891 = vmatprep.subr.bf16.mxu0 0
    %892 = vmatpush1.bf16.xpose.msra.mxu0 0
    %893 = vmatprep.mubr.bf16.mxu0 0
    %894 = vmatmul.mubr.bf16.gmra.mrb[0].mxu0 %v856
    %v895 = vpop.f32.mrb[0].mxu0
    %v896 = vadd.f32 0.0, %v895
    %v897 = vpop.f32.mrb[0].mxu0
    %v898 = vpop.f32.mrb[0].mxu0
    %v899 = vpop.f32.mrb[0].mxu0
    %900 = vdwg.mxu0
    %901 = vrot.lane.b32.xlu0 %v400, 64
    %v902 = vpop.permute.xlu0 %901
    %903 = vrot.lane.b32.xlu0 %v402, 64
    %v904 = vpop.permute.xlu0 %903
    %v906 = vsel %vm405, %v902, 0
    %v909 = vsel %vm405, %v904, 0
    %911 = vmatprep.subr.bf16.mxu0 0
    %912 = vmatpush1.bf16.xpose.msra.mxu0 %v909
    %913 = vmatprep.subr.bf16.mxu0 0
    %914 = vmatpush1.bf16.xpose.msra.mxu0 0
    %915 = vmatprep.subr.bf16.mxu0 0
    %916 = vmatpush1.bf16.xpose.msra.mxu0 0
    %917 = vmatprep.subr.bf16.mxu0 0
    %918 = vmatpush1.bf16.xpose.msra.mxu0 0
    %919 = vmatprep.subr.bf16.mxu0 0
    %920 = vmatpush1.bf16.xpose.msra.mxu0 0
    %921 = vmatprep.subr.bf16.mxu0 0
    %922 = vmatpush1.bf16.xpose.msra.mxu0 0
    %923 = vmatprep.subr.bf16.mxu0 0
    %924 = vmatpush1.bf16.xpose.msra.mxu0 0
    %925 = vmatprep.subr.bf16.mxu0 0
    %926 = vmatpush1.bf16.xpose.msra.mxu0 0
    %927 = vmatprep.subr.bf16.mxu0 0
    %928 = vmatpush1.bf16.xpose.msra.mxu0 0
    %929 = vmatprep.subr.bf16.mxu0 0
    %930 = vmatpush1.bf16.xpose.msra.mxu0 0
    %931 = vmatprep.subr.bf16.mxu0 0
    %932 = vmatpush1.bf16.xpose.msra.mxu0 0
    %933 = vmatprep.subr.bf16.mxu0 0
    %934 = vmatpush1.bf16.xpose.msra.mxu0 0
    %935 = vmatprep.subr.bf16.mxu0 0
    %936 = vmatpush1.bf16.xpose.msra.mxu0 0
    %937 = vmatprep.subr.bf16.mxu0 0
    %938 = vmatpush1.bf16.xpose.msra.mxu0 0
    %939 = vmatprep.subr.bf16.mxu0 0
    %940 = vmatpush1.bf16.xpose.msra.mxu0 0
    %941 = vmatprep.subr.bf16.mxu0 0
    %942 = vmatpush1.bf16.xpose.msra.mxu0 0
    %943 = vmatprep.mubr.bf16.mxu0 0
    %944 = vmatmul.mubr.bf16.gmra.mrb[0].mxu0 %v906
    %v945 = vpop.f32.mrb[0].mxu0
    %v946 = vadd.f32 0.0, %v945
    %v947 = vpop.f32.mrb[0].mxu0
    %v948 = vpop.f32.mrb[0].mxu0
    %v949 = vpop.f32.mrb[0].mxu0
    %950 = vdwg.mxu0
    %v951 = vsel %vm498, %v896, -inf
    %952 = vmax.xlane.f32.xlu0 %v951
    %v953 = vpop.xlane.xlu0 %952
    %v954 = vsel %vm498, %v946, -inf
    %955 = vmax.xlane.f32.xlu0 %v954
    %v956 = vpop.xlane.xlu0 %955
    %v957 = vsub.f32 %v896, %v953
    %v958 = vsub.f32 %v946, %v956
    %v959 = vmul.f32 %v957, 1.442695
    %v960 = vpow.pop %v959
    %v961 = vmul.f32 %v958, 1.442695
    %v962 = vpow.pop %v961
    %v963 = vpack.c.bf16 %v960, %v960
    %v964 = vpack.c.bf16 %v962, %v962
    %965 = vrot.lane.b32.xlu0 %v403, 64
    %v966 = vpop.permute.xlu0 %965
    %v968 = vsel %vm498, %v963, 0
    %v971 = vsel %vm516, %v966, 0
    %973 = vmatprep.subr.bf16.mxu0 0
    %974 = vmatpush1.bf16.msra.mxu0 %v971
    %975 = vmatprep.subr.bf16.mxu0 0
    %976 = vmatpush1.bf16.msra.mxu0 0
    %977 = vmatprep.subr.bf16.mxu0 0
    %978 = vmatpush1.bf16.msra.mxu0 0
    %979 = vmatprep.subr.bf16.mxu0 0
    %980 = vmatpush1.bf16.msra.mxu0 0
    %981 = vmatprep.subr.bf16.mxu0 0
    %982 = vmatpush1.bf16.msra.mxu0 0
    %983 = vmatprep.subr.bf16.mxu0 0
    %984 = vmatpush1.bf16.msra.mxu0 0
    %985 = vmatprep.subr.bf16.mxu0 0
    %986 = vmatpush1.bf16.msra.mxu0 0
    %987 = vmatprep.subr.bf16.mxu0 0
    %988 = vmatpush1.bf16.msra.mxu0 0
    %989 = vmatprep.subr.bf16.mxu0 0
    %990 = vmatpush1.bf16.msra.mxu0 0
    %991 = vmatprep.subr.bf16.mxu0 0
    %992 = vmatpush1.bf16.msra.mxu0 0
    %993 = vmatprep.subr.bf16.mxu0 0
    %994 = vmatpush1.bf16.msra.mxu0 0
    %995 = vmatprep.subr.bf16.mxu0 0
    %996 = vmatpush1.bf16.msra.mxu0 0
    %997 = vmatprep.subr.bf16.mxu0 0
    %998 = vmatpush1.bf16.msra.mxu0 0
    %999 = vmatprep.subr.bf16.mxu0 0
    %1000 = vmatpush1.bf16.msra.mxu0 0
    %1001 = vmatprep.subr.bf16.mxu0 0
    %1002 = vmatpush1.bf16.msra.mxu0 0
    %1003 = vmatprep.subr.bf16.mxu0 0
    %1004 = vmatpush1.bf16.msra.mxu0 0
    %1005 = vmatprep.mubr.bf16.mxu0 0
    %1006 = vmatmul.mubr.bf16.gmra.mrb[0].mxu0 %v968
    %v1007 = vpop.f32.mrb[0].mxu0
    %v1008 = vadd.f32 0.0, %v1007
    %v1009 = vpop.f32.mrb[0].mxu0
    %v1010 = vpop.f32.mrb[0].mxu0
    %v1011 = vpop.f32.mrb[0].mxu0
    %1012 = vdwg.mxu0
    %1013 = vrot.lane.b32.xlu0 %v404, 64
    %v1014 = vpop.permute.xlu0 %1013
    %v1016 = vsel %vm498, %v964, 0
    %v1019 = vsel %vm516, %v1014, 0
    %1021 = vmatprep.subr.bf16.mxu0 0
    %1022 = vmatpush1.bf16.msra.mxu0 %v1019
    %1023 = vmatprep.subr.bf16.mxu0 0
    %1024 = vmatpush1.bf16.msra.mxu0 0
    %1025 = vmatprep.subr.bf16.mxu0 0
    %1026 = vmatpush1.bf16.msra.mxu0 0
    %1027 = vmatprep.subr.bf16.mxu0 0
    %1028 = vmatpush1.bf16.msra.mxu0 0
    %1029 = vmatprep.subr.bf16.mxu0 0
    %1030 = vmatpush1.bf16.msra.mxu0 0
    %1031 = vmatprep.subr.bf16.mxu0 0
    %1032 = vmatpush1.bf16.msra.mxu0 0
    %1033 = vmatprep.subr.bf16.mxu0 0
    %1034 = vmatpush1.bf16.msra.mxu0 0
    %1035 = vmatprep.subr.bf16.mxu0 0
    %1036 = vmatpush1.bf16.msra.mxu0 0
    %1037 = vmatprep.subr.bf16.mxu0 0
    %1038 = vmatpush1.bf16.msra.mxu0 0
    %1039 = vmatprep.subr.bf16.mxu0 0
    %1040 = vmatpush1.bf16.msra.mxu0 0
    %1041 = vmatprep.subr.bf16.mxu0 0
    %1042 = vmatpush1.bf16.msra.mxu0 0
    %1043 = vmatprep.subr.bf16.mxu0 0
    %1044 = vmatpush1.bf16.msra.mxu0 0
    %1045 = vmatprep.subr.bf16.mxu0 0
    %1046 = vmatpush1.bf16.msra.mxu0 0
    %1047 = vmatprep.subr.bf16.mxu0 0
    %1048 = vmatpush1.bf16.msra.mxu0 0
    %1049 = vmatprep.subr.bf16.mxu0 0
    %1050 = vmatpush1.bf16.msra.mxu0 0
    %1051 = vmatprep.subr.bf16.mxu0 0
    %1052 = vmatpush1.bf16.msra.mxu0 0
    %1053 = vmatprep.mubr.bf16.mxu0 0
    %1054 = vmatmul.mubr.bf16.gmra.mrb[0].mxu0 %v1016
    %v1055 = vpop.f32.mrb[0].mxu0
    %v1056 = vadd.f32 0.0, %v1055
    %v1057 = vpop.f32.mrb[0].mxu0
    %v1058 = vpop.f32.mrb[0].mxu0
    %v1059 = vpop.f32.mrb[0].mxu0
    %1060 = vdwg.mxu0
    %v1061 = vsel %vm498, %v960, 0.0
    %1062 = vadd.xlane.f32.xlu0 %v1061
    %v1063 = vpop.xlane.xlu0 %1062
    %v1064 = vsel %vm498, %v962, 0.0
    %1065 = vadd.xlane.f32.xlu0 %v1064
    %v1066 = vpop.xlane.xlu0 %1065
    %v1067 = vrcp.pop %v1063
    %v1068 = vrcp.pop %v1066
    %v1069 = vmul.f32 %v1008, %v1067
    %v1070 = vmul.f32 %v1056, %v1068
    %v1071 = vpack.c.bf16 %v1070, %v1069
    %1073 = vrot.lane.b32.xlu0 %v1071, 64
    %v1074 = vpop.permute.xlu0 %1073
    %vm1076 = vcmask 785920
    %1077 = vst.msk [vmem:[#allocation2] sm:$0xff] %vm1076, %v1074
    %1078 = vrot.lane.b32.xlu0 %v399, 32
    %v1079 = vpop.permute.xlu0 %1078
    %1080 = vrot.lane.b32.xlu0 %v401, 32
    %v1081 = vpop.permute.xlu0 %1080
    %v1083 = vsel %vm405, %v1079, 0
    %v1086 = vsel %vm405, %v1081, 0
    %1088 = vmatprep.subr.bf16.mxu0 0
    %1089 = vmatpush1.bf16.xpose.msra.mxu0 %v1086
    %1090 = vmatprep.subr.bf16.mxu0 0
    %1091 = vmatpush1.bf16.xpose.msra.mxu0 0
    %1092 = vmatprep.subr.bf16.mxu0 0
    %1093 = vmatpush1.bf16.xpose.msra.mxu0 0
    %1094 = vmatprep.subr.bf16.mxu0 0
    %1095 = vmatpush1.bf16.xpose.msra.mxu0 0
    %1096 = vmatprep.subr.bf16.mxu0 0
    %1097 = vmatpush1.bf16.xpose.msra.mxu0 0
    %1098 = vmatprep.subr.bf16.mxu0 0
    %1099 = vmatpush1.bf16.xpose.msra.mxu0 0
    %1100 = vmatprep.subr.bf16.mxu0 0
    %1101 = vmatpush1.bf16.xpose.msra.mxu0 0
    %1102 = vmatprep.subr.bf16.mxu0 0
    %1103 = vmatpush1.bf16.xpose.msra.mxu0 0
    %1104 = vmatprep.subr.bf16.mxu0 0
    %1105 = vmatpush1.bf16.xpose.msra.mxu0 0
    %1106 = vmatprep.subr.bf16.mxu0 0
    %1107 = vmatpush1.bf16.xpose.msra.mxu0 0
    %1108 = vmatprep.subr.bf16.mxu0 0
    %1109 = vmatpush1.bf16.xpose.msra.mxu0 0
    %1110 = vmatprep.subr.bf16.mxu0 0
    %1111 = vmatpush1.bf16.xpose.msra.mxu0 0
    %1112 = vmatprep.subr.bf16.mxu0 0
    %1113 = vmatpush1.bf16.xpose.msra.mxu0 0
    %1114 = vmatprep.subr.bf16.mxu0 0
    %1115 = vmatpush1.bf16.xpose.msra.mxu0 0
    %1116 = vmatprep.subr.bf16.mxu0 0
    %1117 = vmatpush1.bf16.xpose.msra.mxu0 0
    %1118 = vmatprep.subr.bf16.mxu0 0
    %1119 = vmatpush1.bf16.xpose.msra.mxu0 0
    %1120 = vmatprep.mubr.bf16.mxu0 0
    %1121 = vmatmul.mubr.bf16.gmra.mrb[0].mxu0 %v1083
    %v1122 = vpop.f32.mrb[0].mxu0
    %v1123 = vadd.f32 0.0, %v1122
    %v1124 = vpop.f32.mrb[0].mxu0
    %v1125 = vpop.f32.mrb[0].mxu0
    %v1126 = vpop.f32.mrb[0].mxu0
    %1127 = vdwg.mxu0
    %1128 = vrot.lane.b32.xlu0 %v400, 32
    %v1129 = vpop.permute.xlu0 %1128
    %1130 = vrot.lane.b32.xlu0 %v402, 32
    %v1131 = vpop.permute.xlu0 %1130
    %v1133 = vsel %vm405, %v1129, 0
    %v1136 = vsel %vm405, %v1131, 0
    %1138 = vmatprep.subr.bf16.mxu0 0
    %1139 = vmatpush1.bf16.xpose.msra.mxu0 %v1136
    %1140 = vmatprep.subr.bf16.mxu0 0
    %1141 = vmatpush1.bf16.xpose.msra.mxu0 0
    %1142 = vmatprep.subr.bf16.mxu0 0
    %1143 = vmatpush1.bf16.xpose.msra.mxu0 0
    %1144 = vmatprep.subr.bf16.mxu0 0
    %1145 = vmatpush1.bf16.xpose.msra.mxu0 0
    %1146 = vmatprep.subr.bf16.mxu0 0
    %1147 = vmatpush1.bf16.xpose.msra.mxu0 0
    %1148 = vmatprep.subr.bf16.mxu0 0
    %1149 = vmatpush1.bf16.xpose.msra.mxu0 0
    %1150 = vmatprep.subr.bf16.mxu0 0
    %1151 = vmatpush1.bf16.xpose.msra.mxu0 0
    %1152 = vmatprep.subr.bf16.mxu0 0
    %1153 = vmatpush1.bf16.xpose.msra.mxu0 0
    %1154 = vmatprep.subr.bf16.mxu0 0
    %1155 = vmatpush1.bf16.xpose.msra.mxu0 0
    %1156 = vmatprep.subr.bf16.mxu0 0
    %1157 = vmatpush1.bf16.xpose.msra.mxu0 0
    %1158 = vmatprep.subr.bf16.mxu0 0
    %1159 = vmatpush1.bf16.xpose.msra.mxu0 0
    %1160 = vmatprep.subr.bf16.mxu0 0
    %1161 = vmatpush1.bf16.xpose.msra.mxu0 0
    %1162 = vmatprep.subr.bf16.mxu0 0
    %1163 = vmatpush1.bf16.xpose.msra.mxu0 0
    %1164 = vmatprep.subr.bf16.mxu0 0
    %1165 = vmatpush1.bf16.xpose.msra.mxu0 0
    %1166 = vmatprep.subr.bf16.mxu0 0
    %1167 = vmatpush1.bf16.xpose.msra.mxu0 0
    %1168 = vmatprep.subr.bf16.mxu0 0
    %1169 = vmatpush1.bf16.xpose.msra.mxu0 0
    %1170 = vmatprep.mubr.bf16.mxu0 0
    %1171 = vmatmul.mubr.bf16.gmra.mrb[0].mxu0 %v1133
    %v1172 = vpop.f32.mrb[0].mxu0
    %v1173 = vadd.f32 0.0, %v1172
    %v1174 = vpop.f32.mrb[0].mxu0
    %v1175 = vpop.f32.mrb[0].mxu0
    %v1176 = vpop.f32.mrb[0].mxu0
    %1177 = vdwg.mxu0
    %v1178 = vsel %vm498, %v1123, -inf
    %1179 = vmax.xlane.f32.xlu0 %v1178
    %v1180 = vpop.xlane.xlu0 %1179
    %v1181 = vsel %vm498, %v1173, -inf
    %1182 = vmax.xlane.f32.xlu0 %v1181
    %v1183 = vpop.xlane.xlu0 %1182
    %v1184 = vsub.f32 %v1123, %v1180
    %v1185 = vsub.f32 %v1173, %v1183
    %v1186 = vmul.f32 %v1184, 1.442695
    %v1187 = vpow.pop %v1186
    %v1188 = vmul.f32 %v1185, 1.442695
    %v1189 = vpow.pop %v1188
    %v1190 = vpack.c.bf16 %v1187, %v1187
    %v1191 = vpack.c.bf16 %v1189, %v1189
    %1192 = vrot.lane.b32.xlu0 %v403, 32
    %v1193 = vpop.permute.xlu0 %1192
    %v1195 = vsel %vm498, %v1190, 0
    %v1198 = vsel %vm516, %v1193, 0
    %1200 = vmatprep.subr.bf16.mxu0 0
    %1201 = vmatpush1.bf16.msra.mxu0 %v1198
    %1202 = vmatprep.subr.bf16.mxu0 0
    %1203 = vmatpush1.bf16.msra.mxu0 0
    %1204 = vmatprep.subr.bf16.mxu0 0
    %1205 = vmatpush1.bf16.msra.mxu0 0
    %1206 = vmatprep.subr.bf16.mxu0 0
    %1207 = vmatpush1.bf16.msra.mxu0 0
    %1208 = vmatprep.subr.bf16.mxu0 0
    %1209 = vmatpush1.bf16.msra.mxu0 0
    %1210 = vmatprep.subr.bf16.mxu0 0
    %1211 = vmatpush1.bf16.msra.mxu0 0
    %1212 = vmatprep.subr.bf16.mxu0 0
    %1213 = vmatpush1.bf16.msra.mxu0 0
    %1214 = vmatprep.subr.bf16.mxu0 0
    %1215 = vmatpush1.bf16.msra.mxu0 0
    %1216 = vmatprep.subr.bf16.mxu0 0
    %1217 = vmatpush1.bf16.msra.mxu0 0
    %1218 = vmatprep.subr.bf16.mxu0 0
    %1219 = vmatpush1.bf16.msra.mxu0 0
    %1220 = vmatprep.subr.bf16.mxu0 0
    %1221 = vmatpush1.bf16.msra.mxu0 0
    %1222 = vmatprep.subr.bf16.mxu0 0
    %1223 = vmatpush1.bf16.msra.mxu0 0
    %1224 = vmatprep.subr.bf16.mxu0 0
    %1225 = vmatpush1.bf16.msra.mxu0 0
    %1226 = vmatprep.subr.bf16.mxu0 0
    %1227 = vmatpush1.bf16.msra.mxu0 0
    %1228 = vmatprep.subr.bf16.mxu0 0
    %1229 = vmatpush1.bf16.msra.mxu0 0
    %1230 = vmatprep.subr.bf16.mxu0 0
    %1231 = vmatpush1.bf16.msra.mxu0 0
    %1232 = vmatprep.mubr.bf16.mxu0 0
    %1233 = vmatmul.mubr.bf16.gmra.mrb[0].mxu0 %v1195
    %v1234 = vpop.f32.mrb[0].mxu0
    %v1235 = vadd.f32 0.0, %v1234
    %v1236 = vpop.f32.mrb[0].mxu0
    %v1237 = vpop.f32.mrb[0].mxu0
    %v1238 = vpop.f32.mrb[0].mxu0
    %1239 = vdwg.mxu0
    %1240 = vrot.lane.b32.xlu0 %v404, 32
    %v1241 = vpop.permute.xlu0 %1240
    %v1243 = vsel %vm498, %v1191, 0
    %v1246 = vsel %vm516, %v1241, 0
    %1248 = vmatprep.subr.bf16.mxu0 0
    %1249 = vmatpush1.bf16.msra.mxu0 %v1246
    %1250 = vmatprep.subr.bf16.mxu0 0
    %1251 = vmatpush1.bf16.msra.mxu0 0
    %1252 = vmatprep.subr.bf16.mxu0 0
    %1253 = vmatpush1.bf16.msra.mxu0 0
    %1254 = vmatprep.subr.bf16.mxu0 0
    %1255 = vmatpush1.bf16.msra.mxu0 0
    %1256 = vmatprep.subr.bf16.mxu0 0
    %1257 = vmatpush1.bf16.msra.mxu0 0
    %1258 = vmatprep.subr.bf16.mxu0 0
    %1259 = vmatpush1.bf16.msra.mxu0 0
    %1260 = vmatprep.subr.bf16.mxu0 0
    %1261 = vmatpush1.bf16.msra.mxu0 0
    %1262 = vmatprep.subr.bf16.mxu0 0
    %1263 = vmatpush1.bf16.msra.mxu0 0
    %1264 = vmatprep.subr.bf16.mxu0 0
    %1265 = vmatpush1.bf16.msra.mxu0 0
    %1266 = vmatprep.subr.bf16.mxu0 0
    %1267 = vmatpush1.bf16.msra.mxu0 0
    %1268 = vmatprep.subr.bf16.mxu0 0
    %1269 = vmatpush1.bf16.msra.mxu0 0
    %1270 = vmatprep.subr.bf16.mxu0 0
    %1271 = vmatpush1.bf16.msra.mxu0 0
    %1272 = vmatprep.subr.bf16.mxu0 0
    %1273 = vmatpush1.bf16.msra.mxu0 0
    %1274 = vmatprep.subr.bf16.mxu0 0
    %1275 = vmatpush1.bf16.msra.mxu0 0
    %1276 = vmatprep.subr.bf16.mxu0 0
    %1277 = vmatpush1.bf16.msra.mxu0 0
    %1278 = vmatprep.subr.bf16.mxu0 0
    %1279 = vmatpush1.bf16.msra.mxu0 0
    %1280 = vmatprep.mubr.bf16.mxu0 0
    %1281 = vmatmul.mubr.bf16.gmra.mrb[0].mxu0 %v1243
    %v1282 = vpop.f32.mrb[0].mxu0
    %v1283 = vadd.f32 0.0, %v1282
    %v1284 = vpop.f32.mrb[0].mxu0
    %v1285 = vpop.f32.mrb[0].mxu0
    %v1286 = vpop.f32.mrb[0].mxu0
    %1287 = vdwg.mxu0
    %v1288 = vsel %vm498, %v1187, 0.0
    %1289 = vadd.xlane.f32.xlu0 %v1288
    %v1290 = vpop.xlane.xlu0 %1289
    %v1291 = vsel %vm498, %v1189, 0.0
    %1292 = vadd.xlane.f32.xlu0 %v1291
    %v1293 = vpop.xlane.xlu0 %1292
    %v1294 = vrcp.pop %v1290
    %v1295 = vrcp.pop %v1293
    %v1296 = vmul.f32 %v1235, %v1294
    %v1297 = vmul.f32 %v1283, %v1295
    %v1298 = vpack.c.bf16 %v1297, %v1296
    %1300 = vrot.lane.b32.xlu0 %v1298, 96
    %v1301 = vpop.permute.xlu0 %1300
    %vm1303 = vcmask 1048320
    %1304 = vst.msk [vmem:[#allocation2] sm:$0xff] %vm1303, %v1301
    %v1305 = vld [vmem:[#allocation2] sm:$0xff]
    %v1306 = vld [vmem:[#allocation8] sm:$0xf]
    %v1307 = vld [vmem:[#allocation8 + $0x4] sm:$0xf]
    %v1308 = vld [vmem:[#allocation8 + $0x8] sm:$0xf]
    %v1309 = vld [vmem:[#allocation8 + $0xc] sm:$0xf]
    %v1310 = vld [vmem:[#allocation8 + $0x10] sm:$0xf]
    %v1311 = vld [vmem:[#allocation8 + $0x14] sm:$0xf]
    %v1312 = vld [vmem:[#allocation8 + $0x18] sm:$0xf]
    %v1313 = vld [vmem:[#allocation8 + $0x1c] sm:$0xf]
    %v1314 = vld [vmem:[#allocation8 + $0x20] sm:$0xf]
    %v1315 = vld [vmem:[#allocation8 + $0x24] sm:$0xf]
    %v1316 = vld [vmem:[#allocation8 + $0x28] sm:$0xf]
    %v1317 = vld [vmem:[#allocation8 + $0x2c] sm:$0xf]
    %v1318 = vld [vmem:[#allocation8 + $0x30] sm:$0xf]
    %v1319 = vld [vmem:[#allocation8 + $0x34] sm:$0xf]
    %v1320 = vld [vmem:[#allocation8 + $0x38] sm:$0xf]
    %v1321 = vld [vmem:[#allocation8 + $0x3c] sm:$0xf]
    %v1338 = vunpack.c.l.b16 %v1306
    %v1339 = vunpack.c.l.b16 %v1307
    %v1340 = vunpack.c.l.b16 %v1308
    %v1341 = vunpack.c.l.b16 %v1309
    %v1342 = vunpack.c.l.b16 %v1310
    %v1343 = vunpack.c.l.b16 %v1311
    %v1344 = vunpack.c.l.b16 %v1312
    %v1345 = vunpack.c.l.b16 %v1313
    %v1346 = vunpack.c.l.b16 %v1314
    %v1347 = vunpack.c.l.b16 %v1315
    %v1348 = vunpack.c.l.b16 %v1316
    %v1349 = vunpack.c.l.b16 %v1317
    %v1350 = vunpack.c.l.b16 %v1318
    %v1351 = vunpack.c.l.b16 %v1319
    %v1352 = vunpack.c.l.b16 %v1320
    %v1353 = vunpack.c.l.b16 %v1321
    %v1354 = vpack.c.b16 %v1339, %v1338
    %v1355 = vpack.c.b16 %v1341, %v1340
    %v1356 = vpack.c.b16 %v1343, %v1342
    %v1357 = vpack.c.b16 %v1345, %v1344
    %v1358 = vpack.c.b16 %v1347, %v1346
    %v1359 = vpack.c.b16 %v1349, %v1348
    %v1360 = vpack.c.b16 %v1351, %v1350
    %v1361 = vpack.c.b16 %v1353, %v1352
    %1370 = vmatprep.subr.bf16.mxu0 0
    %1371 = vmatpush1.bf16.msra.mxu0 %v1354
    %1372 = vmatprep.subr.bf16.mxu0 0
    %1373 = vmatpush1.bf16.msra.mxu0 %v1355
    %1374 = vmatprep.subr.bf16.mxu0 0
    %1375 = vmatpush1.bf16.msra.mxu0 %v1356
    %1376 = vmatprep.subr.bf16.mxu0 0
    %1377 = vmatpush1.bf16.msra.mxu0 %v1357
    %1378 = vmatprep.subr.bf16.mxu0 0
    %1379 = vmatpush1.bf16.msra.mxu0 %v1358
    %1380 = vmatprep.subr.bf16.mxu0 0
    %1381 = vmatpush1.bf16.msra.mxu0 %v1359
    %1382 = vmatprep.subr.bf16.mxu0 0
    %1383 = vmatpush1.bf16.msra.mxu0 %v1360
    %1384 = vmatprep.subr.bf16.mxu0 0
    %1385 = vmatpush1.bf16.msra.mxu0 %v1361
    %1386 = vmatprep.subr.bf16.mxu0 0
    %1387 = vmatpush1.bf16.msra.mxu0 0
    %1388 = vmatprep.subr.bf16.mxu0 0
    %1389 = vmatpush1.bf16.msra.mxu0 0
    %1390 = vmatprep.subr.bf16.mxu0 0
    %1391 = vmatpush1.bf16.msra.mxu0 0
    %1392 = vmatprep.subr.bf16.mxu0 0
    %1393 = vmatpush1.bf16.msra.mxu0 0
    %1394 = vmatprep.subr.bf16.mxu0 0
    %1395 = vmatpush1.bf16.msra.mxu0 0
    %1396 = vmatprep.subr.bf16.mxu0 0
    %1397 = vmatpush1.bf16.msra.mxu0 0
    %1398 = vmatprep.subr.bf16.mxu0 0
    %1399 = vmatpush1.bf16.msra.mxu0 0
    %1400 = vmatprep.subr.bf16.mxu0 0
    %1401 = vmatpush1.bf16.msra.mxu0 0
    %1402 = vmatprep.mubr.bf16.mxu0 0
    %1403 = vmatmul.mubr.bf16.gmra.mrb[0].mxu0 %v1305
    %v1404 = vpop.f32.mrb[0].mxu0
    %v1405 = vadd.f32 0.0, %v1404
    %v1406 = vpop.f32.mrb[0].mxu0
    %v1407 = vpop.f32.mrb[0].mxu0
    %v1408 = vadd.f32 0.0, %v1407
    %v1409 = vpop.f32.mrb[0].mxu0
    %1410 = vdwg.mxu0
    %v1411 = vadd.f32 %v111, %v1405
    %v1412 = vadd.f32 %v112, %v1408
    %v1413 = vld [vmem:[%s5] sm:$0x1]
    %v1415 = vlaneseq
    %v1416 = vshrl.u32 %v1415, 7
    %v1417 = vsub.s32 0, %v1416
    %v1418 = vrot.slane %v1413, %v1417
    %v1420 = vadd.f32 %v1411, %v1418
    %v1421 = vadd.f32 %v1412, %v1418
    %v1422 = vld [vmem:[%s6] sm:$0x1]
    %v1423 = vld [vmem:[%s7] sm:$0x1]
    %1424 = vadd.xlane.f32.xlu0 %v1420
    %v1425 = vpop.xlane.xlu0 %1424
    %1426 = vadd.xlane.f32.xlu0 %v1421
    %v1427 = vpop.xlane.xlu0 %1426
    %v1428 = vmul.f32 %v1425, %v119
    %v1429 = vmul.f32 %v1427, %v119
    %v1430 = vsub.f32 %v1420, %v1428
    %v1431 = vsub.f32 %v1421, %v1429
    %v1432 = vmul.f32 %v1430, %v1430
    %v1433 = vmul.f32 %v1431, %v1431
    %1434 = vadd.xlane.f32.xlu0 %v1432
    %v1435 = vpop.xlane.xlu0 %1434
    %1436 = vadd.xlane.f32.xlu0 %v1433
    %v1437 = vpop.xlane.xlu0 %1436
    %v1438 = vmul.f32 %v1435, %v119
    %v1439 = vmul.f32 %v1437, %v119
    %v1440 = vadd.f32 %v1438, 1e-05
    %v1441 = vadd.f32 %v1439, 1e-05
    %v1442 = vrsqrt.pop %v1440
    %v1443 = vrsqrt.pop %v1441
    %v1444 = vmul.f32 %v1430, %v1442
    %v1445 = vmul.f32 %v1431, %v1443
    %v1447 = vlaneseq
    %v1448 = vshrl.u32 %v1447, 7
    %v1449 = vsub.s32 0, %v1448
    %v1450 = vrot.slane %v1422, %v1449
    %v1452 = vmul.f32 %v1444, %v1450
    %v1453 = vmul.f32 %v1445, %v1450
    %v1455 = vlaneseq
    %v1456 = vshrl.u32 %v1455, 7
    %v1457 = vsub.s32 0, %v1456
    %v1458 = vrot.slane %v1423, %v1457
    %v1460 = vadd.f32 %v1452, %v1458
    %v1461 = vadd.f32 %v1453, %v1458
    %v1462 = vpack.c.bf16 %v1461, %v1460
    %v1463 = vld [vmem:[#allocation9] sm:$0xff]
    %v1464 = vld [vmem:[#allocation9 + $0x8] sm:$0xff]
    %v1465 = vld [vmem:[#allocation9 + $0x10] sm:$0xff]
    %v1466 = vld [vmem:[#allocation9 + $0x18] sm:$0xff]
    %v1467 = vld [vmem:[#allocation9 + $0x20] sm:$0xff]
    %v1468 = vld [vmem:[#allocation9 + $0x28] sm:$0xff]
    %v1469 = vld [vmem:[#allocation9 + $0x30] sm:$0xff]
    %v1470 = vld [vmem:[#allocation9 + $0x38] sm:$0xff]
    %v1471 = vld [vmem:[#allocation9 + $0x40] sm:$0xff]
    %v1472 = vld [vmem:[#allocation9 + $0x48] sm:$0xff]
    %v1473 = vld [vmem:[#allocation9 + $0x50] sm:$0xff]
    %v1474 = vld [vmem:[#allocation9 + $0x58] sm:$0xff]
    %v1475 = vld [vmem:[#allocation9 + $0x60] sm:$0xff]
    %v1476 = vld [vmem:[#allocation9 + $0x68] sm:$0xff]
    %v1477 = vld [vmem:[#allocation9 + $0x70] sm:$0xff]
    %v1478 = vld [vmem:[#allocation9 + $0x78] sm:$0xff]
    %v1479 = vld [vmem:[#allocation9 + $0x80] sm:$0xff]
    %v1480 = vld [vmem:[#allocation9 + $0x88] sm:$0xff]
    %v1481 = vld [vmem:[#allocation9 + $0x90] sm:$0xff]
    %v1482 = vld [vmem:[#allocation9 + $0x98] sm:$0xff]
    %v1483 = vld [vmem:[#allocation9 + $0xa0] sm:$0xff]
    %v1484 = vld [vmem:[#allocation9 + $0xa8] sm:$0xff]
    %v1485 = vld [vmem:[#allocation9 + $0xb0] sm:$0xff]
    %v1486 = vld [vmem:[#allocation9 + $0xb8] sm:$0xff]
    %v1487 = vld [vmem:[#allocation9 + $0xc0] sm:$0xff]
    %v1488 = vld [vmem:[#allocation9 + $0xc8] sm:$0xff]
    %v1489 = vld [vmem:[#allocation9 + $0xd0] sm:$0xff]
    %v1490 = vld [vmem:[#allocation9 + $0xd8] sm:$0xff]
    %v1491 = vld [vmem:[#allocation9 + $0xe0] sm:$0xff]
    %v1492 = vld [vmem:[#allocation9 + $0xe8] sm:$0xff]
    %v1493 = vld [vmem:[#allocation9 + $0xf0] sm:$0xff]
    %v1494 = vld [vmem:[#allocation9 + $0xf8] sm:$0xff]
    %v1495 = vld [vmem:[%s9] sm:$0xf]
    %v1497 = vlaneseq
    %v1498 = vshrl.u32 %v1497, 7
    %v1499 = vsub.s32 0, %v1498
    %v1500 = vrot.slane %v1495, %v1499
    %v1501 = vlaneseq
    %v1502 = vshrl.u32 %v1501, 7
    %v1503 = vsub.s32 1, %v1502
    %v1504 = vrot.slane %v1495, %v1503
    %v1505 = vlaneseq
    %v1506 = vshrl.u32 %v1505, 7
    %v1507 = vsub.s32 2, %v1506
    %v1508 = vrot.slane %v1495, %v1507
    %v1509 = vlaneseq
    %v1510 = vshrl.u32 %v1509, 7
    %v1511 = vsub.s32 3, %v1510
    %v1512 = vrot.slane %v1495, %v1511
    %v1549 = vunpack.c.l.b16 %v1463
    %v1550 = vunpack.c.h.b16 %v1463
    %v1551 = vunpack.c.l.b16 %v1464
    %v1552 = vunpack.c.h.b16 %v1464
    %v1553 = vunpack.c.l.b16 %v1465
    %v1554 = vunpack.c.h.b16 %v1465
    %v1555 = vunpack.c.l.b16 %v1466
    %v1556 = vunpack.c.h.b16 %v1466
    %v1557 = vunpack.c.l.b16 %v1467
    %v1558 = vunpack.c.h.b16 %v1467
    %v1559 = vunpack.c.l.b16 %v1468
    %v1560 = vunpack.c.h.b16 %v1468
    %v1561 = vunpack.c.l.b16 %v1469
    %v1562 = vunpack.c.h.b16 %v1469
    %v1563 = vunpack.c.l.b16 %v1470
    %v1564 = vunpack.c.h.b16 %v1470
    %v1565 = vunpack.c.l.b16 %v1471
    %v1566 = vunpack.c.h.b16 %v1471
    %v1567 = vunpack.c.l.b16 %v1472
    %v1568 = vunpack.c.h.b16 %v1472
    %v1569 = vunpack.c.l.b16 %v1473
    %v1570 = vunpack.c.h.b16 %v1473
    %v1571 = vunpack.c.l.b16 %v1474
    %v1572 = vunpack.c.h.b16 %v1474
    %v1573 = vunpack.c.l.b16 %v1475
    %v1574 = vunpack.c.h.b16 %v1475
    %v1575 = vunpack.c.l.b16 %v1476
    %v1576 = vunpack.c.h.b16 %v1476
    %v1577 = vunpack.c.l.b16 %v1477
    %v1578 = vunpack.c.h.b16 %v1477
    %v1579 = vunpack.c.l.b16 %v1478
    %v1580 = vunpack.c.h.b16 %v1478
    %v1581 = vunpack.c.l.b16 %v1479
    %v1582 = vunpack.c.h.b16 %v1479
    %v1583 = vunpack.c.l.b16 %v1480
    %v1584 = vunpack.c.h.b16 %v1480
    %v1585 = vunpack.c.l.b16 %v1481
    %v1586 = vunpack.c.h.b16 %v1481
    %v1587 = vunpack.c.l.b16 %v1482
    %v1588 = vunpack.c.h.b16 %v1482
    %v1589 = vunpack.c.l.b16 %v1483
    %v1590 = vunpack.c.h.b16 %v1483
    %v1591 = vunpack.c.l.b16 %v1484
    %v1592 = vunpack.c.h.b16 %v1484
    %v1593 = vunpack.c.l.b16 %v1485
    %v1594 = vunpack.c.h.b16 %v1485
    %v1595 = vunpack.c.l.b16 %v1486
    %v1596 = vunpack.c.h.b16 %v1486
    %v1597 = vunpack.c.l.b16 %v1487
    %v1598 = vunpack.c.h.b16 %v1487
    %v1599 = vunpack.c.l.b16 %v1488
    %v1600 = vunpack.c.h.b16 %v1488
    %v1601 = vunpack.c.l.b16 %v1489
    %v1602 = vunpack.c.h.b16 %v1489
    %v1603 = vunpack.c.l.b16 %v1490
    %v1604 = vunpack.c.h.b16 %v1490
    %v1605 = vunpack.c.l.b16 %v1491
    %v1606 = vunpack.c.h.b16 %v1491
    %v1607 = vunpack.c.l.b16 %v1492
    %v1608 = vunpack.c.h.b16 %v1492
    %v1609 = vunpack.c.l.b16 %v1493
    %v1610 = vunpack.c.h.b16 %v1493
    %v1611 = vunpack.c.l.b16 %v1494
    %v1612 = vunpack.c.h.b16 %v1494
    %v1613 = vpack.c.b16 %v1553, %v1549
    %v1614 = vpack.c.b16 %v1554, %v1550
    %v1615 = vpack.c.b16 %v1555, %v1551
    %v1616 = vpack.c.b16 %v1556, %v1552
    %v1617 = vpack.c.b16 %v1561, %v1557
    %v1618 = vpack.c.b16 %v1562, %v1558
    %v1619 = vpack.c.b16 %v1563, %v1559
    %v1620 = vpack.c.b16 %v1564, %v1560
    %v1621 = vpack.c.b16 %v1569, %v1565
    %v1622 = vpack.c.b16 %v1570, %v1566
    %v1623 = vpack.c.b16 %v1571, %v1567
    %v1624 = vpack.c.b16 %v1572, %v1568
    %v1625 = vpack.c.b16 %v1577, %v1573
    %v1626 = vpack.c.b16 %v1578, %v1574
    %v1627 = vpack.c.b16 %v1579, %v1575
    %v1628 = vpack.c.b16 %v1580, %v1576
    %v1629 = vpack.c.b16 %v1585, %v1581
    %v1630 = vpack.c.b16 %v1586, %v1582
    %v1631 = vpack.c.b16 %v1587, %v1583
    %v1632 = vpack.c.b16 %v1588, %v1584
    %v1633 = vpack.c.b16 %v1593, %v1589
    %v1634 = vpack.c.b16 %v1594, %v1590
    %v1635 = vpack.c.b16 %v1595, %v1591
    %v1636 = vpack.c.b16 %v1596, %v1592
    %v1637 = vpack.c.b16 %v1601, %v1597
    %v1638 = vpack.c.b16 %v1602, %v1598
    %v1639 = vpack.c.b16 %v1603, %v1599
    %v1640 = vpack.c.b16 %v1604, %v1600
    %v1641 = vpack.c.b16 %v1609, %v1605
    %v1642 = vpack.c.b16 %v1610, %v1606
    %v1643 = vpack.c.b16 %v1611, %v1607
    %v1644 = vpack.c.b16 %v1612, %v1608
    %1677 = vmatprep.subr.bf16.mxu0 %v1614
    %1678 = vmatpush1.bf16.msra.mxu0 %v1613
    %1679 = vmatprep.subr.bf16.mxu0 %v1618
    %1680 = vmatpush1.bf16.msra.mxu0 %v1617
    %1681 = vmatprep.subr.bf16.mxu0 %v1622
    %1682 = vmatpush1.bf16.msra.mxu0 %v1621
    %1683 = vmatprep.subr.bf16.mxu0 %v1626
    %1684 = vmatpush1.bf16.msra.mxu0 %v1625
    %1685 = vmatprep.subr.bf16.mxu0 %v1630
    %1686 = vmatpush1.bf16.msra.mxu0 %v1629
    %1687 = vmatprep.subr.bf16.mxu0 %v1634
    %1688 = vmatpush1.bf16.msra.mxu0 %v1633
    %1689 = vmatprep.subr.bf16.mxu0 %v1638
    %1690 = vmatpush1.bf16.msra.mxu0 %v1637
    %1691 = vmatprep.subr.bf16.mxu0 %v1642
    %1692 = vmatpush1.bf16.msra.mxu0 %v1641
    %1693 = vmatprep.subr.bf16.mxu0 0
    %1694 = vmatpush1.bf16.msra.mxu0 0
    %1695 = vmatprep.subr.bf16.mxu0 0
    %1696 = vmatpush1.bf16.msra.mxu0 0
    %1697 = vmatprep.subr.bf16.mxu0 0
    %1698 = vmatpush1.bf16.msra.mxu0 0
    %1699 = vmatprep.subr.bf16.mxu0 0
    %1700 = vmatpush1.bf16.msra.mxu0 0
    %1701 = vmatprep.subr.bf16.mxu0 0
    %1702 = vmatpush1.bf16.msra.mxu0 0
    %1703 = vmatprep.subr.bf16.mxu0 0
    %1704 = vmatpush1.bf16.msra.mxu0 0
    %1705 = vmatprep.subr.bf16.mxu0 0
    %1706 = vmatpush1.bf16.msra.mxu0 0
    %1707 = vmatprep.subr.bf16.mxu0 0
    %1708 = vmatpush1.bf16.msra.mxu0 0
    %1709 = vmatprep.mubr.bf16.mxu0 0
    %1710 = vmatmul.mubr.bf16.gmra.mrb[0].mxu0 %v1462
    %v1711 = vpop.f32.mrb[0].mxu0
    %v1712 = vadd.f32 %v1500, %v1711
    %v1713 = vpop.f32.mrb[0].mxu0
    %v1714 = vadd.f32 %v1504, %v1713
    %v1715 = vpop.f32.mrb[0].mxu0
    %v1716 = vadd.f32 %v1500, %v1715
    %v1717 = vpop.f32.mrb[0].mxu0
    %v1718 = vadd.f32 %v1504, %v1717
    %1719 = vdwg.mxu0
    %1720 = vmatprep.subr.bf16.mxu0 %v1616
    %1721 = vmatpush1.bf16.msra.mxu0 %v1615
    %1722 = vmatprep.subr.bf16.mxu0 %v1620
    %1723 = vmatpush1.bf16.msra.mxu0 %v1619
    %1724 = vmatprep.subr.bf16.mxu0 %v1624
    %1725 = vmatpush1.bf16.msra.mxu0 %v1623
    %1726 = vmatprep.subr.bf16.mxu0 %v1628
    %1727 = vmatpush1.bf16.msra.mxu0 %v1627
    %1728 = vmatprep.subr.bf16.mxu0 %v1632
    %1729 = vmatpush1.bf16.msra.mxu0 %v1631
    %1730 = vmatprep.subr.bf16.mxu0 %v1636
    %1731 = vmatpush1.bf16.msra.mxu0 %v1635
    %1732 = vmatprep.subr.bf16.mxu0 %v1640
    %1733 = vmatpush1.bf16.msra.mxu0 %v1639
    %1734 = vmatprep.subr.bf16.mxu0 %v1644
    %1735 = vmatpush1.bf16.msra.mxu0 %v1643
    %1736 = vmatprep.subr.bf16.mxu0 0
    %1737 = vmatpush1.bf16.msra.mxu0 0
    %1738 = vmatprep.subr.bf16.mxu0 0
    %1739 = vmatpush1.bf16.msra.mxu0 0
    %1740 = vmatprep.subr.bf16.mxu0 0
    %1741 = vmatpush1.bf16.msra.mxu0 0
    %1742 = vmatprep.subr.bf16.mxu0 0
    %1743 = vmatpush1.bf16.msra.mxu0 0
    %1744 = vmatprep.subr.bf16.mxu0 0
    %1745 = vmatpush1.bf16.msra.mxu0 0
    %1746 = vmatprep.subr.bf16.mxu0 0
    %1747 = vmatpush1.bf16.msra.mxu0 0
    %1748 = vmatprep.subr.bf16.mxu0 0
    %1749 = vmatpush1.bf16.msra.mxu0 0
    %1750 = vmatprep.subr.bf16.mxu0 0
    %1751 = vmatpush1.bf16.msra.mxu0 0
    %1752 = vmatprep.mubr.bf16.mxu0 0
    %1753 = vmatmul.mubr.bf16.gmra.mrb[0].mxu0 %v1462
    %v1754 = vpop.f32.mrb[0].mxu0
    %v1755 = vadd.f32 %v1508, %v1754
    %v1756 = vpop.f32.mrb[0].mxu0
    %v1757 = vadd.f32 %v1512, %v1756
    %v1758 = vpop.f32.mrb[0].mxu0
    %v1759 = vadd.f32 %v1508, %v1758
    %v1760 = vpop.f32.mrb[0].mxu0
    %v1761 = vadd.f32 %v1512, %v1760
    %1762 = vdwg.mxu0
    %v1763 = vmul.f32 %v1712, 0.5
    %v1764 = vmul.f32 %v1714, 0.5
    %v1765 = vmul.f32 %v1755, 0.5
    %v1766 = vmul.f32 %v1757, 0.5
    %v1767 = vmul.f32 %v1716, 0.5
    %v1768 = vmul.f32 %v1718, 0.5
    %v1769 = vmul.f32 %v1759, 0.5
    %v1770 = vmul.f32 %v1761, 0.5
    %v1771 = vmul.f32 %v1712, 0.70710677
    %v1772 = vmul.f32 %v1714, 0.70710677
    %v1773 = vmul.f32 %v1755, 0.70710677
    %v1774 = vmul.f32 %v1757, 0.70710677
    %v1775 = vmul.f32 %v1716, 0.70710677
    %v1776 = vmul.f32 %v1718, 0.70710677
    %v1777 = vmul.f32 %v1759, 0.70710677
    %v1778 = vmul.f32 %v1761, 0.70710677
    %v1779 = verf.f32.pop %v1771
    %v1780 = verf.f32.pop %v1772
    %v1781 = verf.f32.pop %v1773
    %v1782 = verf.f32.pop %v1774
    %v1783 = verf.f32.pop %v1775
    %v1784 = verf.f32.pop %v1776
    %v1785 = verf.f32.pop %v1777
    %v1786 = verf.f32.pop %v1778
    %v1787 = vadd.f32 %v1779, 1.0
    %v1788 = vadd.f32 %v1780, 1.0
    %v1789 = vadd.f32 %v1781, 1.0
    %v1790 = vadd.f32 %v1782, 1.0
    %v1791 = vadd.f32 %v1783, 1.0
    %v1792 = vadd.f32 %v1784, 1.0
    %v1793 = vadd.f32 %v1785, 1.0
    %v1794 = vadd.f32 %v1786, 1.0
    %v1795 = vmul.f32 %v1763, %v1787
    %v1796 = vmul.f32 %v1764, %v1788
    %v1797 = vmul.f32 %v1765, %v1789
    %v1798 = vmul.f32 %v1766, %v1790
    %v1799 = vmul.f32 %v1767, %v1791
    %v1800 = vmul.f32 %v1768, %v1792
    %v1801 = vmul.f32 %v1769, %v1793
    %v1802 = vmul.f32 %v1770, %v1794
    %v1803 = vpack.c.bf16 %v1799, %v1795
    %v1804 = vpack.c.bf16 %v1800, %v1796
    %v1805 = vpack.c.bf16 %v1801, %v1797
    %v1806 = vpack.c.bf16 %v1802, %v1798
    %v1807 = vld [vmem:[#allocation11] sm:$0xf]
    %v1808 = vld [vmem:[#allocation11 + $0x4] sm:$0xf]
    %v1809 = vld [vmem:[#allocation11 + $0x8] sm:$0xf]
    %v1810 = vld [vmem:[#allocation11 + $0xc] sm:$0xf]
    %v1811 = vld [vmem:[#allocation11 + $0x10] sm:$0xf]
    %v1812 = vld [vmem:[#allocation11 + $0x14] sm:$0xf]
    %v1813 = vld [vmem:[#allocation11 + $0x18] sm:$0xf]
    %v1814 = vld [vmem:[#allocation11 + $0x1c] sm:$0xf]
    %v1815 = vld [vmem:[#allocation11 + $0x20] sm:$0xf]
    %v1816 = vld [vmem:[#allocation11 + $0x24] sm:$0xf]
    %v1817 = vld [vmem:[#allocation11 + $0x28] sm:$0xf]
    %v1818 = vld [vmem:[#allocation11 + $0x2c] sm:$0xf]
    %v1819 = vld [vmem:[#allocation11 + $0x30] sm:$0xf]
    %v1820 = vld [vmem:[#allocation11 + $0x34] sm:$0xf]
    %v1821 = vld [vmem:[#allocation11 + $0x38] sm:$0xf]
    %v1822 = vld [vmem:[#allocation11 + $0x3c] sm:$0xf]
    %v1823 = vld [vmem:[#allocation11 + $0x40] sm:$0xf]
    %v1824 = vld [vmem:[#allocation11 + $0x44] sm:$0xf]
    %v1825 = vld [vmem:[#allocation11 + $0x48] sm:$0xf]
    %v1826 = vld [vmem:[#allocation11 + $0x4c] sm:$0xf]
    %v1827 = vld [vmem:[#allocation11 + $0x50] sm:$0xf]
    %v1828 = vld [vmem:[#allocation11 + $0x54] sm:$0xf]
    %v1829 = vld [vmem:[#allocation11 + $0x58] sm:$0xf]
    %v1830 = vld [vmem:[#allocation11 + $0x5c] sm:$0xf]
    %v1831 = vld [vmem:[#allocation11 + $0x60] sm:$0xf]
    %v1832 = vld [vmem:[#allocation11 + $0x64] sm:$0xf]
    %v1833 = vld [vmem:[#allocation11 + $0x68] sm:$0xf]
    %v1834 = vld [vmem:[#allocation11 + $0x6c] sm:$0xf]
    %v1835 = vld [vmem:[#allocation11 + $0x70] sm:$0xf]
    %v1836 = vld [vmem:[#allocation11 + $0x74] sm:$0xf]
    %v1837 = vld [vmem:[#allocation11 + $0x78] sm:$0xf]
    %v1838 = vld [vmem:[#allocation11 + $0x7c] sm:$0xf]
    %v1839 = vld [vmem:[#allocation11 + $0x80] sm:$0xf]
    %v1840 = vld [vmem:[#allocation11 + $0x84] sm:$0xf]
    %v1841 = vld [vmem:[#allocation11 + $0x88] sm:$0xf]
    %v1842 = vld [vmem:[#allocation11 + $0x8c] sm:$0xf]
    %v1843 = vld [vmem:[#allocation11 + $0x90] sm:$0xf]
    %v1844 = vld [vmem:[#allocation11 + $0x94] sm:$0xf]
    %v1845 = vld [vmem:[#allocation11 + $0x98] sm:$0xf]
    %v1846 = vld [vmem:[#allocation11 + $0x9c] sm:$0xf]
    %v1847 = vld [vmem:[#allocation11 + $0xa0] sm:$0xf]
    %v1848 = vld [vmem:[#allocation11 + $0xa4] sm:$0xf]
    %v1849 = vld [vmem:[#allocation11 + $0xa8] sm:$0xf]
    %v1850 = vld [vmem:[#allocation11 + $0xac] sm:$0xf]
    %v1851 = vld [vmem:[#allocation11 + $0xb0] sm:$0xf]
    %v1852 = vld [vmem:[#allocation11 + $0xb4] sm:$0xf]
    %v1853 = vld [vmem:[#allocation11 + $0xb8] sm:$0xf]
    %v1854 = vld [vmem:[#allocation11 + $0xbc] sm:$0xf]
    %v1855 = vld [vmem:[#allocation11 + $0xc0] sm:$0xf]
    %v1856 = vld [vmem:[#allocation11 + $0xc4] sm:$0xf]
    %v1857 = vld [vmem:[#allocation11 + $0xc8] sm:$0xf]
    %v1858 = vld [vmem:[#allocation11 + $0xcc] sm:$0xf]
    %v1859 = vld [vmem:[#allocation11 + $0xd0] sm:$0xf]
    %v1860 = vld [vmem:[#allocation11 + $0xd4] sm:$0xf]
    %v1861 = vld [vmem:[#allocation11 + $0xd8] sm:$0xf]
    %v1862 = vld [vmem:[#allocation11 + $0xdc] sm:$0xf]
    %v1863 = vld [vmem:[#allocation11 + $0xe0] sm:$0xf]
    %v1864 = vld [vmem:[#allocation11 + $0xe4] sm:$0xf]
    %v1865 = vld [vmem:[#allocation11 + $0xe8] sm:$0xf]
    %v1866 = vld [vmem:[#allocation11 + $0xec] sm:$0xf]
    %v1867 = vld [vmem:[#allocation11 + $0xf0] sm:$0xf]
    %v1868 = vld [vmem:[#allocation11 + $0xf4] sm:$0xf]
    %v1869 = vld [vmem:[#allocation11 + $0xf8] sm:$0xf]
    %v1870 = vld [vmem:[#allocation11 + $0xfc] sm:$0xf]
    %v1871 = vld [vmem:[%s11] sm:$0x1]
    %v1873 = vlaneseq
    %v1874 = vshrl.u32 %v1873, 7
    %v1875 = vsub.s32 0, %v1874
    %v1876 = vrot.slane %v1871, %v1875
    %v1942 = vunpack.c.l.b16 %v1807
    %v1943 = vunpack.c.l.b16 %v1808
    %v1944 = vunpack.c.l.b16 %v1809
    %v1945 = vunpack.c.l.b16 %v1810
    %v1946 = vunpack.c.l.b16 %v1811
    %v1947 = vunpack.c.l.b16 %v1812
    %v1948 = vunpack.c.l.b16 %v1813
    %v1949 = vunpack.c.l.b16 %v1814
    %v1950 = vunpack.c.l.b16 %v1815
    %v1951 = vunpack.c.l.b16 %v1816
    %v1952 = vunpack.c.l.b16 %v1817
    %v1953 = vunpack.c.l.b16 %v1818
    %v1954 = vunpack.c.l.b16 %v1819
    %v1955 = vunpack.c.l.b16 %v1820
    %v1956 = vunpack.c.l.b16 %v1821
    %v1957 = vunpack.c.l.b16 %v1822
    %v1958 = vunpack.c.l.b16 %v1823
    %v1959 = vunpack.c.l.b16 %v1824
    %v1960 = vunpack.c.l.b16 %v1825
    %v1961 = vunpack.c.l.b16 %v1826
    %v1962 = vunpack.c.l.b16 %v1827
    %v1963 = vunpack.c.l.b16 %v1828
    %v1964 = vunpack.c.l.b16 %v1829
    %v1965 = vunpack.c.l.b16 %v1830
    %v1966 = vunpack.c.l.b16 %v1831
    %v1967 = vunpack.c.l.b16 %v1832
    %v1968 = vunpack.c.l.b16 %v1833
    %v1969 = vunpack.c.l.b16 %v1834
    %v1970 = vunpack.c.l.b16 %v1835
    %v1971 = vunpack.c.l.b16 %v1836
    %v1972 = vunpack.c.l.b16 %v1837
    %v1973 = vunpack.c.l.b16 %v1838
    %v1974 = vunpack.c.l.b16 %v1839
    %v1975 = vunpack.c.l.b16 %v1840
    %v1976 = vunpack.c.l.b16 %v1841
    %v1977 = vunpack.c.l.b16 %v1842
    %v1978 = vunpack.c.l.b16 %v1843
    %v1979 = vunpack.c.l.b16 %v1844
    %v1980 = vunpack.c.l.b16 %v1845
    %v1981 = vunpack.c.l.b16 %v1846
    %v1982 = vunpack.c.l.b16 %v1847
    %v1983 = vunpack.c.l.b16 %v1848
    %v1984 = vunpack.c.l.b16 %v1849
    %v1985 = vunpack.c.l.b16 %v1850
    %v1986 = vunpack.c.l.b16 %v1851
    %v1987 = vunpack.c.l.b16 %v1852
    %v1988 = vunpack.c.l.b16 %v1853
    %v1989 = vunpack.c.l.b16 %v1854
    %v1990 = vunpack.c.l.b16 %v1855
    %v1991 = vunpack.c.l.b16 %v1856
    %v1992 = vunpack.c.l.b16 %v1857
    %v1993 = vunpack.c.l.b16 %v1858
    %v1994 = vunpack.c.l.b16 %v1859
    %v1995 = vunpack.c.l.b16 %v1860
    %v1996 = vunpack.c.l.b16 %v1861
    %v1997 = vunpack.c.l.b16 %v1862
    %v1998 = vunpack.c.l.b16 %v1863
    %v1999 = vunpack.c.l.b16 %v1864
    %v2000 = vunpack.c.l.b16 %v1865
    %v2001 = vunpack.c.l.b16 %v1866
    %v2002 = vunpack.c.l.b16 %v1867
    %v2003 = vunpack.c.l.b16 %v1868
    %v2004 = vunpack.c.l.b16 %v1869
    %v2005 = vunpack.c.l.b16 %v1870
    %v2006 = vpack.c.b16 %v1943, %v1942
    %v2007 = vpack.c.b16 %v1945, %v1944
    %v2008 = vpack.c.b16 %v1947, %v1946
    %v2009 = vpack.c.b16 %v1949, %v1948
    %v2010 = vpack.c.b16 %v1951, %v1950
    %v2011 = vpack.c.b16 %v1953, %v1952
    %v2012 = vpack.c.b16 %v1955, %v1954
    %v2013 = vpack.c.b16 %v1957, %v1956
    %v2014 = vpack.c.b16 %v1959, %v1958
    %v2015 = vpack.c.b16 %v1961, %v1960
    %v2016 = vpack.c.b16 %v1963, %v1962
    %v2017 = vpack.c.b16 %v1965, %v1964
    %v2018 = vpack.c.b16 %v1967, %v1966
    %v2019 = vpack.c.b16 %v1969, %v1968
    %v2020 = vpack.c.b16 %v1971, %v1970
    %v2021 = vpack.c.b16 %v1973, %v1972
    %v2022 = vpack.c.b16 %v1975, %v1974
    %v2023 = vpack.c.b16 %v1977, %v1976
    %v2024 = vpack.c.b16 %v1979, %v1978
    %v2025 = vpack.c.b16 %v1981, %v1980
    %v2026 = vpack.c.b16 %v1983, %v1982
    %v2027 = vpack.c.b16 %v1985, %v1984
    %v2028 = vpack.c.b16 %v1987, %v1986
    %v2029 = vpack.c.b16 %v1989, %v1988
    %v2030 = vpack.c.b16 %v1991, %v1990
    %v2031 = vpack.c.b16 %v1993, %v1992
    %v2032 = vpack.c.b16 %v1995, %v1994
    %v2033 = vpack.c.b16 %v1997, %v1996
    %v2034 = vpack.c.b16 %v1999, %v1998
    %v2035 = vpack.c.b16 %v2001, %v2000
    %v2036 = vpack.c.b16 %v2003, %v2002
    %v2037 = vpack.c.b16 %v2005, %v2004
    %2070 = vmatprep.subr.bf16.mxu0 0
    %2071 = vmatpush1.bf16.msra.mxu0 %v2006
    %2072 = vmatprep.subr.bf16.mxu0 0
    %2073 = vmatpush1.bf16.msra.mxu0 %v2007
    %2074 = vmatprep.subr.bf16.mxu0 0
    %2075 = vmatpush1.bf16.msra.mxu0 %v2008
    %2076 = vmatprep.subr.bf16.mxu0 0
    %2077 = vmatpush1.bf16.msra.mxu0 %v2009
    %2078 = vmatprep.subr.bf16.mxu0 0
    %2079 = vmatpush1.bf16.msra.mxu0 %v2010
    %2080 = vmatprep.subr.bf16.mxu0 0
    %2081 = vmatpush1.bf16.msra.mxu0 %v2011
    %2082 = vmatprep.subr.bf16.mxu0 0
    %2083 = vmatpush1.bf16.msra.mxu0 %v2012
    %2084 = vmatprep.subr.bf16.mxu0 0
    %2085 = vmatpush1.bf16.msra.mxu0 %v2013
    %2086 = vmatprep.subr.bf16.mxu0 0
    %2087 = vmatpush1.bf16.msra.mxu0 %v2014
    %2088 = vmatprep.subr.bf16.mxu0 0
    %2089 = vmatpush1.bf16.msra.mxu0 %v2015
    %2090 = vmatprep.subr.bf16.mxu0 0
    %2091 = vmatpush1.bf16.msra.mxu0 %v2016
    %2092 = vmatprep.subr.bf16.mxu0 0
    %2093 = vmatpush1.bf16.msra.mxu0 %v2017
    %2094 = vmatprep.subr.bf16.mxu0 0
    %2095 = vmatpush1.bf16.msra.mxu0 %v2018
    %2096 = vmatprep.subr.bf16.mxu0 0
    %2097 = vmatpush1.bf16.msra.mxu0 %v2019
    %2098 = vmatprep.subr.bf16.mxu0 0
    %2099 = vmatpush1.bf16.msra.mxu0 %v2020
    %2100 = vmatprep.subr.bf16.mxu0 0
    %2101 = vmatpush1.bf16.msra.mxu0 %v2021
    %2102 = vmatprep.mubr.bf16.mxu0 %v1804
    %2103 = vmatmul.mubr.bf16.gmra.mrb[0].mxu0 %v1803
    %v2104 = vpop.f32.mrb[0].mxu0
    %v2105 = vadd.f32 %v1876, %v2104
    %v2106 = vpop.f32.mrb[0].mxu0
    %v2107 = vpop.f32.mrb[0].mxu0
    %v2108 = vadd.f32 %v1876, %v2107
    %v2109 = vpop.f32.mrb[0].mxu0
    %2110 = vdwg.mxu0
    %2111 = vmatprep.subr.bf16.mxu0 0
    %2112 = vmatpush1.bf16.msra.mxu0 %v2022
    %2113 = vmatprep.subr.bf16.mxu0 0
    %2114 = vmatpush1.bf16.msra.mxu0 %v2023
    %2115 = vmatprep.subr.bf16.mxu0 0
    %2116 = vmatpush1.bf16.msra.mxu0 %v2024
    %2117 = vmatprep.subr.bf16.mxu0 0
    %2118 = vmatpush1.bf16.msra.mxu0 %v2025
    %2119 = vmatprep.subr.bf16.mxu0 0
    %2120 = vmatpush1.bf16.msra.mxu0 %v2026
    %2121 = vmatprep.subr.bf16.mxu0 0
    %2122 = vmatpush1.bf16.msra.mxu0 %v2027
    %2123 = vmatprep.subr.bf16.mxu0 0
    %2124 = vmatpush1.bf16.msra.mxu0 %v2028
    %2125 = vmatprep.subr.bf16.mxu0 0
    %2126 = vmatpush1.bf16.msra.mxu0 %v2029
    %2127 = vmatprep.subr.bf16.mxu0 0
    %2128 = vmatpush1.bf16.msra.mxu0 %v2030
    %2129 = vmatprep.subr.bf16.mxu0 0
    %2130 = vmatpush1.bf16.msra.mxu0 %v2031
    %2131 = vmatprep.subr.bf16.mxu0 0
    %2132 = vmatpush1.bf16.msra.mxu0 %v2032
    %2133 = vmatprep.subr.bf16.mxu0 0
    %2134 = vmatpush1.bf16.msra.mxu0 %v2033
    %2135 = vmatprep.subr.bf16.mxu0 0
    %2136 = vmatpush1.bf16.msra.mxu0 %v2034
    %2137 = vmatprep.subr.bf16.mxu0 0
    %2138 = vmatpush1.bf16.msra.mxu0 %v2035
    %2139 = vmatprep.subr.bf16.mxu0 0
    %2140 = vmatpush1.bf16.msra.mxu0 %v2036
    %2141 = vmatprep.subr.bf16.mxu0 0
    %2142 = vmatpush1.bf16.msra.mxu0 %v2037
    %2143 = vmatprep.mubr.bf16.mxu0 %v1806
    %2144 = vmatmul.mubr.bf16.gmra.mrb[0].mxu0 %v1805
    %v2145 = vpop.f32.mrb[0].mxu0
    %v2146 = vadd.f32 %v2105, %v2145
    %v2147 = vpop.f32.mrb[0].mxu0
    %v2148 = vpop.f32.mrb[0].mxu0
    %v2149 = vadd.f32 %v2108, %v2148
    %v2150 = vpop.f32.mrb[0].mxu0
    %2151 = vdwg.mxu0
    %v2152 = vadd.f32 %v1420, %v2146
    %v2153 = vadd.f32 %v1421, %v2149
    %2154 = vst [vmem:[#allocation12] sm:$0xff] %v2152
    %2155 = vst [vmem:[#allocation12 + $0x8] sm:$0xff] %v2153
    // Predicated region
    $region70: #{tpu_custom_call.1} parent=1 // pred_check
      _
    $region71: #{tpu_custom_call.1} parent=1 // pred_check_branch
      %2157 = sbr.rel (0) target = $region73
    $region72: #{tpu_custom_call.1} parent=1 // pred_region
      %s2159 = ssub.s32 256, 256
      %2160 = vsyncadd [#allocation5], %s2159
      %s2161 = sshll.u32 [#allocation12], 4
      %s2162 = int_to_ptr.vmem [resolvable:$true] %s2161
      %2167 = dma.vmem_to_hbm [thread:$0]  %s2162, 256, %s12, [#allocation5], 128, 128, 8
    $region73: #{tpu_custom_call.1} parent=1 // pred_fallthru
      _
    // Predicated region
    $region74: #{tpu_custom_call.1} parent=1 // pred_check
      _
    $region75: #{tpu_custom_call.1} parent=1 // pred_check_branch
      %2169 = sbr.rel (0) target = $region77
    $region76: #{tpu_custom_call.1} parent=1 // pred_region
      %2170 = dma.done [#allocation5], 256
    $region77: #{tpu_custom_call.1} parent=1 // pred_fallthru
      _
    %2171 = vsyncpa [#allocation4], 1
    %2172 = vsyncpa [#allocation7], 1
    %2173 = vsyncpa [#allocation10], 1
    %2174 = vsyncpa [#allocation5], 1

// kernel: tpu_custom_call.1
$region0: #{tpu_custom_call.1}
  #allocation0 [shape = 'u32[]', space=smem, size = 0x4, offset = 0x4, fixed_abs, tag = 'smem constant byte address 0x4 - core index']
  #allocation1 [shape = 'u32[144,128]{1,0:T(1,128)}', space=vmem, size = 0x12000, scoped, tag = 'internal scratch']
  #allocation2 [shape = 'bf16[16,128]{1,0:T(16,128)(2,1)}', space=vmem, size = 0x1000, scoped, tag = 'scratch operand']
  %s0 = inlined_call_operand.hbm [shape: f32[16,128], index: 0, kind: input, shape index: {}]
  %s1 = inlined_call_operand.vmem [shape: f32[1,128], index: 1, kind: input, shape index: {}]
  %s2 = inlined_call_operand.vmem [shape: f32[1,128], index: 2, kind: input, shape index: {}]
  %s3 = inlined_call_operand.hbm [shape: bf16[128,384], index: 3, kind: input, shape index: {}]
  %s4 = inlined_call_operand.hbm [shape: bf16[128,128], index: 4, kind: input, shape index: {}]
  %s5 = inlined_call_operand.vmem [shape: f32[1,128], index: 5, kind: input, shape index: {}]
  %s6 = inlined_call_operand.vmem [shape: f32[1,128], index: 6, kind: input, shape index: {}]
  %s7 = inlined_call_operand.vmem [shape: f32[1,128], index: 7, kind: input, shape index: {}]
  %s8 = inlined_call_operand.hbm [shape: bf16[128,512], index: 8, kind: input, shape index: {}]
  %s9 = inlined_call_operand.vmem [shape: f32[1,512], index: 9, kind: input, shape index: {}]
  %s10 = inlined_call_operand.hbm [shape: bf16[512,128], index: 10, kind: input, shape index: {}]
  %s11 = inlined_call_operand.vmem [shape: f32[1,128], index: 11, kind: input, shape index: {}]
  %s12 = inlined_call_operand.hbm [shape: f32[16,128], index: 12, kind: output, shape index: {}]
  %s13 = sld [smem:[#allocation0]]
  $region78: #{tpu_custom_call.1} parent=0
    _
  %s15 = ssub.s32 1, %s13
  %s16 = scalar_select 0, %s15, %s13
  $region1: #{tpu_custom_call.1} parent=0
    #allocation3 [shape = 'u8[8192]{0}', space=vmem, size = 0x2000, scoped, tag = 'input window, operand 0, single buffered']
    #allocation4 [shape = 's32[1]{0}', space=sflag, size = 0x4, scoped, tag = 'scoped memory for tpu_custom_call.1']
    #allocation5 [shape = 's32[1]{0}', space=sflag, size = 0x4, scoped, tag = 'scoped memory for tpu_custom_call.1']
    #allocation6 [shape = 'u8[98304]{0}', space=vmem, size = 0x18000, scoped, tag = 'input window, operand 3, single buffered']
    #allocation7 [shape = 's32[1]{0}', space=sflag, size = 0x4, scoped, tag = 'scoped memory for tpu_custom_call.1']
    #allocation8 [shape = 'u8[32768]{0}', space=vmem, size = 0x8000, scoped, tag = 'input window, operand 4, single buffered']
    #allocation9 [shape = 'u8[131072]{0}', space=vmem, size = 0x20000, scoped, tag = 'input window, operand 8, single buffered']
    #allocation10 [shape = 's32[1]{0}', space=sflag, size = 0x4, scoped, tag = 'scoped memory for tpu_custom_call.1']
    #allocation11 [shape = 'u8[131072]{0}', space=vmem, size = 0x20000, scoped, tag = 'input window, operand 10, single buffered']
    #allocation12 [shape = 'u8[8192]{0}', space=vmem, size = 0x2000, scoped, tag = 'output window, operand 0, single buffered']
    %17 = vsyncpa [#allocation4], 0
    %18 = vsyncpa [#allocation7], 0
    %19 = vsyncpa [#allocation10], 0
    %20 = vsyncpa [#allocation5], 0
    // Predicated region
    $region2: #{tpu_custom_call.1} parent=1 // pred_check
      _
    $region3: #{tpu_custom_call.1} parent=1 // pred_check_branch
      %22 = sbr.rel (0) target = $region5
    $region4: #{tpu_custom_call.1} parent=1 // pred_region
      %s24 = ssub.s32 256, 256
      %25 = vsyncadd [#allocation4], %s24
      %s26 = sshll.u32 [#allocation3], 4
      %s27 = int_to_ptr.vmem [resolvable:$true] %s26
      %32 = dma.hbm_to_vmem [thread:$0]  %s0, 256, %s27, [#allocation4], 128, 128, 8
    $region5: #{tpu_custom_call.1} parent=1 // pred_fallthru
      _
    // Predicated region
    $region6: #{tpu_custom_call.1} parent=1 // pred_check
      _
    $region7: #{tpu_custom_call.1} parent=1 // pred_check_branch
      %34 = sbr.rel (0) target = $region9
    $region8: #{tpu_custom_call.1} parent=1 // pred_region
      _
    $region9: #{tpu_custom_call.1} parent=1 // pred_fallthru
      _
    // Predicated region
    $region10: #{tpu_custom_call.1} parent=1 // pred_check
      _
    $region11: #{tpu_custom_call.1} parent=1 // pred_check_branch
      %36 = sbr.rel (0) target = $region13
    $region12: #{tpu_custom_call.1} parent=1 // pred_region
      _
    $region13: #{tpu_custom_call.1} parent=1 // pred_fallthru
      _
    // Predicated region
    $region14: #{tpu_custom_call.1} parent=1 // pred_check
      _
    $region15: #{tpu_custom_call.1} parent=1 // pred_check_branch
      %38 = sbr.rel (0) target = $region17
    $region16: #{tpu_custom_call.1} parent=1 // pred_region
      %s40 = ssub.s32 3072, 3072
      %41 = vsyncadd [#allocation7], %s40
      %s42 = sshll.u32 [#allocation6], 4
      %s43 = int_to_ptr.vmem [resolvable:$true] %s42
      %48 = dma.hbm_to_vmem [thread:$0]  %s3, 3072, %s43, [#allocation7], 192, 192, 12
    $region17: #{tpu_custom_call.1} parent=1 // pred_fallthru
      _
    // Predicated region
    $region18: #{tpu_custom_call.1} parent=1 // pred_check
      _
    $region19: #{tpu_custom_call.1} parent=1 // pred_check_branch
      %50 = sbr.rel (0) target = $region21
    $region20: #{tpu_custom_call.1} parent=1 // pred_region
      %s52 = ssub.s32 1024, 1024
      %53 = vsyncadd [#allocation7], %s52
      %s54 = sshll.u32 [#allocation8], 4
      %s55 = int_to_ptr.vmem [resolvable:$true] %s54
      %60 = dma.hbm_to_vmem [thread:$0]  %s4, 1024, %s55, [#allocation7], 64, 64, 4
    $region21: #{tpu_custom_call.1} parent=1 // pred_fallthru
      _
    // Predicated region
    $region22: #{tpu_custom_call.1} parent=1 // pred_check
      _
    $region23: #{tpu_custom_call.1} parent=1 // pred_check_branch
      %62 = sbr.rel (0) target = $region25
    $region24: #{tpu_custom_call.1} parent=1 // pred_region
      _
    $region25: #{tpu_custom_call.1} parent=1 // pred_fallthru
      _
    // Predicated region
    $region26: #{tpu_custom_call.1} parent=1 // pred_check
      _
    $region27: #{tpu_custom_call.1} parent=1 // pred_check_branch
      %64 = sbr.rel (0) target = $region29
    $region28: #{tpu_custom_call.1} parent=1 // pred_region
      _
    $region29: #{tpu_custom_call.1} parent=1 // pred_fallthru
      _
    // Predicated region
    $region30: #{tpu_custom_call.1} parent=1 // pred_check
      _
    $region31: #{tpu_custom_call.1} parent=1 // pred_check_branch
      %66 = sbr.rel (0) target = $region33
    $region32: #{tpu_custom_call.1} parent=1 // pred_region
      _
    $region33: #{tpu_custom_call.1} parent=1 // pred_fallthru
      _
    // Predicated region
    $region34: #{tpu_custom_call.1} parent=1 // pred_check
      _
    $region35: #{tpu_custom_call.1} parent=1 // pred_check_branch
      %68 = sbr.rel (0) target = $region37
    $region36: #{tpu_custom_call.1} parent=1 // pred_region
      %s70 = ssub.s32 4096, 4096
      %71 = vsyncadd [#allocation10], %s70
      %s72 = sshll.u32 [#allocation9], 4
      %s73 = int_to_ptr.vmem [resolvable:$true] %s72
      %78 = dma.hbm_to_vmem [thread:$0]  %s8, 4096, %s73, [#allocation10], 256, 256, 16
    $region37: #{tpu_custom_call.1} parent=1 // pred_fallthru
      _
    // Predicated region
    $region38: #{tpu_custom_call.1} parent=1 // pred_check
      _
    $region39: #{tpu_custom_call.1} parent=1 // pred_check_branch
      %80 = sbr.rel (0) target = $region41
    $region40: #{tpu_custom_call.1} parent=1 // pred_region
      _
    $region41: #{tpu_custom_call.1} parent=1 // pred_fallthru
      _
    // Predicated region
    $region42: #{tpu_custom_call.1} parent=1 // pred_check
      _
    $region43: #{tpu_custom_call.1} parent=1 // pred_check_branch
      %82 = sbr.rel (0) target = $region45
    $region44: #{tpu_custom_call.1} parent=1 // pred_region
      %s84 = ssub.s32 4096, 4096
      %85 = vsyncadd [#allocation10], %s84
      %s86 = sshll.u32 [#allocation11], 4
      %s87 = int_to_ptr.vmem [resolvable:$true] %s86
      %92 = dma.hbm_to_vmem [thread:$0]  %s10, 4096, %s87, [#allocation10], 64, 64, 4
    $region45: #{tpu_custom_call.1} parent=1 // pred_fallthru
      _
    // Predicated region
    $region46: #{tpu_custom_call.1} parent=1 // pred_check
      _
    $region47: #{tpu_custom_call.1} parent=1 // pred_check_branch
      %94 = sbr.rel (0) target = $region49
    $region48: #{tpu_custom_call.1} parent=1 // pred_region
      _
    $region49: #{tpu_custom_call.1} parent=1 // pred_fallthru
      _
    // Predicated region
    $region50: #{tpu_custom_call.1} parent=1 // pred_check
      _
    $region51: #{tpu_custom_call.1} parent=1 // pred_check_branch
      %96 = sbr.rel (0) target = $region53
    $region52: #{tpu_custom_call.1} parent=1 // pred_region
      %97 = dma.done [#allocation4], 256
    $region53: #{tpu_custom_call.1} parent=1 // pred_fallthru
      _
    // Predicated region
    $region54: #{tpu_custom_call.1} parent=1 // pred_check
      _
    $region55: #{tpu_custom_call.1} parent=1 // pred_check_branch
      %99 = sbr.rel (0) target = $region57
    $region56: #{tpu_custom_call.1} parent=1 // pred_region
      %100 = dma.done [#allocation7], 3072
    $region57: #{tpu_custom_call.1} parent=1 // pred_fallthru
      _
    // Predicated region
    $region58: #{tpu_custom_call.1} parent=1 // pred_check
      _
    $region59: #{tpu_custom_call.1} parent=1 // pred_check_branch
      %102 = sbr.rel (0) target = $region61
    $region60: #{tpu_custom_call.1} parent=1 // pred_region
      %103 = dma.done [#allocation7], 1024
    $region61: #{tpu_custom_call.1} parent=1 // pred_fallthru
      _
    // Predicated region
    $region62: #{tpu_custom_call.1} parent=1 // pred_check
      _
    $region63: #{tpu_custom_call.1} parent=1 // pred_check_branch
      %105 = sbr.rel (0) target = $region65
    $region64: #{tpu_custom_call.1} parent=1 // pred_region
      %106 = dma.done [#allocation10], 4096
    $region65: #{tpu_custom_call.1} parent=1 // pred_fallthru
      _
    // Predicated region
    $region66: #{tpu_custom_call.1} parent=1 // pred_check
      _
    $region67: #{tpu_custom_call.1} parent=1 // pred_check_branch
      %108 = sbr.rel (0) target = $region69
    $region68: #{tpu_custom_call.1} parent=1 // pred_region
      %109 = dma.done [#allocation10], 4096
    $region69: #{tpu_custom_call.1} parent=1 // pred_fallthru
      _
    %v111 = vld [vmem:[#allocation3] sm:$0xff]
    %v112 = vld [vmem:[#allocation3 + $0x8] sm:$0xff]
    %v113 = vld [vmem:[%s1] sm:$0x1]
    %v114 = vld [vmem:[%s2] sm:$0x1]
    %115 = vadd.xlane.f32.xlu0 %v111
    %v116 = vpop.xlane.xlu0 %115
    %117 = vadd.xlane.f32.xlu0 %v112
    %v118 = vpop.xlane.xlu0 %117
    %v119 = vrcp.pop 128.0
    %v120 = vmul.f32 %v116, %v119
    %v121 = vmul.f32 %v118, %v119
    %v122 = vsub.f32 %v111, %v120
    %v123 = vsub.f32 %v112, %v121
    %v124 = vmul.f32 %v122, %v122
    %v125 = vmul.f32 %v123, %v123
    %126 = vadd.xlane.f32.xlu0 %v124
    %v127 = vpop.xlane.xlu0 %126
    %128 = vadd.xlane.f32.xlu0 %v125
    %v129 = vpop.xlane.xlu0 %128
    %v130 = vmul.f32 %v127, %v119
    %v131 = vmul.f32 %v129, %v119
    %v132 = vadd.f32 %v130, 1e-05
    %v133 = vadd.f32 %v131, 1e-05
    %v134 = vrsqrt.pop %v132
    %v135 = vrsqrt.pop %v133
    %v136 = vmul.f32 %v122, %v134
    %v137 = vmul.f32 %v123, %v135
    %v139 = vlaneseq
    %v140 = vshrl.u32 %v139, 7
    %v141 = vsub.s32 0, %v140
    %v142 = vrot.slane %v113, %v141
    %v144 = vmul.f32 %v136, %v142
    %v145 = vmul.f32 %v137, %v142
    %v147 = vlaneseq
    %v148 = vshrl.u32 %v147, 7
    %v149 = vsub.s32 0, %v148
    %v150 = vrot.slane %v114, %v149
    %v152 = vadd.f32 %v144, %v150
    %v153 = vadd.f32 %v145, %v150
    %v154 = vpack.c.bf16 %v153, %v152
    %v155 = vld [vmem:[#allocation6] sm:$0xff]
    %v156 = vld [vmem:[#allocation6 + $0x8] sm:$0xf]
    %v157 = vld [vmem:[#allocation6 + $0xc] sm:$0xff]
    %v158 = vld [vmem:[#allocation6 + $0x14] sm:$0xf]
    %v159 = vld [vmem:[#allocation6 + $0x18] sm:$0xff]
    %v160 = vld [vmem:[#allocation6 + $0x20] sm:$0xf]
    %v161 = vld [vmem:[#allocation6 + $0x24] sm:$0xff]
    %v162 = vld [vmem:[#allocation6 + $0x2c] sm:$0xf]
    %v163 = vld [vmem:[#allocation6 + $0x30] sm:$0xff]
    %v164 = vld [vmem:[#allocation6 + $0x38] sm:$0xf]
    %v165 = vld [vmem:[#allocation6 + $0x3c] sm:$0xff]
    %v166 = vld [vmem:[#allocation6 + $0x44] sm:$0xf]
    %v167 = vld [vmem:[#allocation6 + $0x48] sm:$0xff]
    %v168 = vld [vmem:[#allocation6 + $0x50] sm:$0xf]
    %v169 = vld [vmem:[#allocation6 + $0x54] sm:$0xff]
    %v170 = vld [vmem:[#allocation6 + $0x5c] sm:$0xf]
    %v171 = vld [vmem:[#allocation6 + $0x60] sm:$0xff]
    %v172 = vld [vmem:[#allocation6 + $0x68] sm:$0xf]
    %v173 = vld [vmem:[#allocation6 + $0x6c] sm:$0xff]
    %v174 = vld [vmem:[#allocation6 + $0x74] sm:$0xf]
    %v175 = vld [vmem:[#allocation6 + $0x78] sm:$0xff]
    %v176 = vld [vmem:[#allocation6 + $0x80] sm:$0xf]
    %v177 = vld [vmem:[#allocation6 + $0x84] sm:$0xff]
    %v178 = vld [vmem:[#allocation6 + $0x8c] sm:$0xf]
    %v179 = vld [vmem:[#allocation6 + $0x90] sm:$0xff]
    %v180 = vld [vmem:[#allocation6 + $0x98] sm:$0xf]
    %v181 = vld [vmem:[#allocation6 + $0x9c] sm:$0xff]
    %v182 = vld [vmem:[#allocation6 + $0xa4] sm:$0xf]
    %v183 = vld [vmem:[#allocation6 + $0xa8] sm:$0xff]
    %v184 = vld [vmem:[#allocation6 + $0xb0] sm:$0xf]
    %v185 = vld [vmem:[#allocation6 + $0xb4] sm:$0xff]
    %v186 = vld [vmem:[#allocation6 + $0xbc] sm:$0xf]
    %v219 = vunpack.c.l.b16 %v155
    %v220 = vunpack.c.h.b16 %v155
    %v221 = vunpack.c.l.b16 %v156
    %v222 = vunpack.c.l.b16 %v157
    %v223 = vunpack.c.h.b16 %v157
    %v224 = vunpack.c.l.b16 %v158
    %v225 = vunpack.c.l.b16 %v159
    %v226 = vunpack.c.h.b16 %v159
    %v227 = vunpack.c.l.b16 %v160
    %v228 = vunpack.c.l.b16 %v161
    %v229 = vunpack.c.h.b16 %v161
    %v230 = vunpack.c.l.b16 %v162
    %v231 = vunpack.c.l.b16 %v163
    %v232 = vunpack.c.h.b16 %v163
    %v233 = vunpack.c.l.b16 %v164
    %v234 = vunpack.c.l.b16 %v165
    %v235 = vunpack.c.h.b16 %v165
    %v236 = vunpack.c.l.b16 %v166
    %v237 = vunpack.c.l.b16 %v167
    %v238 = vunpack.c.h.b16 %v167
    %v239 = vunpack.c.l.b16 %v168
    %v240 = vunpack.c.l.b16 %v169
    %v241 = vunpack.c.h.b16 %v169
    %v242 = vunpack.c.l.b16 %v170
    %v243 = vunpack.c.l.b16 %v171
    %v244 = vunpack.c.h.b16 %v171
    %v245 = vunpack.c.l.b16 %v172
    %v246 = vunpack.c.l.b16 %v173
    %v247 = vunpack.c.h.b16 %v173
    %v248 = vunpack.c.l.b16 %v174
    %v249 = vunpack.c.l.b16 %v175
    %v250 = vunpack.c.h.b16 %v175
    %v251 = vunpack.c.l.b16 %v176
    %v252 = vunpack.c.l.b16 %v177
    %v253 = vunpack.c.h.b16 %v177
    %v254 = vunpack.c.l.b16 %v178
    %v255 = vunpack.c.l.b16 %v179
    %v256 = vunpack.c.h.b16 %v179
    %v257 = vunpack.c.l.b16 %v180
    %v258 = vunpack.c.l.b16 %v181
    %v259 = vunpack.c.h.b16 %v181
    %v260 = vunpack.c.l.b16 %v182
    %v261 = vunpack.c.l.b16 %v183
    %v262 = vunpack.c.h.b16 %v183
    %v263 = vunpack.c.l.b16 %v184
    %v264 = vunpack.c.l.b16 %v185
    %v265 = vunpack.c.h.b16 %v185
    %v266 = vunpack.c.l.b16 %v186
    %v267 = vpack.c.b16 %v222, %v219
    %v268 = vpack.c.b16 %v223, %v220
    %v269 = vpack.c.b16 %v224, %v221
    %v270 = vpack.c.b16 %v228, %v225
    %v271 = vpack.c.b16 %v229, %v226
    %v272 = vpack.c.b16 %v230, %v227
    %v273 = vpack.c.b16 %v234, %v231
    %v274 = vpack.c.b16 %v235, %v232
    %v275 = vpack.c.b16 %v236, %v233
    %v276 = vpack.c.b16 %v240, %v237
    %v277 = vpack.c.b16 %v241, %v238
    %v278 = vpack.c.b16 %v242, %v239
    %v279 = vpack.c.b16 %v246, %v243
    %v280 = vpack.c.b16 %v247, %v244
    %v281 = vpack.c.b16 %v248, %v245
    %v282 = vpack.c.b16 %v252, %v249
    %v283 = vpack.c.b16 %v253, %v250
    %v284 = vpack.c.b16 %v254, %v251
    %v285 = vpack.c.b16 %v258, %v255
    %v286 = vpack.c.b16 %v259, %v256
    %v287 = vpack.c.b16 %v260, %v257
    %v288 = vpack.c.b16 %v264, %v261
    %v289 = vpack.c.b16 %v265, %v262
    %v290 = vpack.c.b16 %v266, %v263
    %315 = vmatprep.subr.bf16.mxu0 %v268
    %316 = vmatpush1.bf16.msra.mxu0 %v267
    %317 = vmatprep.subr.bf16.mxu0 %v271
    %318 = vmatpush1.bf16.msra.mxu0 %v270
    %319 = vmatprep.subr.bf16.mxu0 %v274
    %320 = vmatpush1.bf16.msra.mxu0 %v273
    %321 = vmatprep.subr.bf16.mxu0 %v277
    %322 = vmatpush1.bf16.msra.mxu0 %v276
    %323 = vmatprep.subr.bf16.mxu0 %v280
    %324 = vmatpush1.bf16.msra.mxu0 %v279
    %325 = vmatprep.subr.bf16.mxu0 %v283
    %326 = vmatpush1.bf16.msra.mxu0 %v282
    %327 = vmatprep.subr.bf16.mxu0 %v286
    %328 = vmatpush1.bf16.msra.mxu0 %v285
    %329 = vmatprep.subr.bf16.mxu0 %v289
    %330 = vmatpush1.bf16.msra.mxu0 %v288
    %331 = vmatprep.subr.bf16.mxu0 0
    %332 = vmatpush1.bf16.msra.mxu0 0
    %333 = vmatprep.subr.bf16.mxu0 0
    %334 = vmatpush1.bf16.msra.mxu0 0
    %335 = vmatprep.subr.bf16.mxu0 0
    %336 = vmatpush1.bf16.msra.mxu0 0
    %337 = vmatprep.subr.bf16.mxu0 0
    %338 = vmatpush1.bf16.msra.mxu0 0
    %339 = vmatprep.subr.bf16.mxu0 0
    %340 = vmatpush1.bf16.msra.mxu0 0
    %341 = vmatprep.subr.bf16.mxu0 0
    %342 = vmatpush1.bf16.msra.mxu0 0
    %343 = vmatprep.subr.bf16.mxu0 0
    %344 = vmatpush1.bf16.msra.mxu0 0
    %345 = vmatprep.subr.bf16.mxu0 0
    %346 = vmatpush1.bf16.msra.mxu0 0
    %347 = vmatprep.mubr.bf16.mxu0 0
    %348 = vmatmul.mubr.bf16.gmra.mrb[0].mxu0 %v154
    %v349 = vpop.f32.mrb[0].mxu0
    %v350 = vadd.f32 0.0, %v349
    %v351 = vpop.f32.mrb[0].mxu0
    %v352 = vadd.f32 0.0, %v351
    %v353 = vpop.f32.mrb[0].mxu0
    %v354 = vadd.f32 0.0, %v353
    %v355 = vpop.f32.mrb[0].mxu0
    %v356 = vadd.f32 0.0, %v355
    %357 = vdwg.mxu0
    %358 = vmatprep.subr.bf16.mxu0 0
    %359 = vmatpush1.bf16.msra.mxu0 %v269
    %360 = vmatprep.subr.bf16.mxu0 0
    %361 = vmatpush1.bf16.msra.mxu0 %v272
    %362 = vmatprep.subr.bf16.mxu0 0
    %363 = vmatpush1.bf16.msra.mxu0 %v275
    %364 = vmatprep.subr.bf16.mxu0 0
    %365 = vmatpush1.bf16.msra.mxu0 %v278
    %366 = vmatprep.subr.bf16.mxu0 0
    %367 = vmatpush1.bf16.msra.mxu0 %v281
    %368 = vmatprep.subr.bf16.mxu0 0
    %369 = vmatpush1.bf16.msra.mxu0 %v284
    %370 = vmatprep.subr.bf16.mxu0 0
    %371 = vmatpush1.bf16.msra.mxu0 %v287
    %372 = vmatprep.subr.bf16.mxu0 0
    %373 = vmatpush1.bf16.msra.mxu0 %v290
    %374 = vmatprep.subr.bf16.mxu0 0
    %375 = vmatpush1.bf16.msra.mxu0 0
    %376 = vmatprep.subr.bf16.mxu0 0
    %377 = vmatpush1.bf16.msra.mxu0 0
    %378 = vmatprep.subr.bf16.mxu0 0
    %379 = vmatpush1.bf16.msra.mxu0 0
    %380 = vmatprep.subr.bf16.mxu0 0
    %381 = vmatpush1.bf16.msra.mxu0 0
    %382 = vmatprep.subr.bf16.mxu0 0
    %383 = vmatpush1.bf16.msra.mxu0 0
    %384 = vmatprep.subr.bf16.mxu0 0
    %385 = vmatpush1.bf16.msra.mxu0 0
    %386 = vmatprep.subr.bf16.mxu0 0
    %387 = vmatpush1.bf16.msra.mxu0 0
    %388 = vmatprep.subr.bf16.mxu0 0
    %389 = vmatpush1.bf16.msra.mxu0 0
    %390 = vmatprep.mubr.bf16.mxu0 0
    %391 = vmatmul.mubr.bf16.gmra.mrb[0].mxu0 %v154
    %v392 = vpop.f32.mrb[0].mxu0
    %v393 = vadd.f32 0.0, %v392
    %v394 = vpop.f32.mrb[0].mxu0
    %v395 = vpop.f32.mrb[0].mxu0
    %v396 = vadd.f32 0.0, %v395
    %v397 = vpop.f32.mrb[0].mxu0
    %398 = vdwg.mxu0
    %v399 = vpack.c.bf16 %v350, %v350
    %v400 = vpack.c.bf16 %v354, %v354
    %v401 = vpack.c.bf16 %v352, %v352
    %v402 = vpack.c.bf16 %v356, %v356
    %v403 = vpack.c.bf16 %v393, %v393
    %v404 = vpack.c.bf16 %v396, %v396
    %vm405 = vcmask 261120
    %v407 = vsel %vm405, %v399, 0
    %v410 = vsel %vm405, %v401, 0
    %412 = vmatprep.subr.bf16.mxu0 0
    %413 = vmatpush1.bf16.xpose.msra.mxu0 %v410
    %414 = vmatprep.subr.bf16.mxu0 0
    %415 = vmatpush1.bf16.xpose.msra.mxu0 0
    %416 = vmatprep.subr.bf16.mxu0 0
    %417 = vmatpush1.bf16.xpose.msra.mxu0 0
    %418 = vmatprep.subr.bf16.mxu0 0
    %419 = vmatpush1.bf16.xpose.msra.mxu0 0
    %420 = vmatprep.subr.bf16.mxu0 0
    %421 = vmatpush1.bf16.xpose.msra.mxu0 0
    %422 = vmatprep.subr.bf16.mxu0 0
    %423 = vmatpush1.bf16.xpose.msra.mxu0 0
    %424 = vmatprep.subr.bf16.mxu0 0
    %425 = vmatpush1.bf16.xpose.msra.mxu0 0
    %426 = vmatprep.subr.bf16.mxu0 0
    %427 = vmatpush1.bf16.xpose.msra.mxu0 0
    %428 = vmatprep.subr.bf16.mxu0 0
    %429 = vmatpush1.bf16.xpose.msra.mxu0 0
    %430 = vmatprep.subr.bf16.mxu0 0
    %431 = vmatpush1.bf16.xpose.msra.mxu0 0
    %432 = vmatprep.subr.bf16.mxu0 0
    %433 = vmatpush1.bf16.xpose.msra.mxu0 0
    %434 = vmatprep.subr.bf16.mxu0 0
    %435 = vmatpush1.bf16.xpose.msra.mxu0 0
    %436 = vmatprep.subr.bf16.mxu0 0
    %437 = vmatpush1.bf16.xpose.msra.mxu0 0
    %438 = vmatprep.subr.bf16.mxu0 0
    %439 = vmatpush1.bf16.xpose.msra.mxu0 0
    %440 = vmatprep.subr.bf16.mxu0 0
    %441 = vmatpush1.bf16.xpose.msra.mxu0 0
    %442 = vmatprep.subr.bf16.mxu0 0
    %443 = vmatpush1.bf16.xpose.msra.mxu0 0
    %444 = vmatprep.mubr.bf16.mxu0 0
    %445 = vmatmul.mubr.bf16.gmra.mrb[0].mxu0 %v407
    %v446 = vpop.f32.mrb[0].mxu0
    %v447 = vadd.f32 0.0, %v446
    %v448 = vpop.f32.mrb[0].mxu0
    %v449 = vpop.f32.mrb[0].mxu0
    %v450 = vpop.f32.mrb[0].mxu0
    %451 = vdwg.mxu0
    %v453 = vsel %vm405, %v400, 0
    %v456 = vsel %vm405, %v402, 0
    %458 = vmatprep.subr.bf16.mxu0 0
    %459 = vmatpush1.bf16.xpose.msra.mxu0 %v456
    %460 = vmatprep.subr.bf16.mxu0 0
    %461 = vmatpush1.bf16.xpose.msra.mxu0 0
    %462 = vmatprep.subr.bf16.mxu0 0
    %463 = vmatpush1.bf16.xpose.msra.mxu0 0
    %464 = vmatprep.subr.bf16.mxu0 0
    %465 = vmatpush1.bf16.xpose.msra.mxu0 0
    %466 = vmatprep.subr.bf16.mxu0 0
    %467 = vmatpush1.bf16.xpose.msra.mxu0 0
    %468 = vmatprep.subr.bf16.mxu0 0
    %469 = vmatpush1.bf16.xpose.msra.mxu0 0
    %470 = vmatprep.subr.bf16.mxu0 0
    %471 = vmatpush1.bf16.xpose.msra.mxu0 0
    %472 = vmatprep.subr.bf16.mxu0 0
    %473 = vmatpush1.bf16.xpose.msra.mxu0 0
    %474 = vmatprep.subr.bf16.mxu0 0
    %475 = vmatpush1.bf16.xpose.msra.mxu0 0
    %476 = vmatprep.subr.bf16.mxu0 0
    %477 = vmatpush1.bf16.xpose.msra.mxu0 0
    %478 = vmatprep.subr.bf16.mxu0 0
    %479 = vmatpush1.bf16.xpose.msra.mxu0 0
    %480 = vmatprep.subr.bf16.mxu0 0
    %481 = vmatpush1.bf16.xpose.msra.mxu0 0
    %482 = vmatprep.subr.bf16.mxu0 0
    %483 = vmatpush1.bf16.xpose.msra.mxu0 0
    %484 = vmatprep.subr.bf16.mxu0 0
    %485 = vmatpush1.bf16.xpose.msra.mxu0 0
    %486 = vmatprep.subr.bf16.mxu0 0
    %487 = vmatpush1.bf16.xpose.msra.mxu0 0
    %488 = vmatprep.subr.bf16.mxu0 0
    %489 = vmatpush1.bf16.xpose.msra.mxu0 0
    %490 = vmatprep.mubr.bf16.mxu0 0
    %491 = vmatmul.mubr.bf16.gmra.mrb[0].mxu0 %v453
    %v492 = vpop.f32.mrb[0].mxu0
    %v493 = vadd.f32 0.0, %v492
    %v494 = vpop.f32.mrb[0].mxu0
    %v495 = vpop.f32.mrb[0].mxu0
    %v496 = vpop.f32.mrb[0].mxu0
    %497 = vdwg.mxu0
    %vm498 = vcmask 64512
    %v499 = vsel %vm498, %v447, -inf
    %500 = vmax.xlane.f32.xlu0 %v499
    %v501 = vpop.xlane.xlu0 %500
    %v502 = vsel %vm498, %v493, -inf
    %503 = vmax.xlane.f32.xlu0 %v502
    %v504 = vpop.xlane.xlu0 %503
    %v505 = vsub.f32 %v447, %v501
    %v506 = vsub.f32 %v493, %v504
    %v507 = vmul.f32 %v505, 1.442695
    %v508 = vpow.pop %v507
    %v509 = vmul.f32 %v506, 1.442695
    %v510 = vpow.pop %v509
    %v511 = vpack.c.bf16 %v508, %v508
    %v512 = vpack.c.bf16 %v510, %v510
    %v514 = vsel %vm498, %v511, 0
    %vm516 = vcmask 1043456
    %v518 = vsel %vm516, %v403, 0
    %520 = vmatprep.subr.bf16.mxu0 0
    %521 = vmatpush1.bf16.msra.mxu0 %v518
    %522 = vmatprep.subr.bf16.mxu0 0
    %523 = vmatpush1.bf16.msra.mxu0 0
    %524 = vmatprep.subr.bf16.mxu0 0
    %525 = vmatpush1.bf16.msra.mxu0 0
    %526 = vmatprep.subr.bf16.mxu0 0
    %527 = vmatpush1.bf16.msra.mxu0 0
    %528 = vmatprep.subr.bf16.mxu0 0
    %529 = vmatpush1.bf16.msra.mxu0 0
    %530 = vmatprep.subr.bf16.mxu0 0
    %531 = vmatpush1.bf16.msra.mxu0 0
    %532 = vmatprep.subr.bf16.mxu0 0
    %533 = vmatpush1.bf16.msra.mxu0 0
    %534 = vmatprep.subr.bf16.mxu0 0
    %535 = vmatpush1.bf16.msra.mxu0 0
    %536 = vmatprep.subr.bf16.mxu0 0
    %537 = vmatpush1.bf16.msra.mxu0 0
    %538 = vmatprep.subr.bf16.mxu0 0
    %539 = vmatpush1.bf16.msra.mxu0 0
    %540 = vmatprep.subr.bf16.mxu0 0
    %541 = vmatpush1.bf16.msra.mxu0 0
    %542 = vmatprep.subr.bf16.mxu0 0
    %543 = vmatpush1.bf16.msra.mxu0 0
    %544 = vmatprep.subr.bf16.mxu0 0
    %545 = vmatpush1.bf16.msra.mxu0 0
    %546 = vmatprep.subr.bf16.mxu0 0
    %547 = vmatpush1.bf16.msra.mxu0 0
    %548 = vmatprep.subr.bf16.mxu0 0
    %549 = vmatpush1.bf16.msra.mxu0 0
    %550 = vmatprep.subr.bf16.mxu0 0
    %551 = vmatpush1.bf16.msra.mxu0 0
    %552 = vmatprep.mubr.bf16.mxu0 0
    %553 = vmatmul.mubr.bf16.gmra.mrb[0].mxu0 %v514
    %v554 = vpop.f32.mrb[0].mxu0
    %v555 = vadd.f32 0.0, %v554
    %v556 = vpop.f32.mrb[0].mxu0
    %v557 = vpop.f32.mrb[0].mxu0
    %v558 = vpop.f32.mrb[0].mxu0
    %559 = vdwg.mxu0
    %v561 = vsel %vm498, %v512, 0
    %v564 = vsel %vm516, %v404, 0
    %566 = vmatprep.subr.bf16.mxu0 0
    %567 = vmatpush1.bf16.msra.mxu0 %v564
    %568 = vmatprep.subr.bf16.mxu0 0
    %569 = vmatpush1.bf16.msra.mxu0 0
    %570 = vmatprep.subr.bf16.mxu0 0
    %571 = vmatpush1.bf16.msra.mxu0 0
    %572 = vmatprep.subr.bf16.mxu0 0
    %573 = vmatpush1.bf16.msra.mxu0 0
    %574 = vmatprep.subr.bf16.mxu0 0
    %575 = vmatpush1.bf16.msra.mxu0 0
    %576 = vmatprep.subr.bf16.mxu0 0
    %577 = vmatpush1.bf16.msra.mxu0 0
    %578 = vmatprep.subr.bf16.mxu0 0
    %579 = vmatpush1.bf16.msra.mxu0 0
    %580 = vmatprep.subr.bf16.mxu0 0
    %581 = vmatpush1.bf16.msra.mxu0 0
    %582 = vmatprep.subr.bf16.mxu0 0
    %583 = vmatpush1.bf16.msra.mxu0 0
    %584 = vmatprep.subr.bf16.mxu0 0
    %585 = vmatpush1.bf16.msra.mxu0 0
    %586 = vmatprep.subr.bf16.mxu0 0
    %587 = vmatpush1.bf16.msra.mxu0 0
    %588 = vmatprep.subr.bf16.mxu0 0
    %589 = vmatpush1.bf16.msra.mxu0 0
    %590 = vmatprep.subr.bf16.mxu0 0
    %591 = vmatpush1.bf16.msra.mxu0 0
    %592 = vmatprep.subr.bf16.mxu0 0
    %593 = vmatpush1.bf16.msra.mxu0 0
    %594 = vmatprep.subr.bf16.mxu0 0
    %595 = vmatpush1.bf16.msra.mxu0 0
    %596 = vmatprep.subr.bf16.mxu0 0
    %597 = vmatpush1.bf16.msra.mxu0 0
    %598 = vmatprep.mubr.bf16.mxu0 0
    %599 = vmatmul.mubr.bf16.gmra.mrb[0].mxu0 %v561
    %v600 = vpop.f32.mrb[0].mxu0
    %v601 = vadd.f32 0.0, %v600
    %v602 = vpop.f32.mrb[0].mxu0
    %v603 = vpop.f32.mrb[0].mxu0
    %v604 = vpop.f32.mrb[0].mxu0
    %605 = vdwg.mxu0
    %v606 = vsel %vm498, %v508, 0.0
    %607 = vadd.xlane.f32.xlu0 %v606
    %v608 = vpop.xlane.xlu0 %607
    %v609 = vsel %vm498, %v510, 0.0
    %610 = vadd.xlane.f32.xlu0 %v609
    %v611 = vpop.xlane.xlu0 %610
    %v612 = vrcp.pop %v608
    %v613 = vrcp.pop %v611
    %v614 = vmul.f32 %v555, %v612
    %v615 = vmul.f32 %v601, %v613
    %v616 = vpack.c.bf16 %v615, %v614
    %617 = vst.msk [vmem:[#allocation2] sm:$0xff] %vm405, %v616
    %619 = vrot.lane.b32.xlu0 %v399, 96
    %v620 = vpop.permute.xlu0 %619
    %622 = vrot.lane.b32.xlu0 %v401, 96
    %v623 = vpop.permute.xlu0 %622
    %v625 = vsel %vm405, %v620, 0
    %v628 = vsel %vm405, %v623, 0
    %630 = vmatprep.subr.bf16.mxu0 0
    %631 = vmatpush1.bf16.xpose.msra.mxu0 %v628
    %632 = vmatprep.subr.bf16.mxu0 0
    %633 = vmatpush1.bf16.xpose.msra.mxu0 0
    %634 = vmatprep.subr.bf16.mxu0 0
    %635 = vmatpush1.bf16.xpose.msra.mxu0 0
    %636 = vmatprep.subr.bf16.mxu0 0
    %637 = vmatpush1.bf16.xpose.msra.mxu0 0
    %638 = vmatprep.subr.bf16.mxu0 0
    %639 = vmatpush1.bf16.xpose.msra.mxu0 0
    %640 = vmatprep.subr.bf16.mxu0 0
    %641 = vmatpush1.bf16.xpose.msra.mxu0 0
    %642 = vmatprep.subr.bf16.mxu0 0
    %643 = vmatpush1.bf16.xpose.msra.mxu0 0
    %644 = vmatprep.subr.bf16.mxu0 0
    %645 = vmatpush1.bf16.xpose.msra.mxu0 0
    %646 = vmatprep.subr.bf16.mxu0 0
    %647 = vmatpush1.bf16.xpose.msra.mxu0 0
    %648 = vmatprep.subr.bf16.mxu0 0
    %649 = vmatpush1.bf16.xpose.msra.mxu0 0
    %650 = vmatprep.subr.bf16.mxu0 0
    %651 = vmatpush1.bf16.xpose.msra.mxu0 0
    %652 = vmatprep.subr.bf16.mxu0 0
    %653 = vmatpush1.bf16.xpose.msra.mxu0 0
    %654 = vmatprep.subr.bf16.mxu0 0
    %655 = vmatpush1.bf16.xpose.msra.mxu0 0
    %656 = vmatprep.subr.bf16.mxu0 0
    %657 = vmatpush1.bf16.xpose.msra.mxu0 0
    %658 = vmatprep.subr.bf16.mxu0 0
    %659 = vmatpush1.bf16.xpose.msra.mxu0 0
    %660 = vmatprep.subr.bf16.mxu0 0
    %661 = vmatpush1.bf16.xpose.msra.mxu0 0
    %662 = vmatprep.mubr.bf16.mxu0 0
    %663 = vmatmul.mubr.bf16.gmra.mrb[0].mxu0 %v625
    %v664 = vpop.f32.mrb[0].mxu0
    %v665 = vadd.f32 0.0, %v664
    %v666 = vpop.f32.mrb[0].mxu0
    %v667 = vpop.f32.mrb[0].mxu0
    %v668 = vpop.f32.mrb[0].mxu0
    %669 = vdwg.mxu0
    %671 = vrot.lane.b32.xlu0 %v400, 96
    %v672 = vpop.permute.xlu0 %671
    %674 = vrot.lane.b32.xlu0 %v402, 96
    %v675 = vpop.permute.xlu0 %674
    %v677 = vsel %vm405, %v672, 0
    %v680 = vsel %vm405, %v675, 0
    %682 = vmatprep.subr.bf16.mxu0 0
    %683 = vmatpush1.bf16.xpose.msra.mxu0 %v680
    %684 = vmatprep.subr.bf16.mxu0 0
    %685 = vmatpush1.bf16.xpose.msra.mxu0 0
    %686 = vmatprep.subr.bf16.mxu0 0
    %687 = vmatpush1.bf16.xpose.msra.mxu0 0
    %688 = vmatprep.subr.bf16.mxu0 0
    %689 = vmatpush1.bf16.xpose.msra.mxu0 0
    %690 = vmatprep.subr.bf16.mxu0 0
    %691 = vmatpush1.bf16.xpose.msra.mxu0 0
    %692 = vmatprep.subr.bf16.mxu0 0
    %693 = vmatpush1.bf16.xpose.msra.mxu0 0
    %694 = vmatprep.subr.bf16.mxu0 0
    %695 = vmatpush1.bf16.xpose.msra.mxu0 0
    %696 = vmatprep.subr.bf16.mxu0 0
    %697 = vmatpush1.bf16.xpose.msra.mxu0 0
    %698 = vmatprep.subr.bf16.mxu0 0
    %699 = vmatpush1.bf16.xpose.msra.mxu0 0
    %700 = vmatprep.subr.bf16.mxu0 0
    %701 = vmatpush1.bf16.xpose.msra.mxu0 0
    %702 = vmatprep.subr.bf16.mxu0 0
    %703 = vmatpush1.bf16.xpose.msra.mxu0 0
    %704 = vmatprep.subr.bf16.mxu0 0
    %705 = vmatpush1.bf16.xpose.msra.mxu0 0
    %706 = vmatprep.subr.bf16.mxu0 0
    %707 = vmatpush1.bf16.xpose.msra.mxu0 0
    %708 = vmatprep.subr.bf16.mxu0 0
    %709 = vmatpush1.bf16.xpose.msra.mxu0 0
    %710 = vmatprep.subr.bf16.mxu0 0
    %711 = vmatpush1.bf16.xpose.msra.mxu0 0
    %712 = vmatprep.subr.bf16.mxu0 0
    %713 = vmatpush1.bf16.xpose.msra.mxu0 0
    %714 = vmatprep.mubr.bf16.mxu0 0
    %715 = vmatmul.mubr.bf16.gmra.mrb[0].mxu0 %v677
    %v716 = vpop.f32.mrb[0].mxu0
    %v717 = vadd.f32 0.0, %v716
    %v718 = vpop.f32.mrb[0].mxu0
    %v719 = vpop.f32.mrb[0].mxu0
    %v720 = vpop.f32.mrb[0].mxu0
    %721 = vdwg.mxu0
    %v722 = vsel %vm498, %v665, -inf
    %723 = vmax.xlane.f32.xlu0 %v722
    %v724 = vpop.xlane.xlu0 %723
    %v725 = vsel %vm498, %v717, -inf
    %726 = vmax.xlane.f32.xlu0 %v725
    %v727 = vpop.xlane.xlu0 %726
    %v728 = vsub.f32 %v665, %v724
    %v729 = vsub.f32 %v717, %v727
    %v730 = vmul.f32 %v728, 1.442695
    %v731 = vpow.pop %v730
    %v732 = vmul.f32 %v729, 1.442695
    %v733 = vpow.pop %v732
    %v734 = vpack.c.bf16 %v731, %v731
    %v735 = vpack.c.bf16 %v733, %v733
    %737 = vrot.lane.b32.xlu0 %v403, 96
    %v738 = vpop.permute.xlu0 %737
    %v740 = vsel %vm498, %v734, 0
    %v743 = vsel %vm516, %v738, 0
    %745 = vmatprep.subr.bf16.mxu0 0
    %746 = vmatpush1.bf16.msra.mxu0 %v743
    %747 = vmatprep.subr.bf16.mxu0 0
    %748 = vmatpush1.bf16.msra.mxu0 0
    %749 = vmatprep.subr.bf16.mxu0 0
    %750 = vmatpush1.bf16.msra.mxu0 0
    %751 = vmatprep.subr.bf16.mxu0 0
    %752 = vmatpush1.bf16.msra.mxu0 0
    %753 = vmatprep.subr.bf16.mxu0 0
    %754 = vmatpush1.bf16.msra.mxu0 0
    %755 = vmatprep.subr.bf16.mxu0 0
    %756 = vmatpush1.bf16.msra.mxu0 0
    %757 = vmatprep.subr.bf16.mxu0 0
    %758 = vmatpush1.bf16.msra.mxu0 0
    %759 = vmatprep.subr.bf16.mxu0 0
    %760 = vmatpush1.bf16.msra.mxu0 0
    %761 = vmatprep.subr.bf16.mxu0 0
    %762 = vmatpush1.bf16.msra.mxu0 0
    %763 = vmatprep.subr.bf16.mxu0 0
    %764 = vmatpush1.bf16.msra.mxu0 0
    %765 = vmatprep.subr.bf16.mxu0 0
    %766 = vmatpush1.bf16.msra.mxu0 0
    %767 = vmatprep.subr.bf16.mxu0 0
    %768 = vmatpush1.bf16.msra.mxu0 0
    %769 = vmatprep.subr.bf16.mxu0 0
    %770 = vmatpush1.bf16.msra.mxu0 0
    %771 = vmatprep.subr.bf16.mxu0 0
    %772 = vmatpush1.bf16.msra.mxu0 0
    %773 = vmatprep.subr.bf16.mxu0 0
    %774 = vmatpush1.bf16.msra.mxu0 0
    %775 = vmatprep.subr.bf16.mxu0 0
    %776 = vmatpush1.bf16.msra.mxu0 0
    %777 = vmatprep.mubr.bf16.mxu0 0
    %778 = vmatmul.mubr.bf16.gmra.mrb[0].mxu0 %v740
    %v779 = vpop.f32.mrb[0].mxu0
    %v780 = vadd.f32 0.0, %v779
    %v781 = vpop.f32.mrb[0].mxu0
    %v782 = vpop.f32.mrb[0].mxu0
    %v783 = vpop.f32.mrb[0].mxu0
    %784 = vdwg.mxu0
    %786 = vrot.lane.b32.xlu0 %v404, 96
    %v787 = vpop.permute.xlu0 %786
    %v789 = vsel %vm498, %v735, 0
    %v792 = vsel %vm516, %v787, 0
    %794 = vmatprep.subr.bf16.mxu0 0
    %795 = vmatpush1.bf16.msra.mxu0 %v792
    %796 = vmatprep.subr.bf16.mxu0 0
    %797 = vmatpush1.bf16.msra.mxu0 0
    %798 = vmatprep.subr.bf16.mxu0 0
    %799 = vmatpush1.bf16.msra.mxu0 0
    %800 = vmatprep.subr.bf16.mxu0 0
    %801 = vmatpush1.bf16.msra.mxu0 0
    %802 = vmatprep.subr.bf16.mxu0 0
    %803 = vmatpush1.bf16.msra.mxu0 0
    %804 = vmatprep.subr.bf16.mxu0 0
    %805 = vmatpush1.bf16.msra.mxu0 0
    %806 = vmatprep.subr.bf16.mxu0 0
    %807 = vmatpush1.bf16.msra.mxu0 0
    %808 = vmatprep.subr.bf16.mxu0 0
    %809 = vmatpush1.bf16.msra.mxu0 0
    %810 = vmatprep.subr.bf16.mxu0 0
    %811 = vmatpush1.bf16.msra.mxu0 0
    %812 = vmatprep.subr.bf16.mxu0 0
    %813 = vmatpush1.bf16.msra.mxu0 0
    %814 = vmatprep.subr.bf16.mxu0 0
    %815 = vmatpush1.bf16.msra.mxu0 0
    %816 = vmatprep.subr.bf16.mxu0 0
    %817 = vmatpush1.bf16.msra.mxu0 0
    %818 = vmatprep.subr.bf16.mxu0 0
    %819 = vmatpush1.bf16.msra.mxu0 0
    %820 = vmatprep.subr.bf16.mxu0 0
    %821 = vmatpush1.bf16.msra.mxu0 0
    %822 = vmatprep.subr.bf16.mxu0 0
    %823 = vmatpush1.bf16.msra.mxu0 0
    %824 = vmatprep.subr.bf16.mxu0 0
    %825 = vmatpush1.bf16.msra.mxu0 0
    %826 = vmatprep.mubr.bf16.mxu0 0
    %827 = vmatmul.mubr.bf16.gmra.mrb[0].mxu0 %v789
    %v828 = vpop.f32.mrb[0].mxu0
    %v829 = vadd.f32 0.0, %v828
    %v830 = vpop.f32.mrb[0].mxu0
    %v831 = vpop.f32.mrb[0].mxu0
    %v832 = vpop.f32.mrb[0].mxu0
    %833 = vdwg.mxu0
    %v834 = vsel %vm498, %v731, 0.0
    %835 = vadd.xlane.f32.xlu0 %v834
    %v836 = vpop.xlane.xlu0 %835
    %v837 = vsel %vm498, %v733, 0.0
    %838 = vadd.xlane.f32.xlu0 %v837
    %v839 = vpop.xlane.xlu0 %838
    %v840 = vrcp.pop %v836
    %v841 = vrcp.pop %v839
    %v842 = vmul.f32 %v780, %v840
    %v843 = vmul.f32 %v829, %v841
    %v844 = vpack.c.bf16 %v843, %v842
    %846 = vrot.lane.b32.xlu0 %v844, 32
    %v847 = vpop.permute.xlu0 %846
    %vm849 = vcmask 523520
    %850 = vst.msk [vmem:[#allocation2] sm:$0xff] %vm849, %v847
    %851 = vrot.lane.b32.xlu0 %v399, 64
    %v852 = vpop.permute.xlu0 %851
    %853 = vrot.lane.b32.xlu0 %v401, 64
    %v854 = vpop.permute.xlu0 %853
    %v856 = vsel %vm405, %v852, 0
    %v859 = vsel %vm405, %v854, 0
    %861 = vmatprep.subr.bf16.mxu0 0
    %862 = vmatpush1.bf16.xpose.msra.mxu0 %v859
    %863 = vmatprep.subr.bf16.mxu0 0
    %864 = vmatpush1.bf16.xpose.msra.mxu0 0
    %865 = vmatprep.subr.bf16.mxu0 0
    %866 = vmatpush1.bf16.xpose.msra.mxu0 0
    %867 = vmatprep.subr.bf16.mxu0 0
    %868 = vmatpush1.bf16.xpose.msra.mxu0 0
    %869 = vmatprep.subr.bf16.mxu0 0
    %870 = vmatpush1.bf16.xpose.msra.mxu0 0
    %871 = vmatprep.subr.bf16.mxu0 0
    %872 = vmatpush1.bf16.xpose.msra.mxu0 0
    %873 = vmatprep.subr.bf16.mxu0 0
    %874 = vmatpush1.bf16.xpose.msra.mxu0 0
    %875 = vmatprep.subr.bf16.mxu0 0
    %876 = vmatpush1.bf16.xpose.msra.mxu0 0
    %877 = vmatprep.subr.bf16.mxu0 0
    %878 = vmatpush1.bf16.xpose.msra.mxu0 0
    %879 = vmatprep.subr.bf16.mxu0 0
    %880 = vmatpush1.bf16.xpose.msra.mxu0 0
    %881 = vmatprep.subr.bf16.mxu0 0
    %882 = vmatpush1.bf16.xpose.msra.mxu0 0
    %883 = vmatprep.subr.bf16.mxu0 0
    %884 = vmatpush1.bf16.xpose.msra.mxu0 0
    %885 = vmatprep.subr.bf16.mxu0 0
    %886 = vmatpush1.bf16.xpose.msra.mxu0 0
    %887 = vmatprep.subr.bf16.mxu0 0
    %888 = vmatpush1.bf16.xpose.msra.mxu0 0
    %889 = vmatprep.subr.bf16.mxu0 0
    %890 = vmatpush1.bf16.xpose.msra.mxu0 0
    %891 = vmatprep.subr.bf16.mxu0 0
    %892 = vmatpush1.bf16.xpose.msra.mxu0 0
    %893 = vmatprep.mubr.bf16.mxu0 0
    %894 = vmatmul.mubr.bf16.gmra.mrb[0].mxu0 %v856
    %v895 = vpop.f32.mrb[0].mxu0
    %v896 = vadd.f32 0.0, %v895
    %v897 = vpop.f32.mrb[0].mxu0
    %v898 = vpop.f32.mrb[0].mxu0
    %v899 = vpop.f32.mrb[0].mxu0
    %900 = vdwg.mxu0
    %901 = vrot.lane.b32.xlu0 %v400, 64
    %v902 = vpop.permute.xlu0 %901
    %903 = vrot.lane.b32.xlu0 %v402, 64
    %v904 = vpop.permute.xlu0 %903
    %v906 = vsel %vm405, %v902, 0
    %v909 = vsel %vm405, %v904, 0
    %911 = vmatprep.subr.bf16.mxu0 0
    %912 = vmatpush1.bf16.xpose.msra.mxu0 %v909
    %913 = vmatprep.subr.bf16.mxu0 0
    %914 = vmatpush1.bf16.xpose.msra.mxu0 0
    %915 = vmatprep.subr.bf16.mxu0 0
    %916 = vmatpush1.bf16.xpose.msra.mxu0 0
    %917 = vmatprep.subr.bf16.mxu0 0
    %918 = vmatpush1.bf16.xpose.msra.mxu0 0
    %919 = vmatprep.subr.bf16.mxu0 0
    %920 = vmatpush1.bf16.xpose.msra.mxu0 0
    %921 = vmatprep.subr.bf16.mxu0 0
    %922 = vmatpush1.bf16.xpose.msra.mxu0 0
    %923 = vmatprep.subr.bf16.mxu0 0
    %924 = vmatpush1.bf16.xpose.msra.mxu0 0
    %925 = vmatprep.subr.bf16.mxu0 0
    %926 = vmatpush1.bf16.xpose.msra.mxu0 0
    %927 = vmatprep.subr.bf16.mxu0 0
    %928 = vmatpush1.bf16.xpose.msra.mxu0 0
    %929 = vmatprep.subr.bf16.mxu0 0
    %930 = vmatpush1.bf16.xpose.msra.mxu0 0
    %931 = vmatprep.subr.bf16.mxu0 0
    %932 = vmatpush1.bf16.xpose.msra.mxu0 0
    %933 = vmatprep.subr.bf16.mxu0 0
    %934 = vmatpush1.bf16.xpose.msra.mxu0 0
    %935 = vmatprep.subr.bf16.mxu0 0
    %936 = vmatpush1.bf16.xpose.msra.mxu0 0
    %937 = vmatprep.subr.bf16.mxu0 0
    %938 = vmatpush1.bf16.xpose.msra.mxu0 0
    %939 = vmatprep.subr.bf16.mxu0 0
    %940 = vmatpush1.bf16.xpose.msra.mxu0 0
    %941 = vmatprep.subr.bf16.mxu0 0
    %942 = vmatpush1.bf16.xpose.msra.mxu0 0
    %943 = vmatprep.mubr.bf16.mxu0 0
    %944 = vmatmul.mubr.bf16.gmra.mrb[0].mxu0 %v906
    %v945 = vpop.f32.mrb[0].mxu0
    %v946 = vadd.f32 0.0, %v945
    %v947 = vpop.f32.mrb[0].mxu0
    %v948 = vpop.f32.mrb[0].mxu0
    %v949 = vpop.f32.mrb[0].mxu0
    %950 = vdwg.mxu0
    %v951 = vsel %vm498, %v896, -inf
    %952 = vmax.xlane.f32.xlu0 %v951
    %v953 = vpop.xlane.xlu0 %952
    %v954 = vsel %vm498, %v946, -inf
    %955 = vmax.xlane.f32.xlu0 %v954
    %v956 = vpop.xlane.xlu0 %955
    %v957 = vsub.f32 %v896, %v953
    %v958 = vsub.f32 %v946, %v956
    %v959 = vmul.f32 %v957, 1.442695
    %v960 = vpow.pop %v959
    %v961 = vmul.f32 %v958, 1.442695
    %v962 = vpow.pop %v961
    %v963 = vpack.c.bf16 %v960, %v960
    %v964 = vpack.c.bf16 %v962, %v962
    %965 = vrot.lane.b32.xlu0 %v403, 64
    %v966 = vpop.permute.xlu0 %965
    %v968 = vsel %vm498, %v963, 0
    %v971 = vsel %vm516, %v966, 0
    %973 = vmatprep.subr.bf16.mxu0 0
    %974 = vmatpush1.bf16.msra.mxu0 %v971
    %975 = vmatprep.subr.bf16.mxu0 0
    %976 = vmatpush1.bf16.msra.mxu0 0
    %977 = vmatprep.subr.bf16.mxu0 0
    %978 = vmatpush1.bf16.msra.mxu0 0
    %979 = vmatprep.subr.bf16.mxu0 0
    %980 = vmatpush1.bf16.msra.mxu0 0
    %981 = vmatprep.subr.bf16.mxu0 0
    %982 = vmatpush1.bf16.msra.mxu0 0
    %983 = vmatprep.subr.bf16.mxu0 0
    %984 = vmatpush1.bf16.msra.mxu0 0
    %985 = vmatprep.subr.bf16.mxu0 0
    %986 = vmatpush1.bf16.msra.mxu0 0
    %987 = vmatprep.subr.bf16.mxu0 0
    %988 = vmatpush1.bf16.msra.mxu0 0
    %989 = vmatprep.subr.bf16.mxu0 0
    %990 = vmatpush1.bf16.msra.mxu0 0
    %991 = vmatprep.subr.bf16.mxu0 0
    %992 = vmatpush1.bf16.msra.mxu0 0
    %993 = vmatprep.subr.bf16.mxu0 0
    %994 = vmatpush1.bf16.msra.mxu0 0
    %995 = vmatprep.subr.bf16.mxu0 0
    %996 = vmatpush1.bf16.msra.mxu0 0
    %997 = vmatprep.subr.bf16.mxu0 0
    %998 = vmatpush1.bf16.msra.mxu0 0
    %999 = vmatprep.subr.bf16.mxu0 0
    %1000 = vmatpush1.bf16.msra.mxu0 0
    %1001 = vmatprep.subr.bf16.mxu0 0
    %1002 = vmatpush1.bf16.msra.mxu0 0
    %1003 = vmatprep.subr.bf16.mxu0 0
    %1004 = vmatpush1.bf16.msra.mxu0 0
    %1005 = vmatprep.mubr.bf16.mxu0 0
    %1006 = vmatmul.mubr.bf16.gmra.mrb[0].mxu0 %v968
    %v1007 = vpop.f32.mrb[0].mxu0
    %v1008 = vadd.f32 0.0, %v1007
    %v1009 = vpop.f32.mrb[0].mxu0
    %v1010 = vpop.f32.mrb[0].mxu0
    %v1011 = vpop.f32.mrb[0].mxu0
    %1012 = vdwg.mxu0
    %1013 = vrot.lane.b32.xlu0 %v404, 64
    %v1014 = vpop.permute.xlu0 %1013
    %v1016 = vsel %vm498, %v964, 0
    %v1019 = vsel %vm516, %v1014, 0
    %1021 = vmatprep.subr.bf16.mxu0 0
    %1022 = vmatpush1.bf16.msra.mxu0 %v1019
    %1023 = vmatprep.subr.bf16.mxu0 0
    %1024 = vmatpush1.bf16.msra.mxu0 0
    %1025 = vmatprep.subr.bf16.mxu0 0
    %1026 = vmatpush1.bf16.msra.mxu0 0
    %1027 = vmatprep.subr.bf16.mxu0 0
    %1028 = vmatpush1.bf16.msra.mxu0 0
    %1029 = vmatprep.subr.bf16.mxu0 0
    %1030 = vmatpush1.bf16.msra.mxu0 0
    %1031 = vmatprep.subr.bf16.mxu0 0
    %1032 = vmatpush1.bf16.msra.mxu0 0
    %1033 = vmatprep.subr.bf16.mxu0 0
    %1034 = vmatpush1.bf16.msra.mxu0 0
    %1035 = vmatprep.subr.bf16.mxu0 0
    %1036 = vmatpush1.bf16.msra.mxu0 0
    %1037 = vmatprep.subr.bf16.mxu0 0
    %1038 = vmatpush1.bf16.msra.mxu0 0
    %1039 = vmatprep.subr.bf16.mxu0 0
    %1040 = vmatpush1.bf16.msra.mxu0 0
    %1041 = vmatprep.subr.bf16.mxu0 0
    %1042 = vmatpush1.bf16.msra.mxu0 0
    %1043 = vmatprep.subr.bf16.mxu0 0
    %1044 = vmatpush1.bf16.msra.mxu0 0
    %1045 = vmatprep.subr.bf16.mxu0 0
    %1046 = vmatpush1.bf16.msra.mxu0 0
    %1047 = vmatprep.subr.bf16.mxu0 0
    %1048 = vmatpush1.bf16.msra.mxu0 0
    %1049 = vmatprep.subr.bf16.mxu0 0
    %1050 = vmatpush1.bf16.msra.mxu0 0
    %1051 = vmatprep.subr.bf16.mxu0 0
    %1052 = vmatpush1.bf16.msra.mxu0 0
    %1053 = vmatprep.mubr.bf16.mxu0 0
    %1054 = vmatmul.mubr.bf16.gmra.mrb[0].mxu0 %v1016
    %v1055 = vpop.f32.mrb[0].mxu0
    %v1056 = vadd.f32 0.0, %v1055
    %v1057 = vpop.f32.mrb[0].mxu0
    %v1058 = vpop.f32.mrb[0].mxu0
    %v1059 = vpop.f32.mrb[0].mxu0
    %1060 = vdwg.mxu0
    %v1061 = vsel %vm498, %v960, 0.0
    %1062 = vadd.xlane.f32.xlu0 %v1061
    %v1063 = vpop.xlane.xlu0 %1062
    %v1064 = vsel %vm498, %v962, 0.0
    %1065 = vadd.xlane.f32.xlu0 %v1064
    %v1066 = vpop.xlane.xlu0 %1065
    %v1067 = vrcp.pop %v1063
    %v1068 = vrcp.pop %v1066
    %v1069 = vmul.f32 %v1008, %v1067
    %v1070 = vmul.f32 %v1056, %v1068
    %v1071 = vpack.c.bf16 %v1070, %v1069
    %1073 = vrot.lane.b32.xlu0 %v1071, 64
    %v1074 = vpop.permute.xlu0 %1073
    %vm1076 = vcmask 785920
    %1077 = vst.msk [vmem:[#allocation2] sm:$0xff] %vm1076, %v1074
    %1078 = vrot.lane.b32.xlu0 %v399, 32
    %v1079 = vpop.permute.xlu0 %1078
    %1080 = vrot.lane.b32.xlu0 %v401, 32
    %v1081 = vpop.permute.xlu0 %1080
    %v1083 = vsel %vm405, %v1079, 0
    %v1086 = vsel %vm405, %v1081, 0
    %1088 = vmatprep.subr.bf16.mxu0 0
    %1089 = vmatpush1.bf16.xpose.msra.mxu0 %v1086
    %1090 = vmatprep.subr.bf16.mxu0 0
    %1091 = vmatpush1.bf16.xpose.msra.mxu0 0
    %1092 = vmatprep.subr.bf16.mxu0 0
    %1093 = vmatpush1.bf16.xpose.msra.mxu0 0
    %1094 = vmatprep.subr.bf16.mxu0 0
    %1095 = vmatpush1.bf16.xpose.msra.mxu0 0
    %1096 = vmatprep.subr.bf16.mxu0 0
    %1097 = vmatpush1.bf16.xpose.msra.mxu0 0
    %1098 = vmatprep.subr.bf16.mxu0 0
    %1099 = vmatpush1.bf16.xpose.msra.mxu0 0
    %1100 = vmatprep.subr.bf16.mxu0 0
    %1101 = vmatpush1.bf16.xpose.msra.mxu0 0
    %1102 = vmatprep.subr.bf16.mxu0 0
    %1103 = vmatpush1.bf16.xpose.msra.mxu0 0
    %1104 = vmatprep.subr.bf16.mxu0 0
    %1105 = vmatpush1.bf16.xpose.msra.mxu0 0
    %1106 = vmatprep.subr.bf16.mxu0 0
    %1107 = vmatpush1.bf16.xpose.msra.mxu0 0
    %1108 = vmatprep.subr.bf16.mxu0 0
    %1109 = vmatpush1.bf16.xpose.msra.mxu0 0
    %1110 = vmatprep.subr.bf16.mxu0 0
    %1111 = vmatpush1.bf16.xpose.msra.mxu0 0
    %1112 = vmatprep.subr.bf16.mxu0 0
    %1113 = vmatpush1.bf16.xpose.msra.mxu0 0
    %1114 = vmatprep.subr.bf16.mxu0 0
    %1115 = vmatpush1.bf16.xpose.msra.mxu0 0
    %1116 = vmatprep.subr.bf16.mxu0 0
    %1117 = vmatpush1.bf16.xpose.msra.mxu0 0
    %1118 = vmatprep.subr.bf16.mxu0 0
    %1119 = vmatpush1.bf16.xpose.msra.mxu0 0
    %1120 = vmatprep.mubr.bf16.mxu0 0
    %1121 = vmatmul.mubr.bf16.gmra.mrb[0].mxu0 %v1083
    %v1122 = vpop.f32.mrb[0].mxu0
    %v1123 = vadd.f32 0.0, %v1122
    %v1124 = vpop.f32.mrb[0].mxu0
    %v1125 = vpop.f32.mrb[0].mxu0
    %v1126 = vpop.f32.mrb[0].mxu0
    %1127 = vdwg.mxu0
    %1128 = vrot.lane.b32.xlu0 %v400, 32
    %v1129 = vpop.permute.xlu0 %1128
    %1130 = vrot.lane.b32.xlu0 %v402, 32
    %v1131 = vpop.permute.xlu0 %1130
    %v1133 = vsel %vm405, %v1129, 0
    %v1136 = vsel %vm405, %v1131, 0
    %1138 = vmatprep.subr.bf16.mxu0 0
    %1139 = vmatpush1.bf16.xpose.msra.mxu0 %v1136
    %1140 = vmatprep.subr.bf16.mxu0 0
    %1141 = vmatpush1.bf16.xpose.msra.mxu0 0
    %1142 = vmatprep.subr.bf16.mxu0 0
    %1143 = vmatpush1.bf16.xpose.msra.mxu0 0
    %1144 = vmatprep.subr.bf16.mxu0 0
    %1145 = vmatpush1.bf16.xpose.msra.mxu0 0
    %1146 = vmatprep.subr.bf16.mxu0 0
    %1147 = vmatpush1.bf16.xpose.msra.mxu0 0
    %1148 = vmatprep.subr.bf16.mxu0 0
    %1149 = vmatpush1.bf16.xpose.msra.mxu0 0
    %1150 = vmatprep.subr.bf16.mxu0 0
    %1151 = vmatpush1.bf16.xpose.msra.mxu0 0
    %1152 = vmatprep.subr.bf16.mxu0 0
    %1153 = vmatpush1.bf16.xpose.msra.mxu0 0
    %1154 = vmatprep.subr.bf16.mxu0 0
    %1155 = vmatpush1.bf16.xpose.msra.mxu0 0
    %1156 = vmatprep.subr.bf16.mxu0 0
    %1157 = vmatpush1.bf16.xpose.msra.mxu0 0
    %1158 = vmatprep.subr.bf16.mxu0 0
    %1159 = vmatpush1.bf16.xpose.msra.mxu0 0
    %1160 = vmatprep.subr.bf16.mxu0 0
    %1161 = vmatpush1.bf16.xpose.msra.mxu0 0
    %1162 = vmatprep.subr.bf16.mxu0 0
    %1163 = vmatpush1.bf16.xpose.msra.mxu0 0
    %1164 = vmatprep.subr.bf16.mxu0 0
    %1165 = vmatpush1.bf16.xpose.msra.mxu0 0
    %1166 = vmatprep.subr.bf16.mxu0 0
    %1167 = vmatpush1.bf16.xpose.msra.mxu0 0
    %1168 = vmatprep.subr.bf16.mxu0 0
    %1169 = vmatpush1.bf16.xpose.msra.mxu0 0
    %1170 = vmatprep.mubr.bf16.mxu0 0
    %1171 = vmatmul.mubr.bf16.gmra.mrb[0].mxu0 %v1133
    %v1172 = vpop.f32.mrb[0].mxu0
    %v1173 = vadd.f32 0.0, %v1172
    %v1174 = vpop.f32.mrb[0].mxu0
    %v1175 = vpop.f32.mrb[0].mxu0
    %v1176 = vpop.f32.mrb[0].mxu0
    %1177 = vdwg.mxu0
    %v1178 = vsel %vm498, %v1123, -inf
    %1179 = vmax.xlane.f32.xlu0 %v1178
    %v1180 = vpop.xlane.xlu0 %1179
    %v1181 = vsel %vm498, %v1173, -inf
    %1182 = vmax.xlane.f32.xlu0 %v1181
    %v1183 = vpop.xlane.xlu0 %1182
    %v1184 = vsub.f32 %v1123, %v1180
    %v1185 = vsub.f32 %v1173, %v1183
    %v1186 = vmul.f32 %v1184, 1.442695
    %v1187 = vpow.pop %v1186
    %v1188 = vmul.f32 %v1185, 1.442695
    %v1189 = vpow.pop %v1188
    %v1190 = vpack.c.bf16 %v1187, %v1187
    %v1191 = vpack.c.bf16 %v1189, %v1189
    %1192 = vrot.lane.b32.xlu0 %v403, 32
    %v1193 = vpop.permute.xlu0 %1192
    %v1195 = vsel %vm498, %v1190, 0
    %v1198 = vsel %vm516, %v1193, 0
    %1200 = vmatprep.subr.bf16.mxu0 0
    %1201 = vmatpush1.bf16.msra.mxu0 %v1198
    %1202 = vmatprep.subr.bf16.mxu0 0
    %1203 = vmatpush1.bf16.msra.mxu0 0
    %1204 = vmatprep.subr.bf16.mxu0 0
    %1205 = vmatpush1.bf16.msra.mxu0 0
    %1206 = vmatprep.subr.bf16.mxu0 0
    %1207 = vmatpush1.bf16.msra.mxu0 0
    %1208 = vmatprep.subr.bf16.mxu0 0
    %1209 = vmatpush1.bf16.msra.mxu0 0
    %1210 = vmatprep.subr.bf16.mxu0 0
    %1211 = vmatpush1.bf16.msra.mxu0 0
    %1212 = vmatprep.subr.bf16.mxu0 0
    %1213 = vmatpush1.bf16.msra.mxu0 0
    %1214 = vmatprep.subr.bf16.mxu0 0
    %1215 = vmatpush1.bf16.msra.mxu0 0
    %1216 = vmatprep.subr.bf16.mxu0 0
    %1217 = vmatpush1.bf16.msra.mxu0 0
    %1218 = vmatprep.subr.bf16.mxu0 0
    %1219 = vmatpush1.bf16.msra.mxu0 0
    %1220 = vmatprep.subr.bf16.mxu0 0
    %1221 = vmatpush1.bf16.msra.mxu0 0
    %1222 = vmatprep.subr.bf16.mxu0 0
    %1223 = vmatpush1.bf16.msra.mxu0 0
    %1224 = vmatprep.subr.bf16.mxu0 0
    %1225 = vmatpush1.bf16.msra.mxu0 0
    %1226 = vmatprep.subr.bf16.mxu0 0
    %1227 = vmatpush1.bf16.msra.mxu0 0
    %1228 = vmatprep.subr.bf16.mxu0 0
    %1229 = vmatpush1.bf16.msra.mxu0 0
    %1230 = vmatprep.subr.bf16.mxu0 0
    %1231 = vmatpush1.bf16.msra.mxu0 0
    %1232 = vmatprep.mubr.bf16.mxu0 0
    %1233 = vmatmul.mubr.bf16.gmra.mrb[0].mxu0 %v1195
    %v1234 = vpop.f32.mrb[0].mxu0
    %v1235 = vadd.f32 0.0, %v1234
    %v1236 = vpop.f32.mrb[0].mxu0
    %v1237 = vpop.f32.mrb[0].mxu0
    %v1238 = vpop.f32.mrb[0].mxu0
    %1239 = vdwg.mxu0
    %1240 = vrot.lane.b32.xlu0 %v404, 32
    %v1241 = vpop.permute.xlu0 %1240
    %v1243 = vsel %vm498, %v1191, 0
    %v1246 = vsel %vm516, %v1241, 0
    %1248 = vmatprep.subr.bf16.mxu0 0
    %1249 = vmatpush1.bf16.msra.mxu0 %v1246
    %1250 = vmatprep.subr.bf16.mxu0 0
    %1251 = vmatpush1.bf16.msra.mxu0 0
    %1252 = vmatprep.subr.bf16.mxu0 0
    %1253 = vmatpush1.bf16.msra.mxu0 0
    %1254 = vmatprep.subr.bf16.mxu0 0
    %1255 = vmatpush1.bf16.msra.mxu0 0
    %1256 = vmatprep.subr.bf16.mxu0 0
    %1257 = vmatpush1.bf16.msra.mxu0 0
    %1258 = vmatprep.subr.bf16.mxu0 0
    %1259 = vmatpush1.bf16.msra.mxu0 0
    %1260 = vmatprep.subr.bf16.mxu0 0
    %1261 = vmatpush1.bf16.msra.mxu0 0
    %1262 = vmatprep.subr.bf16.mxu0 0
    %1263 = vmatpush1.bf16.msra.mxu0 0
    %1264 = vmatprep.subr.bf16.mxu0 0
    %1265 = vmatpush1.bf16.msra.mxu0 0
    %1266 = vmatprep.subr.bf16.mxu0 0
    %1267 = vmatpush1.bf16.msra.mxu0 0
    %1268 = vmatprep.subr.bf16.mxu0 0
    %1269 = vmatpush1.bf16.msra.mxu0 0
    %1270 = vmatprep.subr.bf16.mxu0 0
    %1271 = vmatpush1.bf16.msra.mxu0 0
    %1272 = vmatprep.subr.bf16.mxu0 0
    %1273 = vmatpush1.bf16.msra.mxu0 0
    %1274 = vmatprep.subr.bf16.mxu0 0
    %1275 = vmatpush1.bf16.msra.mxu0 0
    %1276 = vmatprep.subr.bf16.mxu0 0
    %1277 = vmatpush1.bf16.msra.mxu0 0
    %1278 = vmatprep.subr.bf16.mxu0 0
    %1279 = vmatpush1.bf16.msra.mxu0 0
    %1280 = vmatprep.mubr.bf16.mxu0 0
    %1281 = vmatmul.mubr.bf16.gmra.mrb[0].mxu0 %v1243
    %v1282 = vpop.f32.mrb[0].mxu0
    %v1283 = vadd.f32 0.0, %v1282
    %v1284 = vpop.f32.mrb[0].mxu0
    %v1285 = vpop.f32.mrb[0].mxu0
    %v1286 = vpop.f32.mrb[0].mxu0
    %1287 = vdwg.mxu0
    %v1288 = vsel %vm498, %v1187, 0.0
    %1289 = vadd.xlane.f32.xlu0 %v1288
    %v1290 = vpop.xlane.xlu0 %1289
    %v1291 = vsel %vm498, %v1189, 0.0
    %1292 = vadd.xlane.f32.xlu0 %v1291
    %v1293 = vpop.xlane.xlu0 %1292
    %v1294 = vrcp.pop %v1290
    %v1295 = vrcp.pop %v1293
    %v1296 = vmul.f32 %v1235, %v1294
    %v1297 = vmul.f32 %v1283, %v1295
    %v1298 = vpack.c.bf16 %v1297, %v1296
    %1300 = vrot.lane.b32.xlu0 %v1298, 96
    %v1301 = vpop.permute.xlu0 %1300
    %vm1303 = vcmask 1048320
    %1304 = vst.msk [vmem:[#allocation2] sm:$0xff] %vm1303, %v1301
    %v1305 = vld [vmem:[#allocation2] sm:$0xff]
    %v1306 = vld [vmem:[#allocation8] sm:$0xf]
    %v1307 = vld [vmem:[#allocation8 + $0x4] sm:$0xf]
    %v1308 = vld [vmem:[#allocation8 + $0x8] sm:$0xf]
    %v1309 = vld [vmem:[#allocation8 + $0xc] sm:$0xf]
    %v1310 = vld [vmem:[#allocation8 + $0x10] sm:$0xf]
    %v1311 = vld [vmem:[#allocation8 + $0x14] sm:$0xf]
    %v1312 = vld [vmem:[#allocation8 + $0x18] sm:$0xf]
    %v1313 = vld [vmem:[#allocation8 + $0x1c] sm:$0xf]
    %v1314 = vld [vmem:[#allocation8 + $0x20] sm:$0xf]
    %v1315 = vld [vmem:[#allocation8 + $0x24] sm:$0xf]
    %v1316 = vld [vmem:[#allocation8 + $0x28] sm:$0xf]
    %v1317 = vld [vmem:[#allocation8 + $0x2c] sm:$0xf]
    %v1318 = vld [vmem:[#allocation8 + $0x30] sm:$0xf]
    %v1319 = vld [vmem:[#allocation8 + $0x34] sm:$0xf]
    %v1320 = vld [vmem:[#allocation8 + $0x38] sm:$0xf]
    %v1321 = vld [vmem:[#allocation8 + $0x3c] sm:$0xf]
    %v1338 = vunpack.c.l.b16 %v1306
    %v1339 = vunpack.c.l.b16 %v1307
    %v1340 = vunpack.c.l.b16 %v1308
    %v1341 = vunpack.c.l.b16 %v1309
    %v1342 = vunpack.c.l.b16 %v1310
    %v1343 = vunpack.c.l.b16 %v1311
    %v1344 = vunpack.c.l.b16 %v1312
    %v1345 = vunpack.c.l.b16 %v1313
    %v1346 = vunpack.c.l.b16 %v1314
    %v1347 = vunpack.c.l.b16 %v1315
    %v1348 = vunpack.c.l.b16 %v1316
    %v1349 = vunpack.c.l.b16 %v1317
    %v1350 = vunpack.c.l.b16 %v1318
    %v1351 = vunpack.c.l.b16 %v1319
    %v1352 = vunpack.c.l.b16 %v1320
    %v1353 = vunpack.c.l.b16 %v1321
    %v1354 = vpack.c.b16 %v1339, %v1338
    %v1355 = vpack.c.b16 %v1341, %v1340
    %v1356 = vpack.c.b16 %v1343, %v1342
    %v1357 = vpack.c.b16 %v1345, %v1344
    %v1358 = vpack.c.b16 %v1347, %v1346
    %v1359 = vpack.c.b16 %v1349, %v1348
    %v1360 = vpack.c.b16 %v1351, %v1350
    %v1361 = vpack.c.b16 %v1353, %v1352
    %1370 = vmatprep.subr.bf16.mxu0 0
    %1371 = vmatpush1.bf16.msra.mxu0 %v1354
    %1372 = vmatprep.subr.bf16.mxu0 0
    %1373 = vmatpush1.bf16.msra.mxu0 %v1355
    %1374 = vmatprep.subr.bf16.mxu0 0
    %1375 = vmatpush1.bf16.msra.mxu0 %v1356
    %1376 = vmatprep.subr.bf16.mxu0 0
    %1377 = vmatpush1.bf16.msra.mxu0 %v1357
    %1378 = vmatprep.subr.bf16.mxu0 0
    %1379 = vmatpush1.bf16.msra.mxu0 %v1358
    %1380 = vmatprep.subr.bf16.mxu0 0
    %1381 = vmatpush1.bf16.msra.mxu0 %v1359
    %1382 = vmatprep.subr.bf16.mxu0 0
    %1383 = vmatpush1.bf16.msra.mxu0 %v1360
    %1384 = vmatprep.subr.bf16.mxu0 0
    %1385 = vmatpush1.bf16.msra.mxu0 %v1361
    %1386 = vmatprep.subr.bf16.mxu0 0
    %1387 = vmatpush1.bf16.msra.mxu0 0
    %1388 = vmatprep.subr.bf16.mxu0 0
    %1389 = vmatpush1.bf16.msra.mxu0 0
    %1390 = vmatprep.subr.bf16.mxu0 0
    %1391 = vmatpush1.bf16.msra.mxu0 0
    %1392 = vmatprep.subr.bf16.mxu0 0
    %1393 = vmatpush1.bf16.msra.mxu0 0
    %1394 = vmatprep.subr.bf16.mxu0 0
    %1395 = vmatpush1.bf16.msra.mxu0 0
    %1396 = vmatprep.subr.bf16.mxu0 0
    %1397 = vmatpush1.bf16.msra.mxu0 0
    %1398 = vmatprep.subr.bf16.mxu0 0
    %1399 = vmatpush1.bf16.msra.mxu0 0
    %1400 = vmatprep.subr.bf16.mxu0 0
    %1401 = vmatpush1.bf16.msra.mxu0 0
    %1402 = vmatprep.mubr.bf16.mxu0 0
    %1403 = vmatmul.mubr.bf16.gmra.mrb[0].mxu0 %v1305
    %v1404 = vpop.f32.mrb[0].mxu0
    %v1405 = vadd.f32 0.0, %v1404
    %v1406 = vpop.f32.mrb[0].mxu0
    %v1407 = vpop.f32.mrb[0].mxu0
    %v1408 = vadd.f32 0.0, %v1407
    %v1409 = vpop.f32.mrb[0].mxu0
    %1410 = vdwg.mxu0
    %v1411 = vadd.f32 %v111, %v1405
    %v1412 = vadd.f32 %v112, %v1408
    %v1413 = vld [vmem:[%s5] sm:$0x1]
    %v1415 = vlaneseq
    %v1416 = vshrl.u32 %v1415, 7
    %v1417 = vsub.s32 0, %v1416
    %v1418 = vrot.slane %v1413, %v1417
    %v1420 = vadd.f32 %v1411, %v1418
    %v1421 = vadd.f32 %v1412, %v1418
    %v1422 = vld [vmem:[%s6] sm:$0x1]
    %v1423 = vld [vmem:[%s7] sm:$0x1]
    %1424 = vadd.xlane.f32.xlu0 %v1420
    %v1425 = vpop.xlane.xlu0 %1424
    %1426 = vadd.xlane.f32.xlu0 %v1421
    %v1427 = vpop.xlane.xlu0 %1426
    %v1428 = vmul.f32 %v1425, %v119
    %v1429 = vmul.f32 %v1427, %v119
    %v1430 = vsub.f32 %v1420, %v1428
    %v1431 = vsub.f32 %v1421, %v1429
    %v1432 = vmul.f32 %v1430, %v1430
    %v1433 = vmul.f32 %v1431, %v1431
    %1434 = vadd.xlane.f32.xlu0 %v1432
    %v1435 = vpop.xlane.xlu0 %1434
    %1436 = vadd.xlane.f32.xlu0 %v1433
    %v1437 = vpop.xlane.xlu0 %1436
    %v1438 = vmul.f32 %v1435, %v119
    %v1439 = vmul.f32 %v1437, %v119
    %v1440 = vadd.f32 %v1438, 1e-05
    %v1441 = vadd.f32 %v1439, 1e-05
    %v1442 = vrsqrt.pop %v1440
    %v1443 = vrsqrt.pop %v1441
    %v1444 = vmul.f32 %v1430, %v1442
    %v1445 = vmul.f32 %v1431, %v1443
    %v1447 = vlaneseq
    %v1448 = vshrl.u32 %v1447, 7
    %v1449 = vsub.s32 0, %v1448
    %v1450 = vrot.slane %v1422, %v1449
    %v1452 = vmul.f32 %v1444, %v1450
    %v1453 = vmul.f32 %v1445, %v1450
    %v1455 = vlaneseq
    %v1456 = vshrl.u32 %v1455, 7
    %v1457 = vsub.s32 0, %v1456
    %v1458 = vrot.slane %v1423, %v1457
    %v1460 = vadd.f32 %v1452, %v1458
    %v1461 = vadd.f32 %v1453, %v1458
    %v1462 = vpack.c.bf16 %v1461, %v1460
    %v1463 = vld [vmem:[#allocation9] sm:$0xff]
    %v1464 = vld [vmem:[#allocation9 + $0x8] sm:$0xff]
    %v1465 = vld [vmem:[#allocation9 + $0x10] sm:$0xff]
    %v1466 = vld [vmem:[#allocation9 + $0x18] sm:$0xff]
    %v1467 = vld [vmem:[#allocation9 + $0x20] sm:$0xff]
    %v1468 = vld [vmem:[#allocation9 + $0x28] sm:$0xff]
    %v1469 = vld [vmem:[#allocation9 + $0x30] sm:$0xff]
    %v1470 = vld [vmem:[#allocation9 + $0x38] sm:$0xff]
    %v1471 = vld [vmem:[#allocation9 + $0x40] sm:$0xff]
    %v1472 = vld [vmem:[#allocation9 + $0x48] sm:$0xff]
    %v1473 = vld [vmem:[#allocation9 + $0x50] sm:$0xff]
    %v1474 = vld [vmem:[#allocation9 + $0x58] sm:$0xff]
    %v1475 = vld [vmem:[#allocation9 + $0x60] sm:$0xff]
    %v1476 = vld [vmem:[#allocation9 + $0x68] sm:$0xff]
    %v1477 = vld [vmem:[#allocation9 + $0x70] sm:$0xff]
    %v1478 = vld [vmem:[#allocation9 + $0x78] sm:$0xff]
    %v1479 = vld [vmem:[#allocation9 + $0x80] sm:$0xff]
    %v1480 = vld [vmem:[#allocation9 + $0x88] sm:$0xff]
    %v1481 = vld [vmem:[#allocation9 + $0x90] sm:$0xff]
    %v1482 = vld [vmem:[#allocation9 + $0x98] sm:$0xff]
    %v1483 = vld [vmem:[#allocation9 + $0xa0] sm:$0xff]
    %v1484 = vld [vmem:[#allocation9 + $0xa8] sm:$0xff]
    %v1485 = vld [vmem:[#allocation9 + $0xb0] sm:$0xff]
    %v1486 = vld [vmem:[#allocation9 + $0xb8] sm:$0xff]
    %v1487 = vld [vmem:[#allocation9 + $0xc0] sm:$0xff]
    %v1488 = vld [vmem:[#allocation9 + $0xc8] sm:$0xff]
    %v1489 = vld [vmem:[#allocation9 + $0xd0] sm:$0xff]
    %v1490 = vld [vmem:[#allocation9 + $0xd8] sm:$0xff]
    %v1491 = vld [vmem:[#allocation9 + $0xe0] sm:$0xff]
    %v1492 = vld [vmem:[#allocation9 + $0xe8] sm:$0xff]
    %v1493 = vld [vmem:[#allocation9 + $0xf0] sm:$0xff]
    %v1494 = vld [vmem:[#allocation9 + $0xf8] sm:$0xff]
    %v1495 = vld [vmem:[%s9] sm:$0xf]
    %v1497 = vlaneseq
    %v1498 = vshrl.u32 %v1497, 7
    %v1499 = vsub.s32 0, %v1498
    %v1500 = vrot.slane %v1495, %v1499
    %v1501 = vlaneseq
    %v1502 = vshrl.u32 %v1501, 7
    %v1503 = vsub.s32 1, %v1502
    %v1504 = vrot.slane %v1495, %v1503
    %v1505 = vlaneseq
    %v1506 = vshrl.u32 %v1505, 7
    %v1507 = vsub.s32 2, %v1506
    %v1508 = vrot.slane %v1495, %v1507
    %v1509 = vlaneseq
    %v1510 = vshrl.u32 %v1509, 7
    %v1511 = vsub.s32 3, %v1510
    %v1512 = vrot.slane %v1495, %v1511
    %v1549 = vunpack.c.l.b16 %v1463
    %v1550 = vunpack.c.h.b16 %v1463
    %v1551 = vunpack.c.l.b16 %v1464
    %v1552 = vunpack.c.h.b16 %v1464
    %v1553 = vunpack.c.l.b16 %v1465
    %v1554 = vunpack.c.h.b16 %v1465
    %v1555 = vunpack.c.l.b16 %v1466
    %v1556 = vunpack.c.h.b16 %v1466
    %v1557 = vunpack.c.l.b16 %v1467
    %v1558 = vunpack.c.h.b16 %v1467
    %v1559 = vunpack.c.l.b16 %v1468
    %v1560 = vunpack.c.h.b16 %v1468
    %v1561 = vunpack.c.l.b16 %v1469
    %v1562 = vunpack.c.h.b16 %v1469
    %v1563 = vunpack.c.l.b16 %v1470
    %v1564 = vunpack.c.h.b16 %v1470
    %v1565 = vunpack.c.l.b16 %v1471
    %v1566 = vunpack.c.h.b16 %v1471
    %v1567 = vunpack.c.l.b16 %v1472
    %v1568 = vunpack.c.h.b16 %v1472
    %v1569 = vunpack.c.l.b16 %v1473
    %v1570 = vunpack.c.h.b16 %v1473
    %v1571 = vunpack.c.l.b16 %v1474
    %v1572 = vunpack.c.h.b16 %v1474
    %v1573 = vunpack.c.l.b16 %v1475
    %v1574 = vunpack.c.h.b16 %v1475
    %v1575 = vunpack.c.l.b16 %v1476
    %v1576 = vunpack.c.h.b16 %v1476
    %v1577 = vunpack.c.l.b16 %v1477
    %v1578 = vunpack.c.h.b16 %v1477
    %v1579 = vunpack.c.l.b16 %v1478
    %v1580 = vunpack.c.h.b16 %v1478
    %v1581 = vunpack.c.l.b16 %v1479
    %v1582 = vunpack.c.h.b16 %v1479
    %v1583 = vunpack.c.l.b16 %v1480
    %v1584 = vunpack.c.h.b16 %v1480
    %v1585 = vunpack.c.l.b16 %v1481
    %v1586 = vunpack.c.h.b16 %v1481
    %v1587 = vunpack.c.l.b16 %v1482
    %v1588 = vunpack.c.h.b16 %v1482
    %v1589 = vunpack.c.l.b16 %v1483
    %v1590 = vunpack.c.h.b16 %v1483
    %v1591 = vunpack.c.l.b16 %v1484
    %v1592 = vunpack.c.h.b16 %v1484
    %v1593 = vunpack.c.l.b16 %v1485
    %v1594 = vunpack.c.h.b16 %v1485
    %v1595 = vunpack.c.l.b16 %v1486
    %v1596 = vunpack.c.h.b16 %v1486
    %v1597 = vunpack.c.l.b16 %v1487
    %v1598 = vunpack.c.h.b16 %v1487
    %v1599 = vunpack.c.l.b16 %v1488
    %v1600 = vunpack.c.h.b16 %v1488
    %v1601 = vunpack.c.l.b16 %v1489
    %v1602 = vunpack.c.h.b16 %v1489
    %v1603 = vunpack.c.l.b16 %v1490
    %v1604 = vunpack.c.h.b16 %v1490
    %v1605 = vunpack.c.l.b16 %v1491
    %v1606 = vunpack.c.h.b16 %v1491
    %v1607 = vunpack.c.l.b16 %v1492
    %v1608 = vunpack.c.h.b16 %v1492
    %v1609 = vunpack.c.l.b16 %v1493
    %v1610 = vunpack.c.h.b16 %v1493
    %v1611 = vunpack.c.l.b16 %v1494
    %v1612 = vunpack.c.h.b16 %v1494
    %v1613 = vpack.c.b16 %v1553, %v1549
    %v1614 = vpack.c.b16 %v1554, %v1550
    %v1615 = vpack.c.b16 %v1555, %v1551
    %v1616 = vpack.c.b16 %v1556, %v1552
    %v1617 = vpack.c.b16 %v1561, %v1557
    %v1618 = vpack.c.b16 %v1562, %v1558
    %v1619 = vpack.c.b16 %v1563, %v1559
    %v1620 = vpack.c.b16 %v1564, %v1560
    %v1621 = vpack.c.b16 %v1569, %v1565
    %v1622 = vpack.c.b16 %v1570, %v1566
    %v1623 = vpack.c.b16 %v1571, %v1567
    %v1624 = vpack.c.b16 %v1572, %v1568
    %v1625 = vpack.c.b16 %v1577, %v1573
    %v1626 = vpack.c.b16 %v1578, %v1574
    %v1627 = vpack.c.b16 %v1579, %v1575
    %v1628 = vpack.c.b16 %v1580, %v1576
    %v1629 = vpack.c.b16 %v1585, %v1581
    %v1630 = vpack.c.b16 %v1586, %v1582
    %v1631 = vpack.c.b16 %v1587, %v1583
    %v1632 = vpack.c.b16 %v1588, %v1584
    %v1633 = vpack.c.b16 %v1593, %v1589
    %v1634 = vpack.c.b16 %v1594, %v1590
    %v1635 = vpack.c.b16 %v1595, %v1591
    %v1636 = vpack.c.b16 %v1596, %v1592
    %v1637 = vpack.c.b16 %v1601, %v1597
    %v1638 = vpack.c.b16 %v1602, %v1598
    %v1639 = vpack.c.b16 %v1603, %v1599
    %v1640 = vpack.c.b16 %v1604, %v1600
    %v1641 = vpack.c.b16 %v1609, %v1605
    %v1642 = vpack.c.b16 %v1610, %v1606
    %v1643 = vpack.c.b16 %v1611, %v1607
    %v1644 = vpack.c.b16 %v1612, %v1608
    %1677 = vmatprep.subr.bf16.mxu0 %v1614
    %1678 = vmatpush1.bf16.msra.mxu0 %v1613
    %1679 = vmatprep.subr.bf16.mxu0 %v1618
    %1680 = vmatpush1.bf16.msra.mxu0 %v1617
    %1681 = vmatprep.subr.bf16.mxu0 %v1622
    %1682 = vmatpush1.bf16.msra.mxu0 %v1621
    %1683 = vmatprep.subr.bf16.mxu0 %v1626
    %1684 = vmatpush1.bf16.msra.mxu0 %v1625
    %1685 = vmatprep.subr.bf16.mxu0 %v1630
    %1686 = vmatpush1.bf16.msra.mxu0 %v1629
    %1687 = vmatprep.subr.bf16.mxu0 %v1634
    %1688 = vmatpush1.bf16.msra.mxu0 %v1633
    %1689 = vmatprep.subr.bf16.mxu0 %v1638
    %1690 = vmatpush1.bf16.msra.mxu0 %v1637
    %1691 = vmatprep.subr.bf16.mxu0 %v1642
    %1692 = vmatpush1.bf16.msra.mxu0 %v1641
    %1693 = vmatprep.subr.bf16.mxu0 0
    %1694 = vmatpush1.bf16.msra.mxu0 0
    %1695 = vmatprep.subr.bf16.mxu0 0
    %1696 = vmatpush1.bf16.msra.mxu0 0
    %1697 = vmatprep.subr.bf16.mxu0 0
    %1698 = vmatpush1.bf16.msra.mxu0 0
    %1699 = vmatprep.subr.bf16.mxu0 0
    %1700 = vmatpush1.bf16.msra.mxu0 0
    %1701 = vmatprep.subr.bf16.mxu0 0
    %1702 = vmatpush1.bf16.msra.mxu0 0
    %1703 = vmatprep.subr.bf16.mxu0 0
    %1704 = vmatpush1.bf16.msra.mxu0 0
    %1705 = vmatprep.subr.bf16.mxu0 0
    %1706 = vmatpush1.bf16.msra.mxu0 0
    %1707 = vmatprep.subr.bf16.mxu0 0
    %1708 = vmatpush1.bf16.msra.mxu0 0
    %1709 = vmatprep.mubr.bf16.mxu0 0
    %1710 = vmatmul.mubr.bf16.gmra.mrb[0].mxu0 %v1462
    %v1711 = vpop.f32.mrb[0].mxu0
    %v1712 = vadd.f32 %v1500, %v1711
    %v1713 = vpop.f32.mrb[0].mxu0
    %v1714 = vadd.f32 %v1504, %v1713
    %v1715 = vpop.f32.mrb[0].mxu0
    %v1716 = vadd.f32 %v1500, %v1715
    %v1717 = vpop.f32.mrb[0].mxu0
    %v1718 = vadd.f32 %v1504, %v1717
    %1719 = vdwg.mxu0
    %1720 = vmatprep.subr.bf16.mxu0 %v1616
    %1721 = vmatpush1.bf16.msra.mxu0 %v1615
    %1722 = vmatprep.subr.bf16.mxu0 %v1620
    %1723 = vmatpush1.bf16.msra.mxu0 %v1619
    %1724 = vmatprep.subr.bf16.mxu0 %v1624
    %1725 = vmatpush1.bf16.msra.mxu0 %v1623
    %1726 = vmatprep.subr.bf16.mxu0 %v1628
    %1727 = vmatpush1.bf16.msra.mxu0 %v1627
    %1728 = vmatprep.subr.bf16.mxu0 %v1632
    %1729 = vmatpush1.bf16.msra.mxu0 %v1631
    %1730 = vmatprep.subr.bf16.mxu0 %v1636
    %1731 = vmatpush1.bf16.msra.mxu0 %v1635
    %1732 = vmatprep.subr.bf16.mxu0 %v1640
    %1733 = vmatpush1.bf16.msra.mxu0 %v1639
    %1734 = vmatprep.subr.bf16.mxu0 %v1644
    %1735 = vmatpush1.bf16.msra.mxu0 %v1643
    %1736 = vmatprep.subr.bf16.mxu0 0
    %1737 = vmatpush1.bf16.msra.mxu0 0
    %1738 = vmatprep.subr.bf16.mxu0 0
    %1739 = vmatpush1.bf16.msra.mxu0 0
    %1740 = vmatprep.subr.bf16.mxu0 0
    %1741 = vmatpush1.bf16.msra.mxu0 0
    %1742 = vmatprep.subr.bf16.mxu0 0
    %1743 = vmatpush1.bf16.msra.mxu0 0
    %1744 = vmatprep.subr.bf16.mxu0 0
    %1745 = vmatpush1.bf16.msra.mxu0 0
    %1746 = vmatprep.subr.bf16.mxu0 0
    %1747 = vmatpush1.bf16.msra.mxu0 0
    %1748 = vmatprep.subr.bf16.mxu0 0
    %1749 = vmatpush1.bf16.msra.mxu0 0
    %1750 = vmatprep.subr.bf16.mxu0 0
    %1751 = vmatpush1.bf16.msra.mxu0 0
    %1752 = vmatprep.mubr.bf16.mxu0 0
    %1753 = vmatmul.mubr.bf16.gmra.mrb[0].mxu0 %v1462
    %v1754 = vpop.f32.mrb[0].mxu0
    %v1755 = vadd.f32 %v1508, %v1754
    %v1756 = vpop.f32.mrb[0].mxu0
    %v1757 = vadd.f32 %v1512, %v1756
    %v1758 = vpop.f32.mrb[0].mxu0
    %v1759 = vadd.f32 %v1508, %v1758
    %v1760 = vpop.f32.mrb[0].mxu0
    %v1761 = vadd.f32 %v1512, %v1760
    %1762 = vdwg.mxu0
    %v1763 = vmul.f32 %v1712, 0.5
    %v1764 = vmul.f32 %v1714, 0.5
    %v1765 = vmul.f32 %v1755, 0.5
    %v1766 = vmul.f32 %v1757, 0.5
    %v1767 = vmul.f32 %v1716, 0.5
    %v1768 = vmul.f32 %v1718, 0.5
    %v1769 = vmul.f32 %v1759, 0.5
    %v1770 = vmul.f32 %v1761, 0.5
    %v1771 = vmul.f32 %v1712, 0.70710677
    %v1772 = vmul.f32 %v1714, 0.70710677
    %v1773 = vmul.f32 %v1755, 0.70710677
    %v1774 = vmul.f32 %v1757, 0.70710677
    %v1775 = vmul.f32 %v1716, 0.70710677
    %v1776 = vmul.f32 %v1718, 0.70710677
    %v1777 = vmul.f32 %v1759, 0.70710677
    %v1778 = vmul.f32 %v1761, 0.70710677
    %v1779 = verf.f32.pop %v1771
    %v1780 = verf.f32.pop %v1772
    %v1781 = verf.f32.pop %v1773
    %v1782 = verf.f32.pop %v1774
    %v1783 = verf.f32.pop %v1775
    %v1784 = verf.f32.pop %v1776
    %v1785 = verf.f32.pop %v1777
    %v1786 = verf.f32.pop %v1778
    %v1787 = vadd.f32 %v1779, 1.0
    %v1788 = vadd.f32 %v1780, 1.0
    %v1789 = vadd.f32 %v1781, 1.0
    %v1790 = vadd.f32 %v1782, 1.0
    %v1791 = vadd.f32 %v1783, 1.0
    %v1792 = vadd.f32 %v1784, 1.0
    %v1793 = vadd.f32 %v1785, 1.0
    %v1794 = vadd.f32 %v1786, 1.0
    %v1795 = vmul.f32 %v1763, %v1787
    %v1796 = vmul.f32 %v1764, %v1788
    %v1797 = vmul.f32 %v1765, %v1789
    %v1798 = vmul.f32 %v1766, %v1790
    %v1799 = vmul.f32 %v1767, %v1791
    %v1800 = vmul.f32 %v1768, %v1792
    %v1801 = vmul.f32 %v1769, %v1793
    %v1802 = vmul.f32 %v1770, %v1794
    %v1803 = vpack.c.bf16 %v1799, %v1795
    %v1804 = vpack.c.bf16 %v1800, %v1796
    %v1805 = vpack.c.bf16 %v1801, %v1797
    %v1806 = vpack.c.bf16 %v1802, %v1798
    %v1807 = vld [vmem:[#allocation11] sm:$0xf]
    %v1808 = vld [vmem:[#allocation11 + $0x4] sm:$0xf]
    %v1809 = vld [vmem:[#allocation11 + $0x8] sm:$0xf]
    %v1810 = vld [vmem:[#allocation11 + $0xc] sm:$0xf]
    %v1811 = vld [vmem:[#allocation11 + $0x10] sm:$0xf]
    %v1812 = vld [vmem:[#allocation11 + $0x14] sm:$0xf]
    %v1813 = vld [vmem:[#allocation11 + $0x18] sm:$0xf]
    %v1814 = vld [vmem:[#allocation11 + $0x1c] sm:$0xf]
    %v1815 = vld [vmem:[#allocation11 + $0x20] sm:$0xf]
    %v1816 = vld [vmem:[#allocation11 + $0x24] sm:$0xf]
    %v1817 = vld [vmem:[#allocation11 + $0x28] sm:$0xf]
    %v1818 = vld [vmem:[#allocation11 + $0x2c] sm:$0xf]
    %v1819 = vld [vmem:[#allocation11 + $0x30] sm:$0xf]
    %v1820 = vld [vmem:[#allocation11 + $0x34] sm:$0xf]
    %v1821 = vld [vmem:[#allocation11 + $0x38] sm:$0xf]
    %v1822 = vld [vmem:[#allocation11 + $0x3c] sm:$0xf]
    %v1823 = vld [vmem:[#allocation11 + $0x40] sm:$0xf]
    %v1824 = vld [vmem:[#allocation11 + $0x44] sm:$0xf]
    %v1825 = vld [vmem:[#allocation11 + $0x48] sm:$0xf]
    %v1826 = vld [vmem:[#allocation11 + $0x4c] sm:$0xf]
    %v1827 = vld [vmem:[#allocation11 + $0x50] sm:$0xf]
    %v1828 = vld [vmem:[#allocation11 + $0x54] sm:$0xf]
    %v1829 = vld [vmem:[#allocation11 + $0x58] sm:$0xf]
    %v1830 = vld [vmem:[#allocation11 + $0x5c] sm:$0xf]
    %v1831 = vld [vmem:[#allocation11 + $0x60] sm:$0xf]
    %v1832 = vld [vmem:[#allocation11 + $0x64] sm:$0xf]
    %v1833 = vld [vmem:[#allocation11 + $0x68] sm:$0xf]
    %v1834 = vld [vmem:[#allocation11 + $0x6c] sm:$0xf]
    %v1835 = vld [vmem:[#allocation11 + $0x70] sm:$0xf]
    %v1836 = vld [vmem:[#allocation11 + $0x74] sm:$0xf]
    %v1837 = vld [vmem:[#allocation11 + $0x78] sm:$0xf]
    %v1838 = vld [vmem:[#allocation11 + $0x7c] sm:$0xf]
    %v1839 = vld [vmem:[#allocation11 + $0x80] sm:$0xf]
    %v1840 = vld [vmem:[#allocation11 + $0x84] sm:$0xf]
    %v1841 = vld [vmem:[#allocation11 + $0x88] sm:$0xf]
    %v1842 = vld [vmem:[#allocation11 + $0x8c] sm:$0xf]
    %v1843 = vld [vmem:[#allocation11 + $0x90] sm:$0xf]
    %v1844 = vld [vmem:[#allocation11 + $0x94] sm:$0xf]
    %v1845 = vld [vmem:[#allocation11 + $0x98] sm:$0xf]
    %v1846 = vld [vmem:[#allocation11 + $0x9c] sm:$0xf]
    %v1847 = vld [vmem:[#allocation11 + $0xa0] sm:$0xf]
    %v1848 = vld [vmem:[#allocation11 + $0xa4] sm:$0xf]
    %v1849 = vld [vmem:[#allocation11 + $0xa8] sm:$0xf]
    %v1850 = vld [vmem:[#allocation11 + $0xac] sm:$0xf]
    %v1851 = vld [vmem:[#allocation11 + $0xb0] sm:$0xf]
    %v1852 = vld [vmem:[#allocation11 + $0xb4] sm:$0xf]
    %v1853 = vld [vmem:[#allocation11 + $0xb8] sm:$0xf]
    %v1854 = vld [vmem:[#allocation11 + $0xbc] sm:$0xf]
    %v1855 = vld [vmem:[#allocation11 + $0xc0] sm:$0xf]
    %v1856 = vld [vmem:[#allocation11 + $0xc4] sm:$0xf]
    %v1857 = vld [vmem:[#allocation11 + $0xc8] sm:$0xf]
    %v1858 = vld [vmem:[#allocation11 + $0xcc] sm:$0xf]
    %v1859 = vld [vmem:[#allocation11 + $0xd0] sm:$0xf]
    %v1860 = vld [vmem:[#allocation11 + $0xd4] sm:$0xf]
    %v1861 = vld [vmem:[#allocation11 + $0xd8] sm:$0xf]
    %v1862 = vld [vmem:[#allocation11 + $0xdc] sm:$0xf]
    %v1863 = vld [vmem:[#allocation11 + $0xe0] sm:$0xf]
    %v1864 = vld [vmem:[#allocation11 + $0xe4] sm:$0xf]
    %v1865 = vld [vmem:[#allocation11 + $0xe8] sm:$0xf]
    %v1866 = vld [vmem:[#allocation11 + $0xec] sm:$0xf]
    %v1867 = vld [vmem:[#allocation11 + $0xf0] sm:$0xf]
    %v1868 = vld [vmem:[#allocation11 + $0xf4] sm:$0xf]
    %v1869 = vld [vmem:[#allocation11 + $0xf8] sm:$0xf]
    %v1870 = vld [vmem:[#allocation11 + $0xfc] sm:$0xf]
    %v1871 = vld [vmem:[%s11] sm:$0x1]
    %v1873 = vlaneseq
    %v1874 = vshrl.u32 %v1873, 7
    %v1875 = vsub.s32 0, %v1874
    %v1876 = vrot.slane %v1871, %v1875
    %v1942 = vunpack.c.l.b16 %v1807
    %v1943 = vunpack.c.l.b16 %v1808
    %v1944 = vunpack.c.l.b16 %v1809
    %v1945 = vunpack.c.l.b16 %v1810
    %v1946 = vunpack.c.l.b16 %v1811
    %v1947 = vunpack.c.l.b16 %v1812
    %v1948 = vunpack.c.l.b16 %v1813
    %v1949 = vunpack.c.l.b16 %v1814
    %v1950 = vunpack.c.l.b16 %v1815
    %v1951 = vunpack.c.l.b16 %v1816
    %v1952 = vunpack.c.l.b16 %v1817
    %v1953 = vunpack.c.l.b16 %v1818
    %v1954 = vunpack.c.l.b16 %v1819
    %v1955 = vunpack.c.l.b16 %v1820
    %v1956 = vunpack.c.l.b16 %v1821
    %v1957 = vunpack.c.l.b16 %v1822
    %v1958 = vunpack.c.l.b16 %v1823
    %v1959 = vunpack.c.l.b16 %v1824
    %v1960 = vunpack.c.l.b16 %v1825
    %v1961 = vunpack.c.l.b16 %v1826
    %v1962 = vunpack.c.l.b16 %v1827
    %v1963 = vunpack.c.l.b16 %v1828
    %v1964 = vunpack.c.l.b16 %v1829
    %v1965 = vunpack.c.l.b16 %v1830
    %v1966 = vunpack.c.l.b16 %v1831
    %v1967 = vunpack.c.l.b16 %v1832
    %v1968 = vunpack.c.l.b16 %v1833
    %v1969 = vunpack.c.l.b16 %v1834
    %v1970 = vunpack.c.l.b16 %v1835
    %v1971 = vunpack.c.l.b16 %v1836
    %v1972 = vunpack.c.l.b16 %v1837
    %v1973 = vunpack.c.l.b16 %v1838
    %v1974 = vunpack.c.l.b16 %v1839
    %v1975 = vunpack.c.l.b16 %v1840
    %v1976 = vunpack.c.l.b16 %v1841
    %v1977 = vunpack.c.l.b16 %v1842
    %v1978 = vunpack.c.l.b16 %v1843
    %v1979 = vunpack.c.l.b16 %v1844
    %v1980 = vunpack.c.l.b16 %v1845
    %v1981 = vunpack.c.l.b16 %v1846
    %v1982 = vunpack.c.l.b16 %v1847
    %v1983 = vunpack.c.l.b16 %v1848
    %v1984 = vunpack.c.l.b16 %v1849
    %v1985 = vunpack.c.l.b16 %v1850
    %v1986 = vunpack.c.l.b16 %v1851
    %v1987 = vunpack.c.l.b16 %v1852
    %v1988 = vunpack.c.l.b16 %v1853
    %v1989 = vunpack.c.l.b16 %v1854
    %v1990 = vunpack.c.l.b16 %v1855
    %v1991 = vunpack.c.l.b16 %v1856
    %v1992 = vunpack.c.l.b16 %v1857
    %v1993 = vunpack.c.l.b16 %v1858
    %v1994 = vunpack.c.l.b16 %v1859
    %v1995 = vunpack.c.l.b16 %v1860
    %v1996 = vunpack.c.l.b16 %v1861
    %v1997 = vunpack.c.l.b16 %v1862
    %v1998 = vunpack.c.l.b16 %v1863
    %v1999 = vunpack.c.l.b16 %v1864
    %v2000 = vunpack.c.l.b16 %v1865
    %v2001 = vunpack.c.l.b16 %v1866
    %v2002 = vunpack.c.l.b16 %v1867
    %v2003 = vunpack.c.l.b16 %v1868
    %v2004 = vunpack.c.l.b16 %v1869
    %v2005 = vunpack.c.l.b16 %v1870
    %v2006 = vpack.c.b16 %v1943, %v1942
    %v2007 = vpack.c.b16 %v1945, %v1944
    %v2008 = vpack.c.b16 %v1947, %v1946
    %v2009 = vpack.c.b16 %v1949, %v1948
    %v2010 = vpack.c.b16 %v1951, %v1950
    %v2011 = vpack.c.b16 %v1953, %v1952
    %v2012 = vpack.c.b16 %v1955, %v1954
    %v2013 = vpack.c.b16 %v1957, %v1956
    %v2014 = vpack.c.b16 %v1959, %v1958
    %v2015 = vpack.c.b16 %v1961, %v1960
    %v2016 = vpack.c.b16 %v1963, %v1962
    %v2017 = vpack.c.b16 %v1965, %v1964
    %v2018 = vpack.c.b16 %v1967, %v1966
    %v2019 = vpack.c.b16 %v1969, %v1968
    %v2020 = vpack.c.b16 %v1971, %v1970
    %v2021 = vpack.c.b16 %v1973, %v1972
    %v2022 = vpack.c.b16 %v1975, %v1974
    %v2023 = vpack.c.b16 %v1977, %v1976
    %v2024 = vpack.c.b16 %v1979, %v1978
    %v2025 = vpack.c.b16 %v1981, %v1980
    %v2026 = vpack.c.b16 %v1983, %v1982
    %v2027 = vpack.c.b16 %v1985, %v1984
    %v2028 = vpack.c.b16 %v1987, %v1986
    %v2029 = vpack.c.b16 %v1989, %v1988
    %v2030 = vpack.c.b16 %v1991, %v1990
    %v2031 = vpack.c.b16 %v1993, %v1992
    %v2032 = vpack.c.b16 %v1995, %v1994
    %v2033 = vpack.c.b16 %v1997, %v1996
    %v2034 = vpack.c.b16 %v1999, %v1998
    %v2035 = vpack.c.b16 %v2001, %v2000
    %v2036 = vpack.c.b16 %v2003, %v2002
    %v2037 = vpack.c.b16 %v2005, %v2004
    %2070 = vmatprep.subr.bf16.mxu0 0
    %2071 = vmatpush1.bf16.msra.mxu0 %v2006
    %2072 = vmatprep.subr.bf16.mxu0 0
    %2073 = vmatpush1.bf16.msra.mxu0 %v2007
    %2074 = vmatprep.subr.bf16.mxu0 0
    %2075 = vmatpush1.bf16.msra.mxu0 %v2008
    %2076 = vmatprep.subr.bf16.mxu0 0
    %2077 = vmatpush1.bf16.msra.mxu0 %v2009
    %2078 = vmatprep.subr.bf16.mxu0 0
    %2079 = vmatpush1.bf16.msra.mxu0 %v2010
    %2080 = vmatprep.subr.bf16.mxu0 0
    %2081 = vmatpush1.bf16.msra.mxu0 %v2011
    %2082 = vmatprep.subr.bf16.mxu0 0
    %2083 = vmatpush1.bf16.msra.mxu0 %v2012
    %2084 = vmatprep.subr.bf16.mxu0 0
    %2085 = vmatpush1.bf16.msra.mxu0 %v2013
    %2086 = vmatprep.subr.bf16.mxu0 0
    %2087 = vmatpush1.bf16.msra.mxu0 %v2014
    %2088 = vmatprep.subr.bf16.mxu0 0
    %2089 = vmatpush1.bf16.msra.mxu0 %v2015
    %2090 = vmatprep.subr.bf16.mxu0 0
    %2091 = vmatpush1.bf16.msra.mxu0 %v2016
    %2092 = vmatprep.subr.bf16.mxu0 0
    %2093 = vmatpush1.bf16.msra.mxu0 %v2017
    %2094 = vmatprep.subr.bf16.mxu0 0
    %2095 = vmatpush1.bf16.msra.mxu0 %v2018
    %2096 = vmatprep.subr.bf16.mxu0 0
    %2097 = vmatpush1.bf16.msra.mxu0 %v2019
    %2098 = vmatprep.subr.bf16.mxu0 0
    %2099 = vmatpush1.bf16.msra.mxu0 %v2020
    %2100 = vmatprep.subr.bf16.mxu0 0
    %2101 = vmatpush1.bf16.msra.mxu0 %v2021
    %2102 = vmatprep.mubr.bf16.mxu0 %v1804
    %2103 = vmatmul.mubr.bf16.gmra.mrb[0].mxu0 %v1803
    %v2104 = vpop.f32.mrb[0].mxu0
    %v2105 = vadd.f32 %v1876, %v2104
    %v2106 = vpop.f32.mrb[0].mxu0
    %v2107 = vpop.f32.mrb[0].mxu0
    %v2108 = vadd.f32 %v1876, %v2107
    %v2109 = vpop.f32.mrb[0].mxu0
    %2110 = vdwg.mxu0
    %2111 = vmatprep.subr.bf16.mxu0 0
    %2112 = vmatpush1.bf16.msra.mxu0 %v2022
    %2113 = vmatprep.subr.bf16.mxu0 0
    %2114 = vmatpush1.bf16.msra.mxu0 %v2023
    %2115 = vmatprep.subr.bf16.mxu0 0
    %2116 = vmatpush1.bf16.msra.mxu0 %v2024
    %2117 = vmatprep.subr.bf16.mxu0 0
    %2118 = vmatpush1.bf16.msra.mxu0 %v2025
    %2119 = vmatprep.subr.bf16.mxu0 0
    %2120 = vmatpush1.bf16.msra.mxu0 %v2026
    %2121 = vmatprep.subr.bf16.mxu0 0
    %2122 = vmatpush1.bf16.msra.mxu0 %v2027
    %2123 = vmatprep.subr.bf16.mxu0 0
    %2124 = vmatpush1.bf16.msra.mxu0 %v2028
    %2125 = vmatprep.subr.bf16.mxu0 0
    %2126 = vmatpush1.bf16.msra.mxu0 %v2029
    %2127 = vmatprep.subr.bf16.mxu0 0
    %2128 = vmatpush1.bf16.msra.mxu0 %v2030
    %2129 = vmatprep.subr.bf16.mxu0 0
    %2130 = vmatpush1.bf16.msra.mxu0 %v2031
    %2131 = vmatprep.subr.bf16.mxu0 0
    %2132 = vmatpush1.bf16.msra.mxu0 %v2032
    %2133 = vmatprep.subr.bf16.mxu0 0
    %2134 = vmatpush1.bf16.msra.mxu0 %v2033
    %2135 = vmatprep.subr.bf16.mxu0 0
    %2136 = vmatpush1.bf16.msra.mxu0 %v2034
    %2137 = vmatprep.subr.bf16.mxu0 0
    %2138 = vmatpush1.bf16.msra.mxu0 %v2035
    %2139 = vmatprep.subr.bf16.mxu0 0
    %2140 = vmatpush1.bf16.msra.mxu0 %v2036
    %2141 = vmatprep.subr.bf16.mxu0 0
    %2142 = vmatpush1.bf16.msra.mxu0 %v2037
    %2143 = vmatprep.mubr.bf16.mxu0 %v1806
    %2144 = vmatmul.mubr.bf16.gmra.mrb[0].mxu0 %v1805
    %v2145 = vpop.f32.mrb[0].mxu0
    %v2146 = vadd.f32 %v2105, %v2145
    %v2147 = vpop.f32.mrb[0].mxu0
    %v2148 = vpop.f32.mrb[0].mxu0
    %v2149 = vadd.f32 %v2108, %v2148
    %v2150 = vpop.f32.mrb[0].mxu0
    %2151 = vdwg.mxu0
    %v2152 = vadd.f32 %v1420, %v2146
    %v2153 = vadd.f32 %v1421, %v2149
    %2154 = vst [vmem:[#allocation12] sm:$0xff] %v2152
    %2155 = vst [vmem:[#allocation12 + $0x8] sm:$0xff] %v2153
    // Predicated region
    $region70: #{tpu_custom_call.1} parent=1 // pred_check
      _
    $region71: #{tpu_custom_call.1} parent=1 // pred_check_branch
      %2157 = sbr.rel (0) target = $region73
    $region72: #{tpu_custom_call.1} parent=1 // pred_region
      %s2159 = ssub.s32 256, 256
      %2160 = vsyncadd [#allocation5], %s2159
      %s2161 = sshll.u32 [#allocation12], 4
      %s2162 = int_to_ptr.vmem [resolvable:$true] %s2161
      %2167 = dma.vmem_to_hbm [thread:$0]  %s2162, 256, %s12, [#allocation5], 128, 128, 8
    $region73: #{tpu_custom_call.1} parent=1 // pred_fallthru
      _
    // Predicated region
    $region74: #{tpu_custom_call.1} parent=1 // pred_check
      _
    $region75: #{tpu_custom_call.1} parent=1 // pred_check_branch
      %2169 = sbr.rel (0) target = $region77
    $region76: #{tpu_custom_call.1} parent=1 // pred_region
      %2170 = dma.done [#allocation5], 256
    $region77: #{tpu_custom_call.1} parent=1 // pred_fallthru
      _
    %2171 = vsyncpa [#allocation4], 1
    %2172 = vsyncpa [#allocation7], 1
    %2173 = vsyncpa [#allocation10], 1
    %2174 = vsyncpa [#allocation5], 1

</llo_original>
